<compile_context>
chip_gen: v6e
topology: v6e:2x2x1
jax: 0.10.0
libtpu: 0.0.40
codegen_flags: <defaults>
</compile_context>

<pallas_src>
import functools

import jax
import jax.numpy as jnp
from jax import lax
from jax.experimental import pallas as pl
from jax.experimental.pallas import tpu as pltpu


# ----------------------------- fused Pallas kernel ---------------------------

def _fused_convlstm_kernel(idx_ref, emb_ref, wconv_ref, bconv_ref, wih_ref,
                           bgate_ref, whh_ref, linw_ref, linb_ref, o_ref,
                           gx_ref, *, t_out, b_pad, hidden_pad, ksize, vocab_pad):
    """All shapes static.

    idx_ref  : (S*Bp, 1)    int32 token ids, time-major row = t*Bp + b
    emb_ref  : (Vp, E)      embedding table, rows >= 29 are zero
    wconv_ref: (K, E, C)    conv taps, wconv[k][e, o] == torch conv_w[o, e, k]
    bconv_ref: (1, C)
    wih_ref  : (C, 4*Hp)    torch w_ih.T, gate g occupies lanes [g*Hp, g*Hp+H)
    bgate_ref: (1, 4*Hp)    b_ih + b_hh, same padded layout
    whh_ref  : (Hp, 4*Hp)   recurrent weights, all four gates fused, padded
    linw_ref : (Hp, Cp)     torch lin_w.T, zero-padded
    linb_ref : (1, Cp)      lin_b; padded lanes are -1e30 (vanish in softmax)
    o_ref    : (Bp, Cp)     padded log-softmax output (lane-dense store)
    gx_ref   : (T*Bp, 4*Hp) VMEM scratch for the hoisted input projection
    """
    T, Bp, Hp, K, Vp = t_out, b_pad, hidden_pad, ksize, vocab_pad
    TB = T * Bp
    SB = idx_ref.shape[0]
    C = wconv_ref.shape[2]

    # ---- Embedding: one-hot @ table (in-kernel gather, MXU is idle anyway) ----
    onehot = (idx_ref[...] ==
              lax.broadcasted_iota(jnp.int32, (SB, Vp), 1)).astype(jnp.float32)
    emb = jnp.dot(onehot, emb_ref[...],
                  preferred_element_type=jnp.float32)            # (SB, E)

    # ---- Conv1d + ReLU: sum of K shifted matmuls (rows are time-major) ----
    acc = jnp.zeros((TB, C), jnp.float32)
    for k in range(K):                                            # K=3, static
        acc = acc + jnp.dot(emb[k * Bp:k * Bp + TB, :], wconv_ref[k],
                            preferred_element_type=jnp.float32)
    conv = jnp.maximum(acc + bconv_ref[...], 0.0)                 # (TB, C)

    # ---- LSTM input projection hoisted out of the recurrence (VMEM-staged) ----
    gx_ref[...] = jnp.dot(conv, wih_ref[...],
                          preferred_element_type=jnp.float32) + bgate_ref[...]

    def sig(z):  # sigmoid via tanh -> single EUP op, no VALU divide
        return 0.5 * jnp.tanh(0.5 * z) + 0.5

    h = jnp.zeros((Bp, Hp), jnp.float32)
    c = jnp.zeros((Bp, Hp), jnp.float32)

    # ---- fully-unrolled recurrence: ONE fused (Bp,Hp)@(Hp,4Hp) matmul / step ----
    for t in range(T):
        r = t * Bp                                                # sublane-aligned
        gates = gx_ref[r:r + Bp, :] + jnp.dot(
            h, whh_ref[...], preferred_element_type=jnp.float32)  # (Bp, 4Hp)
        i_g = sig(gates[:, 0 * Hp:1 * Hp])                        # 128-lane aligned
        f_g = sig(gates[:, 1 * Hp:2 * Hp])
        g_g = jnp.tanh(gates[:, 2 * Hp:3 * Hp])
        o_g = sig(gates[:, 3 * Hp:4 * Hp])
        c = f_g * c + i_g * g_g
        h = o_g * jnp.tanh(c)

    # ---- Dropout2d: identity in eval mode ----

    # ---- Linear + LogSoftmax (dim=1); padded class lanes have bias -1e30 ----
    logits = jnp.dot(h, linw_ref[...],
                     preferred_element_type=jnp.float32) + linb_ref[...]  # (Bp, Cp)
    m = jnp.max(logits, axis=1, keepdims=True)
    z = logits - m
    lse = jnp.log(jnp.sum(jnp.exp(z), axis=1, keepdims=True))
    o_ref[...] = z - lse                                          # lane-dense store


# ------------------ one-time parameter re-layout (outside jit) ----------------

def prepare_params(params, *, hidden_size, class_amount,
                   hidden_pad=128, class_pad=128, vocab_pad=32):
    f32 = jnp.float32
    H, Hp = hidden_size, hidden_pad
    Ccls, Cp = class_amount, class_pad

    emb = params["emb"].astype(f32)                               # (29, E)
    V, E = emb.shape
    emb_p = jnp.zeros((vocab_pad, E), f32).at[:V].set(emb)

    conv_w = params["conv_w"].astype(f32)                         # (C, E, K)
    conv_w_k = jnp.transpose(conv_w, (2, 1, 0))                   # (K, E, C)
    conv_b = params["conv_b"].reshape(1, -1).astype(f32)

    w_ih_t = params["w_ih"].T.astype(f32)                         # (C, 4H)
    C_in = w_ih_t.shape[0]
    b_gate = (params["b_ih"] + params["b_hh"]).astype(f32)        # (4H,)
    w_hh = params["w_hh"].astype(f32)                             # (4H, H)

    w_ih_pad = jnp.zeros((C_in, 4 * Hp), f32)
    b_gate_pad = jnp.zeros((1, 4 * Hp), f32)
    w_hh_pad = jnp.zeros((Hp, 4 * Hp), f32)                       # all 4 gates fused
    for g in range(4):                                            # torch order i,f,g,o
        w_ih_pad = w_ih_pad.at[:, g * Hp:g * Hp + H].set(w_ih_t[:, g * H:(g + 1) * H])
        b_gate_pad = b_gate_pad.at[0, g * Hp:g * Hp + H].set(b_gate[g * H:(g + 1) * H])
        w_hh_pad = w_hh_pad.at[:H, g * Hp:g * Hp + H].set(w_hh[g * H:(g + 1) * H, :].T)

    lin_w_pad = jnp.zeros((Hp, Cp), f32).at[:H, :Ccls].set(params["lin_w"].T.astype(f32))
    lin_b_pad = jnp.full((1, Cp), -1e30, f32).at[0, :Ccls].set(params["lin_b"].astype(f32))

    return {
        "emb_p": emb_p, "conv_w_k": conv_w_k, "conv_b": conv_b,
        "w_ih_pad": w_ih_pad, "b_gate_pad": b_gate_pad, "w_hh_pad": w_hh_pad,
        "lin_w_pad": lin_w_pad, "lin_b_pad": lin_b_pad,
    }


# ------------------------------ full forward ----------------------------------

def conv_lstm_forward(x_idx, prepped, *, kernel_size, hidden_size, class_amount,
                      hidden_pad=128, class_pad=128, vocab_pad=32):
    """x_idx: (B, S, 1) int32 token indices (mirrors the torch input)."""
    B, S, _ = x_idx.shape
    K = kernel_size
    T = S - K + 1
    Bp = ((B + 7) // 8) * 8          # pad batch to a sublane multiple

    # tiny int32 glue only: time-major index layout (row = t*Bp + b)
    idx_tm = x_idx[..., 0].astype(jnp.int32).T                    # (S, B)
    if Bp != B:
        idx_tm = jnp.pad(idx_tm, ((0, 0), (0, Bp - B)))           # padded rows discarded
    idx_flat = idx_tm.reshape(S * Bp, 1)

    kernel = functools.partial(_fused_convlstm_kernel, t_out=T, b_pad=Bp,
                               hidden_pad=hidden_pad, ksize=K, vocab_pad=vocab_pad)
    vmem = pl.BlockSpec(memory_space=pltpu.MemorySpace.VMEM)
    out_pad = pl.pallas_call(
        kernel,
        out_shape=jax.ShapeDtypeStruct((Bp, class_pad), jnp.float32),
        in_specs=[vmem] * 9,
        out_specs=vmem,
        scratch_shapes=[pltpu.VMEM((T * Bp, 4 * hidden_pad), jnp.float32)],
    )(idx_flat, prepped["emb_p"], prepped["conv_w_k"], prepped["conv_b"],
      prepped["w_ih_pad"], prepped["b_gate_pad"], prepped["w_hh_pad"],
      prepped["lin_w_pad"], prepped["lin_b_pad"])

    return out_pad[:B, :class_amount]   # lane-dense kernel store; slice is XLA glue


# ------------------------- pure-JAX reference (for checking) ------------------

def reference_forward(x_idx, params, *, kernel_size, hidden_size):
    H = hidden_size
    emb = jnp.take(params["emb"], x_idx[..., 0], axis=0)          # (B, S, E)
    B, S, _ = emb.shape
    K = kernel_size
    T = S - K + 1
    conv = sum(jnp.einsum("bte,oek->bto", emb[:, k:k + T, :],
                          params["conv_w"][:, :, k:k + 1],
                          precision=jax.lax.Precision.HIGHEST) for k in range(K))
    conv = jnp.maximum(conv + params["conv_b"], 0.0)              # (B, T, C)
    w_ih, w_hh = params["w_ih"], params["w_hh"]
    b = params["b_ih"] + params["b_hh"]

    def step(carry, x_t):
        h, c = carry
        gates = x_t @ w_ih.T + h @ w_hh.T + b
        i = jax.nn.sigmoid(gates[:, 0 * H:1 * H])
        f = jax.nn.sigmoid(gates[:, 1 * H:2 * H])
        g = jnp.tanh(gates[:, 2 * H:3 * H])
        o = jax.nn.sigmoid(gates[:, 3 * H:4 * H])
        c = f * c + i * g
        h = o * jnp.tanh(c)
        return (h, c), None

    h0 = jnp.zeros((B, H), jnp.float32)
    (h, _), _ = jax.lax.scan(step, (h0, h0), jnp.transpose(conv, (1, 0, 2)))
    logits = h @ params["lin_w"].T + params["lin_b"]
    return jax.nn.log_softmax(logits, axis=1)


# --------------------------------- main ---------------------------------------

if __name__ == "__main__":
    class_amount = 8
    embedding_size = 64
    hidden_size = 10
    kernel_size = 3
    cnn_out_dim = 128
    vocab = 29

    B, S = 4, 16

    key = jax.random.PRNGKey(0)
    ks = jax.random.split(key, 10)

    params = {
        "emb": jax.random.normal(ks[0], (vocab, embedding_size), jnp.float32),
        "conv_w": 0.05 * jax.random.normal(ks[1], (cnn_out_dim, embedding_size, kernel_size), jnp.float32),
        "conv_b": 0.01 * jax.random.normal(ks[2], (cnn_out_dim,), jnp.float32),
        "w_ih": 0.1 * jax.random.normal(ks[3], (4 * hidden_size, cnn_out_dim), jnp.float32),
        "w_hh": 0.1 * jax.random.normal(ks[4], (4 * hidden_size, hidden_size), jnp.float32),
        "b_ih": 0.01 * jax.random.normal(ks[5], (4 * hidden_size,), jnp.float32),
        "b_hh": 0.01 * jax.random.normal(ks[6], (4 * hidden_size,), jnp.float32),
        "lin_w": 0.1 * jax.random.normal(ks[7], (class_amount, hidden_size), jnp.float32),
        "lin_b": 0.01 * jax.random.normal(ks[8], (class_amount,), jnp.float32),
    }

    x_idx = jax.random.randint(ks[9], (B, S, 1), 0, vocab, dtype=jnp.int32)

    prepped = prepare_params(params, hidden_size=hidden_size,
                             class_amount=class_amount)   # one-time re-layout + padding

    fwd = jax.jit(functools.partial(conv_lstm_forward,
                                    kernel_size=kernel_size,
                                    hidden_size=hidden_size,
                                    class_amount=class_amount))
    out = fwd(x_idx, prepped)
    out = jax.block_until_ready(out)

    assert out.shape == (B, class_amount)
    # log-softmax rows should exp-sum to 1
    assert jnp.allclose(jnp.sum(jnp.exp(out), axis=1), 1.0, atol=1e-4)
    # match the straight-JAX (PyTorch-semantics) reference
    ref = reference_forward(x_idx, params, kernel_size=kernel_size, hidden_size=hidden_size)
    assert jnp.allclose(out, ref, atol=5e-2)
    print("KERNEL_OK")
</pallas_src>

<mosaic_0001>
module attributes {stable_mosaic.version = 11 : i64} {
  func.func @_fused_convlstm_kernel(%arg0: memref<128x1xi32, #tpu.memory_space<vmem>>, %arg1: memref<32x64xf32, #tpu.memory_space<vmem>>, %arg2: memref<3x64x128xf32, #tpu.memory_space<vmem>>, %arg3: memref<1x128xf32, #tpu.memory_space<vmem>>, %arg4: memref<128x512xf32, #tpu.memory_space<vmem>>, %arg5: memref<1x512xf32, #tpu.memory_space<vmem>>, %arg6: memref<128x512xf32, #tpu.memory_space<vmem>>, %arg7: memref<128x128xf32, #tpu.memory_space<vmem>>, %arg8: memref<1x128xf32, #tpu.memory_space<vmem>>, %arg9: memref<8x128xf32, #tpu.memory_space<vmem>>, %arg10: memref<112x512xf32, #tpu.memory_space<vmem>>) attributes {dimension_semantics = [], scalar_prefetch = 0 : i64, scratch_operands = 1 : i64, tpu.core_type = #tpu.core_type<tc>} {
    %c0 = arith.constant 0 : index
    %c0_0 = arith.constant 0 : index
    %0 = vector.load %arg0[%c0, %c0_0] : memref<128x1xi32, #tpu.memory_space<vmem>>, vector<128x1xi32>
    %1 = tpu.iota {dimensions = array<i32: 1>} : vector<128x32xi32>
    %2 = vector.broadcast %0 : vector<128x1xi32> to vector<128x32xi32>
    %3 = arith.cmpi eq, %2, %1 : vector<128x32xi32>
    %4 = arith.extui %3 : vector<128x32xi1> to vector<128x32xi32>
    %5 = arith.sitofp %4 : vector<128x32xi32> to vector<128x32xf32>
    %c0_1 = arith.constant 0 : index
    %c0_2 = arith.constant 0 : index
    %6 = vector.load %arg1[%c0_1, %c0_2] : memref<32x64xf32, #tpu.memory_space<vmem>>, vector<32x64xf32>
    %cst = arith.constant dense<0.000000e+00> : vector<128x64xf32>
    %7 = tpu.matmul %5, %6, %cst {dimension_numbers = #tpu.dot_dimension_numbers<[1], [0], [0], [1], [0, 0, 1, 1], [], []>} : vector<128x32xf32>, vector<32x64xf32>, vector<128x64xf32> -> vector<128x64xf32>
    %cst_3 = arith.constant 0.000000e+00 : f32
    %8 = vector.broadcast %cst_3 : f32 to vector<112x128xf32>
    %9 = vector.extract_strided_slice %7 {offsets = [0, 0], sizes = [112, 64], strides = [1, 1]} : vector<128x64xf32> to vector<112x64xf32>
    %c0_4 = arith.constant 0 : index
    %c0_5 = arith.constant 0 : index
    %c0_6 = arith.constant 0 : index
    %10 = vector.load %arg2[%c0_4, %c0_5, %c0_6] : memref<3x64x128xf32, #tpu.memory_space<vmem>>, vector<1x64x128xf32>
    %11 = vector.shape_cast %10 : vector<1x64x128xf32> to vector<64x128xf32>
    %cst_7 = arith.constant dense<0.000000e+00> : vector<112x128xf32>
    %12 = tpu.matmul %9, %11, %cst_7 {dimension_numbers = #tpu.dot_dimension_numbers<[1], [0], [0], [1], [0, 0, 1, 1], [], []>} : vector<112x64xf32>, vector<64x128xf32>, vector<112x128xf32> -> vector<112x128xf32>
    %13 = arith.addf %8, %12 : vector<112x128xf32>
    %14 = vector.extract_strided_slice %7 {offsets = [8, 0], sizes = [112, 64], strides = [1, 1]} : vector<128x64xf32> to vector<112x64xf32>
    %c1 = arith.constant 1 : index
    %c0_8 = arith.constant 0 : index
    %c0_9 = arith.constant 0 : index
    %15 = vector.load %arg2[%c1, %c0_8, %c0_9] : memref<3x64x128xf32, #tpu.memory_space<vmem>>, vector<1x64x128xf32>
    %16 = vector.shape_cast %15 : vector<1x64x128xf32> to vector<64x128xf32>
    %cst_10 = arith.constant dense<0.000000e+00> : vector<112x128xf32>
    %17 = tpu.matmul %14, %16, %cst_10 {dimension_numbers = #tpu.dot_dimension_numbers<[1], [0], [0], [1], [0, 0, 1, 1], [], []>} : vector<112x64xf32>, vector<64x128xf32>, vector<112x128xf32> -> vector<112x128xf32>
    %18 = arith.addf %13, %17 : vector<112x128xf32>
    %19 = vector.extract_strided_slice %7 {offsets = [16, 0], sizes = [112, 64], strides = [1, 1]} : vector<128x64xf32> to vector<112x64xf32>
    %c2 = arith.constant 2 : index
    %c0_11 = arith.constant 0 : index
    %c0_12 = arith.constant 0 : index
    %20 = vector.load %arg2[%c2, %c0_11, %c0_12] : memref<3x64x128xf32, #tpu.memory_space<vmem>>, vector<1x64x128xf32>
    %21 = vector.shape_cast %20 : vector<1x64x128xf32> to vector<64x128xf32>
    %cst_13 = arith.constant dense<0.000000e+00> : vector<112x128xf32>
    %22 = tpu.matmul %19, %21, %cst_13 {dimension_numbers = #tpu.dot_dimension_numbers<[1], [0], [0], [1], [0, 0, 1, 1], [], []>} : vector<112x64xf32>, vector<64x128xf32>, vector<112x128xf32> -> vector<112x128xf32>
    %23 = arith.addf %18, %22 : vector<112x128xf32>
    %c0_14 = arith.constant 0 : index
    %c0_15 = arith.constant 0 : index
    %24 = vector.load %arg3[%c0_14, %c0_15] : memref<1x128xf32, #tpu.memory_space<vmem>>, vector<1x128xf32>
    %25 = vector.broadcast %24 : vector<1x128xf32> to vector<112x128xf32>
    %26 = arith.addf %23, %25 : vector<112x128xf32>
    %cst_16 = arith.constant 0.000000e+00 : f32
    %27 = vector.broadcast %cst_16 : f32 to vector<112x128xf32>
    %28 = arith.maximumf %26, %27 : vector<112x128xf32>
    %c0_17 = arith.constant 0 : index
    %c0_18 = arith.constant 0 : index
    %29 = vector.load %arg4[%c0_17, %c0_18] : memref<128x512xf32, #tpu.memory_space<vmem>>, vector<128x512xf32>
    %cst_19 = arith.constant dense<0.000000e+00> : vector<112x512xf32>
    %30 = tpu.matmul %28, %29, %cst_19 {dimension_numbers = #tpu.dot_dimension_numbers<[1], [0], [0], [1], [0, 0, 1, 1], [], []>} : vector<112x128xf32>, vector<128x512xf32>, vector<112x512xf32> -> vector<112x512xf32>
    %c0_20 = arith.constant 0 : index
    %c0_21 = arith.constant 0 : index
    %31 = vector.load %arg5[%c0_20, %c0_21] : memref<1x512xf32, #tpu.memory_space<vmem>>, vector<1x512xf32>
    %32 = vector.broadcast %31 : vector<1x512xf32> to vector<112x512xf32>
    %33 = arith.addf %30, %32 : vector<112x512xf32>
    %c0_22 = arith.constant 0 : index
    %c0_23 = arith.constant 0 : index
    %34 = vector.load %arg10[%c0_22, %c0_23] : memref<112x512xf32, #tpu.memory_space<vmem>>, vector<112x512xf32>
    tpu.vector_store %arg10[%c0_22, %c0_23], %33 {strides = array<i32>} : memref<112x512xf32, #tpu.memory_space<vmem>>, vector<112x512xf32>,
    %cst_24 = arith.constant 0.000000e+00 : f32
    %35 = vector.broadcast %cst_24 : f32 to vector<8x128xf32>
    %cst_25 = arith.constant 0.000000e+00 : f32
    %36 = vector.broadcast %cst_25 : f32 to vector<8x128xf32>
    %c0_26 = arith.constant 0 : index
    %c0_27 = arith.constant 0 : index
    %37 = vector.load %arg10[%c0_26, %c0_27] : memref<112x512xf32, #tpu.memory_space<vmem>>, vector<8x512xf32>
    %c0_28 = arith.constant 0 : index
    %c0_29 = arith.constant 0 : index
    %38 = vector.load %arg6[%c0_28, %c0_29] : memref<128x512xf32, #tpu.memory_space<vmem>>, vector<128x512xf32>
    %cst_30 = arith.constant dense<0.000000e+00> : vector<8x512xf32>
    %39 = tpu.matmul %35, %38, %cst_30 {dimension_numbers = #tpu.dot_dimension_numbers<[1], [0], [0], [1], [0, 0, 1, 1], [], []>} : vector<8x128xf32>, vector<128x512xf32>, vector<8x512xf32> -> vector<8x512xf32>
    %40 = arith.addf %37, %39 : vector<8x512xf32>
    %41 = vector.extract_strided_slice %40 {offsets = [0, 0], sizes = [8, 128], strides = [1, 1]} : vector<8x512xf32> to vector<8x128xf32>
    %cst_31 = arith.constant 5.000000e-01 : f32
    %42 = vector.broadcast %cst_31 : f32 to vector<8x128xf32>
    %43 = arith.mulf %42, %41 : vector<8x128xf32>
    %44 = math.tanh %43 : vector<8x128xf32>
    %cst_32 = arith.constant 5.000000e-01 : f32
    %45 = vector.broadcast %cst_32 : f32 to vector<8x128xf32>
    %46 = arith.mulf %45, %44 : vector<8x128xf32>
    %cst_33 = arith.constant 5.000000e-01 : f32
    %47 = vector.broadcast %cst_33 : f32 to vector<8x128xf32>
    %48 = arith.addf %46, %47 : vector<8x128xf32>
    %49 = vector.extract_strided_slice %40 {offsets = [0, 128], sizes = [8, 128], strides = [1, 1]} : vector<8x512xf32> to vector<8x128xf32>
    %cst_34 = arith.constant 5.000000e-01 : f32
    %50 = vector.broadcast %cst_34 : f32 to vector<8x128xf32>
    %51 = arith.mulf %50, %49 : vector<8x128xf32>
    %52 = math.tanh %51 : vector<8x128xf32>
    %cst_35 = arith.constant 5.000000e-01 : f32
    %53 = vector.broadcast %cst_35 : f32 to vector<8x128xf32>
    %54 = arith.mulf %53, %52 : vector<8x128xf32>
    %cst_36 = arith.constant 5.000000e-01 : f32
    %55 = vector.broadcast %cst_36 : f32 to vector<8x128xf32>
    %56 = arith.addf %54, %55 : vector<8x128xf32>
    %57 = vector.extract_strided_slice %40 {offsets = [0, 256], sizes = [8, 128], strides = [1, 1]} : vector<8x512xf32> to vector<8x128xf32>
    %58 = math.tanh %57 : vector<8x128xf32>
    %59 = vector.extract_strided_slice %40 {offsets = [0, 384], sizes = [8, 128], strides = [1, 1]} : vector<8x512xf32> to vector<8x128xf32>
    %cst_37 = arith.constant 5.000000e-01 : f32
    %60 = vector.broadcast %cst_37 : f32 to vector<8x128xf32>
    %61 = arith.mulf %60, %59 : vector<8x128xf32>
    %62 = math.tanh %61 : vector<8x128xf32>
    %cst_38 = arith.constant 5.000000e-01 : f32
    %63 = vector.broadcast %cst_38 : f32 to vector<8x128xf32>
    %64 = arith.mulf %63, %62 : vector<8x128xf32>
    %cst_39 = arith.constant 5.000000e-01 : f32
    %65 = vector.broadcast %cst_39 : f32 to vector<8x128xf32>
    %66 = arith.addf %64, %65 : vector<8x128xf32>
    %67 = arith.mulf %56, %36 : vector<8x128xf32>
    %68 = arith.mulf %48, %58 : vector<8x128xf32>
    %69 = arith.addf %67, %68 : vector<8x128xf32>
    %70 = math.tanh %69 : vector<8x128xf32>
    %71 = arith.mulf %66, %70 : vector<8x128xf32>
    %c8 = arith.constant 8 : index
    %c0_40 = arith.constant 0 : index
    %72 = vector.load %arg10[%c8, %c0_40] : memref<112x512xf32, #tpu.memory_space<vmem>>, vector<8x512xf32>
    %c0_41 = arith.constant 0 : index
    %c0_42 = arith.constant 0 : index
    %73 = vector.load %arg6[%c0_41, %c0_42] : memref<128x512xf32, #tpu.memory_space<vmem>>, vector<128x512xf32>
    %cst_43 = arith.constant dense<0.000000e+00> : vector<8x512xf32>
    %74 = tpu.matmul %71, %73, %cst_43 {dimension_numbers = #tpu.dot_dimension_numbers<[1], [0], [0], [1], [0, 0, 1, 1], [], []>} : vector<8x128xf32>, vector<128x512xf32>, vector<8x512xf32> -> vector<8x512xf32>
    %75 = arith.addf %72, %74 : vector<8x512xf32>
    %76 = vector.extract_strided_slice %75 {offsets = [0, 0], sizes = [8, 128], strides = [1, 1]} : vector<8x512xf32> to vector<8x128xf32>
    %cst_44 = arith.constant 5.000000e-01 : f32
    %77 = vector.broadcast %cst_44 : f32 to vector<8x128xf32>
    %78 = arith.mulf %77, %76 : vector<8x128xf32>
    %79 = math.tanh %78 : vector<8x128xf32>
    %cst_45 = arith.constant 5.000000e-01 : f32
    %80 = vector.broadcast %cst_45 : f32 to vector<8x128xf32>
    %81 = arith.mulf %80, %79 : vector<8x128xf32>
    %cst_46 = arith.constant 5.000000e-01 : f32
    %82 = vector.broadcast %cst_46 : f32 to vector<8x128xf32>
    %83 = arith.addf %81, %82 : vector<8x128xf32>
    %84 = vector.extract_strided_slice %75 {offsets = [0, 128], sizes = [8, 128], strides = [1, 1]} : vector<8x512xf32> to vector<8x128xf32>
    %cst_47 = arith.constant 5.000000e-01 : f32
    %85 = vector.broadcast %cst_47 : f32 to vector<8x128xf32>
    %86 = arith.mulf %85, %84 : vector<8x128xf32>
    %87 = math.tanh %86 : vector<8x128xf32>
    %cst_48 = arith.constant 5.000000e-01 : f32
    %88 = vector.broadcast %cst_48 : f32 to vector<8x128xf32>
    %89 = arith.mulf %88, %87 : vector<8x128xf32>
    %cst_49 = arith.constant 5.000000e-01 : f32
    %90 = vector.broadcast %cst_49 : f32 to vector<8x128xf32>
    %91 = arith.addf %89, %90 : vector<8x128xf32>
    %92 = vector.extract_strided_slice %75 {offsets = [0, 256], sizes = [8, 128], strides = [1, 1]} : vector<8x512xf32> to vector<8x128xf32>
    %93 = math.tanh %92 : vector<8x128xf32>
    %94 = vector.extract_strided_slice %75 {offsets = [0, 384], sizes = [8, 128], strides = [1, 1]} : vector<8x512xf32> to vector<8x128xf32>
    %cst_50 = arith.constant 5.000000e-01 : f32
    %95 = vector.broadcast %cst_50 : f32 to vector<8x128xf32>
    %96 = arith.mulf %95, %94 : vector<8x128xf32>
    %97 = math.tanh %96 : vector<8x128xf32>
    %cst_51 = arith.constant 5.000000e-01 : f32
    %98 = vector.broadcast %cst_51 : f32 to vector<8x128xf32>
    %99 = arith.mulf %98, %97 : vector<8x128xf32>
    %cst_52 = arith.constant 5.000000e-01 : f32
    %100 = vector.broadcast %cst_52 : f32 to vector<8x128xf32>
    %101 = arith.addf %99, %100 : vector<8x128xf32>
    %102 = arith.mulf %91, %69 : vector<8x128xf32>
    %103 = arith.mulf %83, %93 : vector<8x128xf32>
    %104 = arith.addf %102, %103 : vector<8x128xf32>
    %105 = math.tanh %104 : vector<8x128xf32>
    %106 = arith.mulf %101, %105 : vector<8x128xf32>
    %c16 = arith.constant 16 : index
    %c0_53 = arith.constant 0 : index
    %107 = vector.load %arg10[%c16, %c0_53] : memref<112x512xf32, #tpu.memory_space<vmem>>, vector<8x512xf32>
    %c0_54 = arith.constant 0 : index
    %c0_55 = arith.constant 0 : index
    %108 = vector.load %arg6[%c0_54, %c0_55] : memref<128x512xf32, #tpu.memory_space<vmem>>, vector<128x512xf32>
    %cst_56 = arith.constant dense<0.000000e+00> : vector<8x512xf32>
    %109 = tpu.matmul %106, %108, %cst_56 {dimension_numbers = #tpu.dot_dimension_numbers<[1], [0], [0], [1], [0, 0, 1, 1], [], []>} : vector<8x128xf32>, vector<128x512xf32>, vector<8x512xf32> -> vector<8x512xf32>
    %110 = arith.addf %107, %109 : vector<8x512xf32>
    %111 = vector.extract_strided_slice %110 {offsets = [0, 0], sizes = [8, 128], strides = [1, 1]} : vector<8x512xf32> to vector<8x128xf32>
    %cst_57 = arith.constant 5.000000e-01 : f32
    %112 = vector.broadcast %cst_57 : f32 to vector<8x128xf32>
    %113 = arith.mulf %112, %111 : vector<8x128xf32>
    %114 = math.tanh %113 : vector<8x128xf32>
    %cst_58 = arith.constant 5.000000e-01 : f32
    %115 = vector.broadcast %cst_58 : f32 to vector<8x128xf32>
    %116 = arith.mulf %115, %114 : vector<8x128xf32>
    %cst_59 = arith.constant 5.000000e-01 : f32
    %117 = vector.broadcast %cst_59 : f32 to vector<8x128xf32>
    %118 = arith.addf %116, %117 : vector<8x128xf32>
    %119 = vector.extract_strided_slice %110 {offsets = [0, 128], sizes = [8, 128], strides = [1, 1]} : vector<8x512xf32> to vector<8x128xf32>
    %cst_60 = arith.constant 5.000000e-01 : f32
    %120 = vector.broadcast %cst_60 : f32 to vector<8x128xf32>
    %121 = arith.mulf %120, %119 : vector<8x128xf32>
    %122 = math.tanh %121 : vector<8x128xf32>
    %cst_61 = arith.constant 5.000000e-01 : f32
    %123 = vector.broadcast %cst_61 : f32 to vector<8x128xf32>
    %124 = arith.mulf %123, %122 : vector<8x128xf32>
    %cst_62 = arith.constant 5.000000e-01 : f32
    %125 = vector.broadcast %cst_62 : f32 to vector<8x128xf32>
    %126 = arith.addf %124, %125 : vector<8x128xf32>
    %127 = vector.extract_strided_slice %110 {offsets = [0, 256], sizes = [8, 128], strides = [1, 1]} : vector<8x512xf32> to vector<8x128xf32>
    %128 = math.tanh %127 : vector<8x128xf32>
    %129 = vector.extract_strided_slice %110 {offsets = [0, 384], sizes = [8, 128], strides = [1, 1]} : vector<8x512xf32> to vector<8x128xf32>
    %cst_63 = arith.constant 5.000000e-01 : f32
    %130 = vector.broadcast %cst_63 : f32 to vector<8x128xf32>
    %131 = arith.mulf %130, %129 : vector<8x128xf32>
    %132 = math.tanh %131 : vector<8x128xf32>
    %cst_64 = arith.constant 5.000000e-01 : f32
    %133 = vector.broadcast %cst_64 : f32 to vector<8x128xf32>
    %134 = arith.mulf %133, %132 : vector<8x128xf32>
    %cst_65 = arith.constant 5.000000e-01 : f32
    %135 = vector.broadcast %cst_65 : f32 to vector<8x128xf32>
    %136 = arith.addf %134, %135 : vector<8x128xf32>
    %137 = arith.mulf %126, %104 : vector<8x128xf32>
    %138 = arith.mulf %118, %128 : vector<8x128xf32>
    %139 = arith.addf %137, %138 : vector<8x128xf32>
    %140 = math.tanh %139 : vector<8x128xf32>
    %141 = arith.mulf %136, %140 : vector<8x128xf32>
    %c24 = arith.constant 24 : index
    %c0_66 = arith.constant 0 : index
    %142 = vector.load %arg10[%c24, %c0_66] : memref<112x512xf32, #tpu.memory_space<vmem>>, vector<8x512xf32>
    %c0_67 = arith.constant 0 : index
    %c0_68 = arith.constant 0 : index
    %143 = vector.load %arg6[%c0_67, %c0_68] : memref<128x512xf32, #tpu.memory_space<vmem>>, vector<128x512xf32>
    %cst_69 = arith.constant dense<0.000000e+00> : vector<8x512xf32>
    %144 = tpu.matmul %141, %143, %cst_69 {dimension_numbers = #tpu.dot_dimension_numbers<[1], [0], [0], [1], [0, 0, 1, 1], [], []>} : vector<8x128xf32>, vector<128x512xf32>, vector<8x512xf32> -> vector<8x512xf32>
    %145 = arith.addf %142, %144 : vector<8x512xf32>
    %146 = vector.extract_strided_slice %145 {offsets = [0, 0], sizes = [8, 128], strides = [1, 1]} : vector<8x512xf32> to vector<8x128xf32>
    %cst_70 = arith.constant 5.000000e-01 : f32
    %147 = vector.broadcast %cst_70 : f32 to vector<8x128xf32>
    %148 = arith.mulf %147, %146 : vector<8x128xf32>
    %149 = math.tanh %148 : vector<8x128xf32>
    %cst_71 = arith.constant 5.000000e-01 : f32
    %150 = vector.broadcast %cst_71 : f32 to vector<8x128xf32>
    %151 = arith.mulf %150, %149 : vector<8x128xf32>
    %cst_72 = arith.constant 5.000000e-01 : f32
    %152 = vector.broadcast %cst_72 : f32 to vector<8x128xf32>
    %153 = arith.addf %151, %152 : vector<8x128xf32>
    %154 = vector.extract_strided_slice %145 {offsets = [0, 128], sizes = [8, 128], strides = [1, 1]} : vector<8x512xf32> to vector<8x128xf32>
    %cst_73 = arith.constant 5.000000e-01 : f32
    %155 = vector.broadcast %cst_73 : f32 to vector<8x128xf32>
    %156 = arith.mulf %155, %154 : vector<8x128xf32>
    %157 = math.tanh %156 : vector<8x128xf32>
    %cst_74 = arith.constant 5.000000e-01 : f32
    %158 = vector.broadcast %cst_74 : f32 to vector<8x128xf32>
    %159 = arith.mulf %158, %157 : vector<8x128xf32>
    %cst_75 = arith.constant 5.000000e-01 : f32
    %160 = vector.broadcast %cst_75 : f32 to vector<8x128xf32>
    %161 = arith.addf %159, %160 : vector<8x128xf32>
    %162 = vector.extract_strided_slice %145 {offsets = [0, 256], sizes = [8, 128], strides = [1, 1]} : vector<8x512xf32> to vector<8x128xf32>
    %163 = math.tanh %162 : vector<8x128xf32>
    %164 = vector.extract_strided_slice %145 {offsets = [0, 384], sizes = [8, 128], strides = [1, 1]} : vector<8x512xf32> to vector<8x128xf32>
    %cst_76 = arith.constant 5.000000e-01 : f32
    %165 = vector.broadcast %cst_76 : f32 to vector<8x128xf32>
    %166 = arith.mulf %165, %164 : vector<8x128xf32>
    %167 = math.tanh %166 : vector<8x128xf32>
    %cst_77 = arith.constant 5.000000e-01 : f32
    %168 = vector.broadcast %cst_77 : f32 to vector<8x128xf32>
    %169 = arith.mulf %168, %167 : vector<8x128xf32>
    %cst_78 = arith.constant 5.000000e-01 : f32
    %170 = vector.broadcast %cst_78 : f32 to vector<8x128xf32>
    %171 = arith.addf %169, %170 : vector<8x128xf32>
    %172 = arith.mulf %161, %139 : vector<8x128xf32>
    %173 = arith.mulf %153, %163 : vector<8x128xf32>
    %174 = arith.addf %172, %173 : vector<8x128xf32>
    %175 = math.tanh %174 : vector<8x128xf32>
    %176 = arith.mulf %171, %175 : vector<8x128xf32>
    %c32 = arith.constant 32 : index
    %c0_79 = arith.constant 0 : index
    %177 = vector.load %arg10[%c32, %c0_79] : memref<112x512xf32, #tpu.memory_space<vmem>>, vector<8x512xf32>
    %c0_80 = arith.constant 0 : index
    %c0_81 = arith.constant 0 : index
    %178 = vector.load %arg6[%c0_80, %c0_81] : memref<128x512xf32, #tpu.memory_space<vmem>>, vector<128x512xf32>
    %cst_82 = arith.constant dense<0.000000e+00> : vector<8x512xf32>
    %179 = tpu.matmul %176, %178, %cst_82 {dimension_numbers = #tpu.dot_dimension_numbers<[1], [0], [0], [1], [0, 0, 1, 1], [], []>} : vector<8x128xf32>, vector<128x512xf32>, vector<8x512xf32> -> vector<8x512xf32>
    %180 = arith.addf %177, %179 : vector<8x512xf32>
    %181 = vector.extract_strided_slice %180 {offsets = [0, 0], sizes = [8, 128], strides = [1, 1]} : vector<8x512xf32> to vector<8x128xf32>
    %cst_83 = arith.constant 5.000000e-01 : f32
    %182 = vector.broadcast %cst_83 : f32 to vector<8x128xf32>
    %183 = arith.mulf %182, %181 : vector<8x128xf32>
    %184 = math.tanh %183 : vector<8x128xf32>
    %cst_84 = arith.constant 5.000000e-01 : f32
    %185 = vector.broadcast %cst_84 : f32 to vector<8x128xf32>
    %186 = arith.mulf %185, %184 : vector<8x128xf32>
    %cst_85 = arith.constant 5.000000e-01 : f32
    %187 = vector.broadcast %cst_85 : f32 to vector<8x128xf32>
    %188 = arith.addf %186, %187 : vector<8x128xf32>
    %189 = vector.extract_strided_slice %180 {offsets = [0, 128], sizes = [8, 128], strides = [1, 1]} : vector<8x512xf32> to vector<8x128xf32>
    %cst_86 = arith.constant 5.000000e-01 : f32
    %190 = vector.broadcast %cst_86 : f32 to vector<8x128xf32>
    %191 = arith.mulf %190, %189 : vector<8x128xf32>
    %192 = math.tanh %191 : vector<8x128xf32>
    %cst_87 = arith.constant 5.000000e-01 : f32
    %193 = vector.broadcast %cst_87 : f32 to vector<8x128xf32>
    %194 = arith.mulf %193, %192 : vector<8x128xf32>
    %cst_88 = arith.constant 5.000000e-01 : f32
    %195 = vector.broadcast %cst_88 : f32 to vector<8x128xf32>
    %196 = arith.addf %194, %195 : vector<8x128xf32>
    %197 = vector.extract_strided_slice %180 {offsets = [0, 256], sizes = [8, 128], strides = [1, 1]} : vector<8x512xf32> to vector<8x128xf32>
    %198 = math.tanh %197 : vector<8x128xf32>
    %199 = vector.extract_strided_slice %180 {offsets = [0, 384], sizes = [8, 128], strides = [1, 1]} : vector<8x512xf32> to vector<8x128xf32>
    %cst_89 = arith.constant 5.000000e-01 : f32
    %200 = vector.broadcast %cst_89 : f32 to vector<8x128xf32>
    %201 = arith.mulf %200, %199 : vector<8x128xf32>
    %202 = math.tanh %201 : vector<8x128xf32>
    %cst_90 = arith.constant 5.000000e-01 : f32
    %203 = vector.broadcast %cst_90 : f32 to vector<8x128xf32>
    %204 = arith.mulf %203, %202 : vector<8x128xf32>
    %cst_91 = arith.constant 5.000000e-01 : f32
    %205 = vector.broadcast %cst_91 : f32 to vector<8x128xf32>
    %206 = arith.addf %204, %205 : vector<8x128xf32>
    %207 = arith.mulf %196, %174 : vector<8x128xf32>
    %208 = arith.mulf %188, %198 : vector<8x128xf32>
    %209 = arith.addf %207, %208 : vector<8x128xf32>
    %210 = math.tanh %209 : vector<8x128xf32>
    %211 = arith.mulf %206, %210 : vector<8x128xf32>
    %c40 = arith.constant 40 : index
    %c0_92 = arith.constant 0 : index
    %212 = vector.load %arg10[%c40, %c0_92] : memref<112x512xf32, #tpu.memory_space<vmem>>, vector<8x512xf32>
    %c0_93 = arith.constant 0 : index
    %c0_94 = arith.constant 0 : index
    %213 = vector.load %arg6[%c0_93, %c0_94] : memref<128x512xf32, #tpu.memory_space<vmem>>, vector<128x512xf32>
    %cst_95 = arith.constant dense<0.000000e+00> : vector<8x512xf32>
    %214 = tpu.matmul %211, %213, %cst_95 {dimension_numbers = #tpu.dot_dimension_numbers<[1], [0], [0], [1], [0, 0, 1, 1], [], []>} : vector<8x128xf32>, vector<128x512xf32>, vector<8x512xf32> -> vector<8x512xf32>
    %215 = arith.addf %212, %214 : vector<8x512xf32>
    %216 = vector.extract_strided_slice %215 {offsets = [0, 0], sizes = [8, 128], strides = [1, 1]} : vector<8x512xf32> to vector<8x128xf32>
    %cst_96 = arith.constant 5.000000e-01 : f32
    %217 = vector.broadcast %cst_96 : f32 to vector<8x128xf32>
    %218 = arith.mulf %217, %216 : vector<8x128xf32>
    %219 = math.tanh %218 : vector<8x128xf32>
    %cst_97 = arith.constant 5.000000e-01 : f32
    %220 = vector.broadcast %cst_97 : f32 to vector<8x128xf32>
    %221 = arith.mulf %220, %219 : vector<8x128xf32>
    %cst_98 = arith.constant 5.000000e-01 : f32
    %222 = vector.broadcast %cst_98 : f32 to vector<8x128xf32>
    %223 = arith.addf %221, %222 : vector<8x128xf32>
    %224 = vector.extract_strided_slice %215 {offsets = [0, 128], sizes = [8, 128], strides = [1, 1]} : vector<8x512xf32> to vector<8x128xf32>
    %cst_99 = arith.constant 5.000000e-01 : f32
    %225 = vector.broadcast %cst_99 : f32 to vector<8x128xf32>
    %226 = arith.mulf %225, %224 : vector<8x128xf32>
    %227 = math.tanh %226 : vector<8x128xf32>
    %cst_100 = arith.constant 5.000000e-01 : f32
    %228 = vector.broadcast %cst_100 : f32 to vector<8x128xf32>
    %229 = arith.mulf %228, %227 : vector<8x128xf32>
    %cst_101 = arith.constant 5.000000e-01 : f32
    %230 = vector.broadcast %cst_101 : f32 to vector<8x128xf32>
    %231 = arith.addf %229, %230 : vector<8x128xf32>
    %232 = vector.extract_strided_slice %215 {offsets = [0, 256], sizes = [8, 128], strides = [1, 1]} : vector<8x512xf32> to vector<8x128xf32>
    %233 = math.tanh %232 : vector<8x128xf32>
    %234 = vector.extract_strided_slice %215 {offsets = [0, 384], sizes = [8, 128], strides = [1, 1]} : vector<8x512xf32> to vector<8x128xf32>
    %cst_102 = arith.constant 5.000000e-01 : f32
    %235 = vector.broadcast %cst_102 : f32 to vector<8x128xf32>
    %236 = arith.mulf %235, %234 : vector<8x128xf32>
    %237 = math.tanh %236 : vector<8x128xf32>
    %cst_103 = arith.constant 5.000000e-01 : f32
    %238 = vector.broadcast %cst_103 : f32 to vector<8x128xf32>
    %239 = arith.mulf %238, %237 : vector<8x128xf32>
    %cst_104 = arith.constant 5.000000e-01 : f32
    %240 = vector.broadcast %cst_104 : f32 to vector<8x128xf32>
    %241 = arith.addf %239, %240 : vector<8x128xf32>
    %242 = arith.mulf %231, %209 : vector<8x128xf32>
    %243 = arith.mulf %223, %233 : vector<8x128xf32>
    %244 = arith.addf %242, %243 : vector<8x128xf32>
    %245 = math.tanh %244 : vector<8x128xf32>
    %246 = arith.mulf %241, %245 : vector<8x128xf32>
    %c48 = arith.constant 48 : index
    %c0_105 = arith.constant 0 : index
    %247 = vector.load %arg10[%c48, %c0_105] : memref<112x512xf32, #tpu.memory_space<vmem>>, vector<8x512xf32>
    %c0_106 = arith.constant 0 : index
    %c0_107 = arith.constant 0 : index
    %248 = vector.load %arg6[%c0_106, %c0_107] : memref<128x512xf32, #tpu.memory_space<vmem>>, vector<128x512xf32>
    %cst_108 = arith.constant dense<0.000000e+00> : vector<8x512xf32>
    %249 = tpu.matmul %246, %248, %cst_108 {dimension_numbers = #tpu.dot_dimension_numbers<[1], [0], [0], [1], [0, 0, 1, 1], [], []>} : vector<8x128xf32>, vector<128x512xf32>, vector<8x512xf32> -> vector<8x512xf32>
    %250 = arith.addf %247, %249 : vector<8x512xf32>
    %251 = vector.extract_strided_slice %250 {offsets = [0, 0], sizes = [8, 128], strides = [1, 1]} : vector<8x512xf32> to vector<8x128xf32>
    %cst_109 = arith.constant 5.000000e-01 : f32
    %252 = vector.broadcast %cst_109 : f32 to vector<8x128xf32>
    %253 = arith.mulf %252, %251 : vector<8x128xf32>
    %254 = math.tanh %253 : vector<8x128xf32>
    %cst_110 = arith.constant 5.000000e-01 : f32
    %255 = vector.broadcast %cst_110 : f32 to vector<8x128xf32>
    %256 = arith.mulf %255, %254 : vector<8x128xf32>
    %cst_111 = arith.constant 5.000000e-01 : f32
    %257 = vector.broadcast %cst_111 : f32 to vector<8x128xf32>
    %258 = arith.addf %256, %257 : vector<8x128xf32>
    %259 = vector.extract_strided_slice %250 {offsets = [0, 128], sizes = [8, 128], strides = [1, 1]} : vector<8x512xf32> to vector<8x128xf32>
    %cst_112 = arith.constant 5.000000e-01 : f32
    %260 = vector.broadcast %cst_112 : f32 to vector<8x128xf32>
    %261 = arith.mulf %260, %259 : vector<8x128xf32>
    %262 = math.tanh %261 : vector<8x128xf32>
    %cst_113 = arith.constant 5.000000e-01 : f32
    %263 = vector.broadcast %cst_113 : f32 to vector<8x128xf32>
    %264 = arith.mulf %263, %262 : vector<8x128xf32>
    %cst_114 = arith.constant 5.000000e-01 : f32
    %265 = vector.broadcast %cst_114 : f32 to vector<8x128xf32>
    %266 = arith.addf %264, %265 : vector<8x128xf32>
    %267 = vector.extract_strided_slice %250 {offsets = [0, 256], sizes = [8, 128], strides = [1, 1]} : vector<8x512xf32> to vector<8x128xf32>
    %268 = math.tanh %267 : vector<8x128xf32>
    %269 = vector.extract_strided_slice %250 {offsets = [0, 384], sizes = [8, 128], strides = [1, 1]} : vector<8x512xf32> to vector<8x128xf32>
    %cst_115 = arith.constant 5.000000e-01 : f32
    %270 = vector.broadcast %cst_115 : f32 to vector<8x128xf32>
    %271 = arith.mulf %270, %269 : vector<8x128xf32>
    %272 = math.tanh %271 : vector<8x128xf32>
    %cst_116 = arith.constant 5.000000e-01 : f32
    %273 = vector.broadcast %cst_116 : f32 to vector<8x128xf32>
    %274 = arith.mulf %273, %272 : vector<8x128xf32>
    %cst_117 = arith.constant 5.000000e-01 : f32
    %275 = vector.broadcast %cst_117 : f32 to vector<8x128xf32>
    %276 = arith.addf %274, %275 : vector<8x128xf32>
    %277 = arith.mulf %266, %244 : vector<8x128xf32>
    %278 = arith.mulf %258, %268 : vector<8x128xf32>
    %279 = arith.addf %277, %278 : vector<8x128xf32>
    %280 = math.tanh %279 : vector<8x128xf32>
    %281 = arith.mulf %276, %280 : vector<8x128xf32>
    %c56 = arith.constant 56 : index
    %c0_118 = arith.constant 0 : index
    %282 = vector.load %arg10[%c56, %c0_118] : memref<112x512xf32, #tpu.memory_space<vmem>>, vector<8x512xf32>
    %c0_119 = arith.constant 0 : index
    %c0_120 = arith.constant 0 : index
    %283 = vector.load %arg6[%c0_119, %c0_120] : memref<128x512xf32, #tpu.memory_space<vmem>>, vector<128x512xf32>
    %cst_121 = arith.constant dense<0.000000e+00> : vector<8x512xf32>
    %284 = tpu.matmul %281, %283, %cst_121 {dimension_numbers = #tpu.dot_dimension_numbers<[1], [0], [0], [1], [0, 0, 1, 1], [], []>} : vector<8x128xf32>, vector<128x512xf32>, vector<8x512xf32> -> vector<8x512xf32>
    %285 = arith.addf %282, %284 : vector<8x512xf32>
    %286 = vector.extract_strided_slice %285 {offsets = [0, 0], sizes = [8, 128], strides = [1, 1]} : vector<8x512xf32> to vector<8x128xf32>
    %cst_122 = arith.constant 5.000000e-01 : f32
    %287 = vector.broadcast %cst_122 : f32 to vector<8x128xf32>
    %288 = arith.mulf %287, %286 : vector<8x128xf32>
    %289 = math.tanh %288 : vector<8x128xf32>
    %cst_123 = arith.constant 5.000000e-01 : f32
    %290 = vector.broadcast %cst_123 : f32 to vector<8x128xf32>
    %291 = arith.mulf %290, %289 : vector<8x128xf32>
    %cst_124 = arith.constant 5.000000e-01 : f32
    %292 = vector.broadcast %cst_124 : f32 to vector<8x128xf32>
    %293 = arith.addf %291, %292 : vector<8x128xf32>
    %294 = vector.extract_strided_slice %285 {offsets = [0, 128], sizes = [8, 128], strides = [1, 1]} : vector<8x512xf32> to vector<8x128xf32>
    %cst_125 = arith.constant 5.000000e-01 : f32
    %295 = vector.broadcast %cst_125 : f32 to vector<8x128xf32>
    %296 = arith.mulf %295, %294 : vector<8x128xf32>
    %297 = math.tanh %296 : vector<8x128xf32>
    %cst_126 = arith.constant 5.000000e-01 : f32
    %298 = vector.broadcast %cst_126 : f32 to vector<8x128xf32>
    %299 = arith.mulf %298, %297 : vector<8x128xf32>
    %cst_127 = arith.constant 5.000000e-01 : f32
    %300 = vector.broadcast %cst_127 : f32 to vector<8x128xf32>
    %301 = arith.addf %299, %300 : vector<8x128xf32>
    %302 = vector.extract_strided_slice %285 {offsets = [0, 256], sizes = [8, 128], strides = [1, 1]} : vector<8x512xf32> to vector<8x128xf32>
    %303 = math.tanh %302 : vector<8x128xf32>
    %304 = vector.extract_strided_slice %285 {offsets = [0, 384], sizes = [8, 128], strides = [1, 1]} : vector<8x512xf32> to vector<8x128xf32>
    %cst_128 = arith.constant 5.000000e-01 : f32
    %305 = vector.broadcast %cst_128 : f32 to vector<8x128xf32>
    %306 = arith.mulf %305, %304 : vector<8x128xf32>
    %307 = math.tanh %306 : vector<8x128xf32>
    %cst_129 = arith.constant 5.000000e-01 : f32
    %308 = vector.broadcast %cst_129 : f32 to vector<8x128xf32>
    %309 = arith.mulf %308, %307 : vector<8x128xf32>
    %cst_130 = arith.constant 5.000000e-01 : f32
    %310 = vector.broadcast %cst_130 : f32 to vector<8x128xf32>
    %311 = arith.addf %309, %310 : vector<8x128xf32>
    %312 = arith.mulf %301, %279 : vector<8x128xf32>
    %313 = arith.mulf %293, %303 : vector<8x128xf32>
    %314 = arith.addf %312, %313 : vector<8x128xf32>
    %315 = math.tanh %314 : vector<8x128xf32>
    %316 = arith.mulf %311, %315 : vector<8x128xf32>
    %c64 = arith.constant 64 : index
    %c0_131 = arith.constant 0 : index
    %317 = vector.load %arg10[%c64, %c0_131] : memref<112x512xf32, #tpu.memory_space<vmem>>, vector<8x512xf32>
    %c0_132 = arith.constant 0 : index
    %c0_133 = arith.constant 0 : index
    %318 = vector.load %arg6[%c0_132, %c0_133] : memref<128x512xf32, #tpu.memory_space<vmem>>, vector<128x512xf32>
    %cst_134 = arith.constant dense<0.000000e+00> : vector<8x512xf32>
    %319 = tpu.matmul %316, %318, %cst_134 {dimension_numbers = #tpu.dot_dimension_numbers<[1], [0], [0], [1], [0, 0, 1, 1], [], []>} : vector<8x128xf32>, vector<128x512xf32>, vector<8x512xf32> -> vector<8x512xf32>
    %320 = arith.addf %317, %319 : vector<8x512xf32>
    %321 = vector.extract_strided_slice %320 {offsets = [0, 0], sizes = [8, 128], strides = [1, 1]} : vector<8x512xf32> to vector<8x128xf32>
    %cst_135 = arith.constant 5.000000e-01 : f32
    %322 = vector.broadcast %cst_135 : f32 to vector<8x128xf32>
    %323 = arith.mulf %322, %321 : vector<8x128xf32>
    %324 = math.tanh %323 : vector<8x128xf32>
    %cst_136 = arith.constant 5.000000e-01 : f32
    %325 = vector.broadcast %cst_136 : f32 to vector<8x128xf32>
    %326 = arith.mulf %325, %324 : vector<8x128xf32>
    %cst_137 = arith.constant 5.000000e-01 : f32
    %327 = vector.broadcast %cst_137 : f32 to vector<8x128xf32>
    %328 = arith.addf %326, %327 : vector<8x128xf32>
    %329 = vector.extract_strided_slice %320 {offsets = [0, 128], sizes = [8, 128], strides = [1, 1]} : vector<8x512xf32> to vector<8x128xf32>
    %cst_138 = arith.constant 5.000000e-01 : f32
    %330 = vector.broadcast %cst_138 : f32 to vector<8x128xf32>
    %331 = arith.mulf %330, %329 : vector<8x128xf32>
    %332 = math.tanh %331 : vector<8x128xf32>
    %cst_139 = arith.constant 5.000000e-01 : f32
    %333 = vector.broadcast %cst_139 : f32 to vector<8x128xf32>
    %334 = arith.mulf %333, %332 : vector<8x128xf32>
    %cst_140 = arith.constant 5.000000e-01 : f32
    %335 = vector.broadcast %cst_140 : f32 to vector<8x128xf32>
    %336 = arith.addf %334, %335 : vector<8x128xf32>
    %337 = vector.extract_strided_slice %320 {offsets = [0, 256], sizes = [8, 128], strides = [1, 1]} : vector<8x512xf32> to vector<8x128xf32>
    %338 = math.tanh %337 : vector<8x128xf32>
    %339 = vector.extract_strided_slice %320 {offsets = [0, 384], sizes = [8, 128], strides = [1, 1]} : vector<8x512xf32> to vector<8x128xf32>
    %cst_141 = arith.constant 5.000000e-01 : f32
    %340 = vector.broadcast %cst_141 : f32 to vector<8x128xf32>
    %341 = arith.mulf %340, %339 : vector<8x128xf32>
    %342 = math.tanh %341 : vector<8x128xf32>
    %cst_142 = arith.constant 5.000000e-01 : f32
    %343 = vector.broadcast %cst_142 : f32 to vector<8x128xf32>
    %344 = arith.mulf %343, %342 : vector<8x128xf32>
    %cst_143 = arith.constant 5.000000e-01 : f32
    %345 = vector.broadcast %cst_143 : f32 to vector<8x128xf32>
    %346 = arith.addf %344, %345 : vector<8x128xf32>
    %347 = arith.mulf %336, %314 : vector<8x128xf32>
    %348 = arith.mulf %328, %338 : vector<8x128xf32>
    %349 = arith.addf %347, %348 : vector<8x128xf32>
    %350 = math.tanh %349 : vector<8x128xf32>
    %351 = arith.mulf %346, %350 : vector<8x128xf32>
    %c72 = arith.constant 72 : index
    %c0_144 = arith.constant 0 : index
    %352 = vector.load %arg10[%c72, %c0_144] : memref<112x512xf32, #tpu.memory_space<vmem>>, vector<8x512xf32>
    %c0_145 = arith.constant 0 : index
    %c0_146 = arith.constant 0 : index
    %353 = vector.load %arg6[%c0_145, %c0_146] : memref<128x512xf32, #tpu.memory_space<vmem>>, vector<128x512xf32>
    %cst_147 = arith.constant dense<0.000000e+00> : vector<8x512xf32>
    %354 = tpu.matmul %351, %353, %cst_147 {dimension_numbers = #tpu.dot_dimension_numbers<[1], [0], [0], [1], [0, 0, 1, 1], [], []>} : vector<8x128xf32>, vector<128x512xf32>, vector<8x512xf32> -> vector<8x512xf32>
    %355 = arith.addf %352, %354 : vector<8x512xf32>
    %356 = vector.extract_strided_slice %355 {offsets = [0, 0], sizes = [8, 128], strides = [1, 1]} : vector<8x512xf32> to vector<8x128xf32>
    %cst_148 = arith.constant 5.000000e-01 : f32
    %357 = vector.broadcast %cst_148 : f32 to vector<8x128xf32>
    %358 = arith.mulf %357, %356 : vector<8x128xf32>
    %359 = math.tanh %358 : vector<8x128xf32>
    %cst_149 = arith.constant 5.000000e-01 : f32
    %360 = vector.broadcast %cst_149 : f32 to vector<8x128xf32>
    %361 = arith.mulf %360, %359 : vector<8x128xf32>
    %cst_150 = arith.constant 5.000000e-01 : f32
    %362 = vector.broadcast %cst_150 : f32 to vector<8x128xf32>
    %363 = arith.addf %361, %362 : vector<8x128xf32>
    %364 = vector.extract_strided_slice %355 {offsets = [0, 128], sizes = [8, 128], strides = [1, 1]} : vector<8x512xf32> to vector<8x128xf32>
    %cst_151 = arith.constant 5.000000e-01 : f32
    %365 = vector.broadcast %cst_151 : f32 to vector<8x128xf32>
    %366 = arith.mulf %365, %364 : vector<8x128xf32>
    %367 = math.tanh %366 : vector<8x128xf32>
    %cst_152 = arith.constant 5.000000e-01 : f32
    %368 = vector.broadcast %cst_152 : f32 to vector<8x128xf32>
    %369 = arith.mulf %368, %367 : vector<8x128xf32>
    %cst_153 = arith.constant 5.000000e-01 : f32
    %370 = vector.broadcast %cst_153 : f32 to vector<8x128xf32>
    %371 = arith.addf %369, %370 : vector<8x128xf32>
    %372 = vector.extract_strided_slice %355 {offsets = [0, 256], sizes = [8, 128], strides = [1, 1]} : vector<8x512xf32> to vector<8x128xf32>
    %373 = math.tanh %372 : vector<8x128xf32>
    %374 = vector.extract_strided_slice %355 {offsets = [0, 384], sizes = [8, 128], strides = [1, 1]} : vector<8x512xf32> to vector<8x128xf32>
    %cst_154 = arith.constant 5.000000e-01 : f32
    %375 = vector.broadcast %cst_154 : f32 to vector<8x128xf32>
    %376 = arith.mulf %375, %374 : vector<8x128xf32>
    %377 = math.tanh %376 : vector<8x128xf32>
    %cst_155 = arith.constant 5.000000e-01 : f32
    %378 = vector.broadcast %cst_155 : f32 to vector<8x128xf32>
    %379 = arith.mulf %378, %377 : vector<8x128xf32>
    %cst_156 = arith.constant 5.000000e-01 : f32
    %380 = vector.broadcast %cst_156 : f32 to vector<8x128xf32>
    %381 = arith.addf %379, %380 : vector<8x128xf32>
    %382 = arith.mulf %371, %349 : vector<8x128xf32>
    %383 = arith.mulf %363, %373 : vector<8x128xf32>
    %384 = arith.addf %382, %383 : vector<8x128xf32>
    %385 = math.tanh %384 : vector<8x128xf32>
    %386 = arith.mulf %381, %385 : vector<8x128xf32>
    %c80 = arith.constant 80 : index
    %c0_157 = arith.constant 0 : index
    %387 = vector.load %arg10[%c80, %c0_157] : memref<112x512xf32, #tpu.memory_space<vmem>>, vector<8x512xf32>
    %c0_158 = arith.constant 0 : index
    %c0_159 = arith.constant 0 : index
    %388 = vector.load %arg6[%c0_158, %c0_159] : memref<128x512xf32, #tpu.memory_space<vmem>>, vector<128x512xf32>
    %cst_160 = arith.constant dense<0.000000e+00> : vector<8x512xf32>
    %389 = tpu.matmul %386, %388, %cst_160 {dimension_numbers = #tpu.dot_dimension_numbers<[1], [0], [0], [1], [0, 0, 1, 1], [], []>} : vector<8x128xf32>, vector<128x512xf32>, vector<8x512xf32> -> vector<8x512xf32>
    %390 = arith.addf %387, %389 : vector<8x512xf32>
    %391 = vector.extract_strided_slice %390 {offsets = [0, 0], sizes = [8, 128], strides = [1, 1]} : vector<8x512xf32> to vector<8x128xf32>
    %cst_161 = arith.constant 5.000000e-01 : f32
    %392 = vector.broadcast %cst_161 : f32 to vector<8x128xf32>
    %393 = arith.mulf %392, %391 : vector<8x128xf32>
    %394 = math.tanh %393 : vector<8x128xf32>
    %cst_162 = arith.constant 5.000000e-01 : f32
    %395 = vector.broadcast %cst_162 : f32 to vector<8x128xf32>
    %396 = arith.mulf %395, %394 : vector<8x128xf32>
    %cst_163 = arith.constant 5.000000e-01 : f32
    %397 = vector.broadcast %cst_163 : f32 to vector<8x128xf32>
    %398 = arith.addf %396, %397 : vector<8x128xf32>
    %399 = vector.extract_strided_slice %390 {offsets = [0, 128], sizes = [8, 128], strides = [1, 1]} : vector<8x512xf32> to vector<8x128xf32>
    %cst_164 = arith.constant 5.000000e-01 : f32
    %400 = vector.broadcast %cst_164 : f32 to vector<8x128xf32>
    %401 = arith.mulf %400, %399 : vector<8x128xf32>
    %402 = math.tanh %401 : vector<8x128xf32>
    %cst_165 = arith.constant 5.000000e-01 : f32
    %403 = vector.broadcast %cst_165 : f32 to vector<8x128xf32>
    %404 = arith.mulf %403, %402 : vector<8x128xf32>
    %cst_166 = arith.constant 5.000000e-01 : f32
    %405 = vector.broadcast %cst_166 : f32 to vector<8x128xf32>
    %406 = arith.addf %404, %405 : vector<8x128xf32>
    %407 = vector.extract_strided_slice %390 {offsets = [0, 256], sizes = [8, 128], strides = [1, 1]} : vector<8x512xf32> to vector<8x128xf32>
    %408 = math.tanh %407 : vector<8x128xf32>
    %409 = vector.extract_strided_slice %390 {offsets = [0, 384], sizes = [8, 128], strides = [1, 1]} : vector<8x512xf32> to vector<8x128xf32>
    %cst_167 = arith.constant 5.000000e-01 : f32
    %410 = vector.broadcast %cst_167 : f32 to vector<8x128xf32>
    %411 = arith.mulf %410, %409 : vector<8x128xf32>
    %412 = math.tanh %411 : vector<8x128xf32>
    %cst_168 = arith.constant 5.000000e-01 : f32
    %413 = vector.broadcast %cst_168 : f32 to vector<8x128xf32>
    %414 = arith.mulf %413, %412 : vector<8x128xf32>
    %cst_169 = arith.constant 5.000000e-01 : f32
    %415 = vector.broadcast %cst_169 : f32 to vector<8x128xf32>
    %416 = arith.addf %414, %415 : vector<8x128xf32>
    %417 = arith.mulf %406, %384 : vector<8x128xf32>
    %418 = arith.mulf %398, %408 : vector<8x128xf32>
    %419 = arith.addf %417, %418 : vector<8x128xf32>
    %420 = math.tanh %419 : vector<8x128xf32>
    %421 = arith.mulf %416, %420 : vector<8x128xf32>
    %c88 = arith.constant 88 : index
    %c0_170 = arith.constant 0 : index
    %422 = vector.load %arg10[%c88, %c0_170] : memref<112x512xf32, #tpu.memory_space<vmem>>, vector<8x512xf32>
    %c0_171 = arith.constant 0 : index
    %c0_172 = arith.constant 0 : index
    %423 = vector.load %arg6[%c0_171, %c0_172] : memref<128x512xf32, #tpu.memory_space<vmem>>, vector<128x512xf32>
    %cst_173 = arith.constant dense<0.000000e+00> : vector<8x512xf32>
    %424 = tpu.matmul %421, %423, %cst_173 {dimension_numbers = #tpu.dot_dimension_numbers<[1], [0], [0], [1], [0, 0, 1, 1], [], []>} : vector<8x128xf32>, vector<128x512xf32>, vector<8x512xf32> -> vector<8x512xf32>
    %425 = arith.addf %422, %424 : vector<8x512xf32>
    %426 = vector.extract_strided_slice %425 {offsets = [0, 0], sizes = [8, 128], strides = [1, 1]} : vector<8x512xf32> to vector<8x128xf32>
    %cst_174 = arith.constant 5.000000e-01 : f32
    %427 = vector.broadcast %cst_174 : f32 to vector<8x128xf32>
    %428 = arith.mulf %427, %426 : vector<8x128xf32>
    %429 = math.tanh %428 : vector<8x128xf32>
    %cst_175 = arith.constant 5.000000e-01 : f32
    %430 = vector.broadcast %cst_175 : f32 to vector<8x128xf32>
    %431 = arith.mulf %430, %429 : vector<8x128xf32>
    %cst_176 = arith.constant 5.000000e-01 : f32
    %432 = vector.broadcast %cst_176 : f32 to vector<8x128xf32>
    %433 = arith.addf %431, %432 : vector<8x128xf32>
    %434 = vector.extract_strided_slice %425 {offsets = [0, 128], sizes = [8, 128], strides = [1, 1]} : vector<8x512xf32> to vector<8x128xf32>
    %cst_177 = arith.constant 5.000000e-01 : f32
    %435 = vector.broadcast %cst_177 : f32 to vector<8x128xf32>
    %436 = arith.mulf %435, %434 : vector<8x128xf32>
    %437 = math.tanh %436 : vector<8x128xf32>
    %cst_178 = arith.constant 5.000000e-01 : f32
    %438 = vector.broadcast %cst_178 : f32 to vector<8x128xf32>
    %439 = arith.mulf %438, %437 : vector<8x128xf32>
    %cst_179 = arith.constant 5.000000e-01 : f32
    %440 = vector.broadcast %cst_179 : f32 to vector<8x128xf32>
    %441 = arith.addf %439, %440 : vector<8x128xf32>
    %442 = vector.extract_strided_slice %425 {offsets = [0, 256], sizes = [8, 128], strides = [1, 1]} : vector<8x512xf32> to vector<8x128xf32>
    %443 = math.tanh %442 : vector<8x128xf32>
    %444 = vector.extract_strided_slice %425 {offsets = [0, 384], sizes = [8, 128], strides = [1, 1]} : vector<8x512xf32> to vector<8x128xf32>
    %cst_180 = arith.constant 5.000000e-01 : f32
    %445 = vector.broadcast %cst_180 : f32 to vector<8x128xf32>
    %446 = arith.mulf %445, %444 : vector<8x128xf32>
    %447 = math.tanh %446 : vector<8x128xf32>
    %cst_181 = arith.constant 5.000000e-01 : f32
    %448 = vector.broadcast %cst_181 : f32 to vector<8x128xf32>
    %449 = arith.mulf %448, %447 : vector<8x128xf32>
    %cst_182 = arith.constant 5.000000e-01 : f32
    %450 = vector.broadcast %cst_182 : f32 to vector<8x128xf32>
    %451 = arith.addf %449, %450 : vector<8x128xf32>
    %452 = arith.mulf %441, %419 : vector<8x128xf32>
    %453 = arith.mulf %433, %443 : vector<8x128xf32>
    %454 = arith.addf %452, %453 : vector<8x128xf32>
    %455 = math.tanh %454 : vector<8x128xf32>
    %456 = arith.mulf %451, %455 : vector<8x128xf32>
    %c96 = arith.constant 96 : index
    %c0_183 = arith.constant 0 : index
    %457 = vector.load %arg10[%c96, %c0_183] : memref<112x512xf32, #tpu.memory_space<vmem>>, vector<8x512xf32>
    %c0_184 = arith.constant 0 : index
    %c0_185 = arith.constant 0 : index
    %458 = vector.load %arg6[%c0_184, %c0_185] : memref<128x512xf32, #tpu.memory_space<vmem>>, vector<128x512xf32>
    %cst_186 = arith.constant dense<0.000000e+00> : vector<8x512xf32>
    %459 = tpu.matmul %456, %458, %cst_186 {dimension_numbers = #tpu.dot_dimension_numbers<[1], [0], [0], [1], [0, 0, 1, 1], [], []>} : vector<8x128xf32>, vector<128x512xf32>, vector<8x512xf32> -> vector<8x512xf32>
    %460 = arith.addf %457, %459 : vector<8x512xf32>
    %461 = vector.extract_strided_slice %460 {offsets = [0, 0], sizes = [8, 128], strides = [1, 1]} : vector<8x512xf32> to vector<8x128xf32>
    %cst_187 = arith.constant 5.000000e-01 : f32
    %462 = vector.broadcast %cst_187 : f32 to vector<8x128xf32>
    %463 = arith.mulf %462, %461 : vector<8x128xf32>
    %464 = math.tanh %463 : vector<8x128xf32>
    %cst_188 = arith.constant 5.000000e-01 : f32
    %465 = vector.broadcast %cst_188 : f32 to vector<8x128xf32>
    %466 = arith.mulf %465, %464 : vector<8x128xf32>
    %cst_189 = arith.constant 5.000000e-01 : f32
    %467 = vector.broadcast %cst_189 : f32 to vector<8x128xf32>
    %468 = arith.addf %466, %467 : vector<8x128xf32>
    %469 = vector.extract_strided_slice %460 {offsets = [0, 128], sizes = [8, 128], strides = [1, 1]} : vector<8x512xf32> to vector<8x128xf32>
    %cst_190 = arith.constant 5.000000e-01 : f32
    %470 = vector.broadcast %cst_190 : f32 to vector<8x128xf32>
    %471 = arith.mulf %470, %469 : vector<8x128xf32>
    %472 = math.tanh %471 : vector<8x128xf32>
    %cst_191 = arith.constant 5.000000e-01 : f32
    %473 = vector.broadcast %cst_191 : f32 to vector<8x128xf32>
    %474 = arith.mulf %473, %472 : vector<8x128xf32>
    %cst_192 = arith.constant 5.000000e-01 : f32
    %475 = vector.broadcast %cst_192 : f32 to vector<8x128xf32>
    %476 = arith.addf %474, %475 : vector<8x128xf32>
    %477 = vector.extract_strided_slice %460 {offsets = [0, 256], sizes = [8, 128], strides = [1, 1]} : vector<8x512xf32> to vector<8x128xf32>
    %478 = math.tanh %477 : vector<8x128xf32>
    %479 = vector.extract_strided_slice %460 {offsets = [0, 384], sizes = [8, 128], strides = [1, 1]} : vector<8x512xf32> to vector<8x128xf32>
    %cst_193 = arith.constant 5.000000e-01 : f32
    %480 = vector.broadcast %cst_193 : f32 to vector<8x128xf32>
    %481 = arith.mulf %480, %479 : vector<8x128xf32>
    %482 = math.tanh %481 : vector<8x128xf32>
    %cst_194 = arith.constant 5.000000e-01 : f32
    %483 = vector.broadcast %cst_194 : f32 to vector<8x128xf32>
    %484 = arith.mulf %483, %482 : vector<8x128xf32>
    %cst_195 = arith.constant 5.000000e-01 : f32
    %485 = vector.broadcast %cst_195 : f32 to vector<8x128xf32>
    %486 = arith.addf %484, %485 : vector<8x128xf32>
    %487 = arith.mulf %476, %454 : vector<8x128xf32>
    %488 = arith.mulf %468, %478 : vector<8x128xf32>
    %489 = arith.addf %487, %488 : vector<8x128xf32>
    %490 = math.tanh %489 : vector<8x128xf32>
    %491 = arith.mulf %486, %490 : vector<8x128xf32>
    %c104 = arith.constant 104 : index
    %c0_196 = arith.constant 0 : index
    %492 = vector.load %arg10[%c104, %c0_196] : memref<112x512xf32, #tpu.memory_space<vmem>>, vector<8x512xf32>
    %c0_197 = arith.constant 0 : index
    %c0_198 = arith.constant 0 : index
    %493 = vector.load %arg6[%c0_197, %c0_198] : memref<128x512xf32, #tpu.memory_space<vmem>>, vector<128x512xf32>
    %cst_199 = arith.constant dense<0.000000e+00> : vector<8x512xf32>
    %494 = tpu.matmul %491, %493, %cst_199 {dimension_numbers = #tpu.dot_dimension_numbers<[1], [0], [0], [1], [0, 0, 1, 1], [], []>} : vector<8x128xf32>, vector<128x512xf32>, vector<8x512xf32> -> vector<8x512xf32>
    %495 = arith.addf %492, %494 : vector<8x512xf32>
    %496 = vector.extract_strided_slice %495 {offsets = [0, 0], sizes = [8, 128], strides = [1, 1]} : vector<8x512xf32> to vector<8x128xf32>
    %cst_200 = arith.constant 5.000000e-01 : f32
    %497 = vector.broadcast %cst_200 : f32 to vector<8x128xf32>
    %498 = arith.mulf %497, %496 : vector<8x128xf32>
    %499 = math.tanh %498 : vector<8x128xf32>
    %cst_201 = arith.constant 5.000000e-01 : f32
    %500 = vector.broadcast %cst_201 : f32 to vector<8x128xf32>
    %501 = arith.mulf %500, %499 : vector<8x128xf32>
    %cst_202 = arith.constant 5.000000e-01 : f32
    %502 = vector.broadcast %cst_202 : f32 to vector<8x128xf32>
    %503 = arith.addf %501, %502 : vector<8x128xf32>
    %504 = vector.extract_strided_slice %495 {offsets = [0, 128], sizes = [8, 128], strides = [1, 1]} : vector<8x512xf32> to vector<8x128xf32>
    %cst_203 = arith.constant 5.000000e-01 : f32
    %505 = vector.broadcast %cst_203 : f32 to vector<8x128xf32>
    %506 = arith.mulf %505, %504 : vector<8x128xf32>
    %507 = math.tanh %506 : vector<8x128xf32>
    %cst_204 = arith.constant 5.000000e-01 : f32
    %508 = vector.broadcast %cst_204 : f32 to vector<8x128xf32>
    %509 = arith.mulf %508, %507 : vector<8x128xf32>
    %cst_205 = arith.constant 5.000000e-01 : f32
    %510 = vector.broadcast %cst_205 : f32 to vector<8x128xf32>
    %511 = arith.addf %509, %510 : vector<8x128xf32>
    %512 = vector.extract_strided_slice %495 {offsets = [0, 256], sizes = [8, 128], strides = [1, 1]} : vector<8x512xf32> to vector<8x128xf32>
    %513 = math.tanh %512 : vector<8x128xf32>
    %514 = vector.extract_strided_slice %495 {offsets = [0, 384], sizes = [8, 128], strides = [1, 1]} : vector<8x512xf32> to vector<8x128xf32>
    %cst_206 = arith.constant 5.000000e-01 : f32
    %515 = vector.broadcast %cst_206 : f32 to vector<8x128xf32>
    %516 = arith.mulf %515, %514 : vector<8x128xf32>
    %517 = math.tanh %516 : vector<8x128xf32>
    %cst_207 = arith.constant 5.000000e-01 : f32
    %518 = vector.broadcast %cst_207 : f32 to vector<8x128xf32>
    %519 = arith.mulf %518, %517 : vector<8x128xf32>
    %cst_208 = arith.constant 5.000000e-01 : f32
    %520 = vector.broadcast %cst_208 : f32 to vector<8x128xf32>
    %521 = arith.addf %519, %520 : vector<8x128xf32>
    %522 = arith.mulf %511, %489 : vector<8x128xf32>
    %523 = arith.mulf %503, %513 : vector<8x128xf32>
    %524 = arith.addf %522, %523 : vector<8x128xf32>
    %525 = math.tanh %524 : vector<8x128xf32>
    %526 = arith.mulf %521, %525 : vector<8x128xf32>
    %c0_209 = arith.constant 0 : index
    %c0_210 = arith.constant 0 : index
    %527 = vector.load %arg7[%c0_209, %c0_210] : memref<128x128xf32, #tpu.memory_space<vmem>>, vector<128x128xf32>
    %cst_211 = arith.constant dense<0.000000e+00> : vector<8x128xf32>
    %528 = tpu.matmul %526, %527, %cst_211 {dimension_numbers = #tpu.dot_dimension_numbers<[1], [0], [0], [1], [0, 0, 1, 1], [], []>} : vector<8x128xf32>, vector<128x128xf32>, vector<8x128xf32> -> vector<8x128xf32>
    %c0_212 = arith.constant 0 : index
    %c0_213 = arith.constant 0 : index
    %529 = vector.load %arg8[%c0_212, %c0_213] : memref<1x128xf32, #tpu.memory_space<vmem>>, vector<1x128xf32>
    %530 = vector.broadcast %529 : vector<1x128xf32> to vector<8x128xf32>
    %531 = arith.addf %528, %530 : vector<8x128xf32>
    %cst_214 = arith.constant dense<0xFF800000> : vector<8xf32>
    %532 = vector.multi_reduction <maximumf>, %531, %cst_214 [1] : vector<8x128xf32> to vector<8xf32>
    %533 = vector.shape_cast %532 : vector<8xf32> to vector<8x1xf32>
    %534 = vector.broadcast %533 : vector<8x1xf32> to vector<8x128xf32>
    %535 = arith.subf %531, %534 : vector<8x128xf32>
    %536 = math.exp %535 : vector<8x128xf32>
    %cst_215 = arith.constant dense<0.000000e+00> : vector<8xf32>
    %537 = vector.multi_reduction <add>, %536, %cst_215 [1] : vector<8x128xf32> to vector<8xf32>
    %538 = vector.shape_cast %537 : vector<8xf32> to vector<8x1xf32>
    %539 = math.log %538 : vector<8x1xf32>
    %540 = vector.broadcast %539 : vector<8x1xf32> to vector<8x128xf32>
    %541 = arith.subf %535, %540 : vector<8x128xf32>
    %c0_216 = arith.constant 0 : index
    %c0_217 = arith.constant 0 : index
    %542 = vector.load %arg9[%c0_216, %c0_217] : memref<8x128xf32, #tpu.memory_space<vmem>>, vector<8x128xf32>
    tpu.vector_store %arg9[%c0_216, %c0_217], %541 {strides = array<i32>} : memref<8x128xf32, #tpu.memory_space<vmem>>, vector<8x128xf32>,
    return
  }
}

</mosaic_0001>

<llo_original>
// kernel: conv_lstm_forward.1
$region0: #{conv_lstm_forward.1}
  #allocation0 [shape = 'u32[]', space=smem, size = 0x4, offset = 0x4, fixed_abs, tag = 'smem constant byte address 0x4 - core index']
  #allocation1 [shape = 'u32[144,128]{1,0:T(1,128)}', space=vmem, size = 0x12000, scoped, tag = 'internal scratch']
  #allocation2 [shape = 'f32[112,512]{1,0:T(8,128)}', space=vmem, size = 0x38000, scoped, tag = 'scratch operand']
  %s0 = inlined_call_operand.vmem [shape: s32[128,1], index: 0, kind: input, shape index: {}]
  %s1 = inlined_call_operand.hbm [shape: f32[32,64], index: 1, kind: input, shape index: {}]
  %s2 = inlined_call_operand.vmem [shape: f32[3,64,128], index: 2, kind: input, shape index: {}]
  %s3 = inlined_call_operand.vmem [shape: f32[1,128], index: 3, kind: input, shape index: {}]
  %s4 = inlined_call_operand.hbm [shape: f32[128,512], index: 4, kind: input, shape index: {}]
  %s5 = inlined_call_operand.vmem [shape: f32[1,512], index: 5, kind: input, shape index: {}]
  %s6 = inlined_call_operand.hbm [shape: f32[128,512], index: 6, kind: input, shape index: {}]
  %s7 = inlined_call_operand.hbm [shape: f32[128,128], index: 7, kind: input, shape index: {}]
  %s8 = inlined_call_operand.vmem [shape: f32[1,128], index: 8, kind: input, shape index: {}]
  %s9 = inlined_call_operand.vmem [shape: f32[8,128], index: 9, kind: output, shape index: {}]
  %s10 = sld [smem:[#allocation0]]
  $region62: #{conv_lstm_forward.1} parent=0
    _
  %s12 = ssub.s32 1, %s10
  %s13 = scalar_select 0, %s12, %s10
  $region1: #{conv_lstm_forward.1} parent=0
    #allocation3 [shape = 'u8[16384]{0}', space=vmem, size = 0x4000, scoped, tag = 'input window, operand 1, single buffered']
    #allocation4 [shape = 's32[1]{0}', space=sflag, size = 0x4, scoped, tag = 'scoped memory for conv_lstm_forward.1']
    #allocation5 [shape = 'u8[262144]{0}', space=vmem, size = 0x40000, scoped, tag = 'input window, operand 4, single buffered']
    #allocation6 [shape = 's32[1]{0}', space=sflag, size = 0x4, scoped, tag = 'scoped memory for conv_lstm_forward.1']
    #allocation7 [shape = 'u8[262144]{0}', space=vmem, size = 0x40000, scoped, tag = 'input window, operand 6, single buffered']
    #allocation8 [shape = 'u8[65536]{0}', space=vmem, size = 0x10000, scoped, tag = 'input window, operand 7, single buffered']
    #allocation9 [shape = 's32[1]{0}', space=sflag, size = 0x4, scoped, tag = 'scoped memory for conv_lstm_forward.1']
    %14 = vsyncpa [#allocation4], 0
    %15 = vsyncpa [#allocation6], 0
    %16 = vsyncpa [#allocation9], 0
    // Predicated region
    $region2: #{conv_lstm_forward.1} parent=1 // pred_check
      _
    $region3: #{conv_lstm_forward.1} parent=1 // pred_check_branch
      %18 = sbr.rel (0) target = $region5
    $region4: #{conv_lstm_forward.1} parent=1 // pred_region
      _
    $region5: #{conv_lstm_forward.1} parent=1 // pred_fallthru
      _
    // Predicated region
    $region6: #{conv_lstm_forward.1} parent=1 // pred_check
      _
    $region7: #{conv_lstm_forward.1} parent=1 // pred_check_branch
      %20 = sbr.rel (0) target = $region9
    $region8: #{conv_lstm_forward.1} parent=1 // pred_region
      %s22 = ssub.s32 512, 512
      %23 = vsyncadd [#allocation4], %s22
      %s24 = sshll.u32 [#allocation3], 4
      %s25 = int_to_ptr.vmem [resolvable:$true] %s24
      %30 = dma.hbm_to_vmem [thread:$0]  %s1, 512, %s25, [#allocation4], 128, 128, 8
    $region9: #{conv_lstm_forward.1} parent=1 // pred_fallthru
      _
    // Predicated region
    $region10: #{conv_lstm_forward.1} parent=1 // pred_check
      _
    $region11: #{conv_lstm_forward.1} parent=1 // pred_check_branch
      %32 = sbr.rel (0) target = $region13
    $region12: #{conv_lstm_forward.1} parent=1 // pred_region
      _
    $region13: #{conv_lstm_forward.1} parent=1 // pred_fallthru
      _
    // Predicated region
    $region14: #{conv_lstm_forward.1} parent=1 // pred_check
      _
    $region15: #{conv_lstm_forward.1} parent=1 // pred_check_branch
      %34 = sbr.rel (0) target = $region17
    $region16: #{conv_lstm_forward.1} parent=1 // pred_region
      _
    $region17: #{conv_lstm_forward.1} parent=1 // pred_fallthru
      _
    // Predicated region
    $region18: #{conv_lstm_forward.1} parent=1 // pred_check
      _
    $region19: #{conv_lstm_forward.1} parent=1 // pred_check_branch
      %36 = sbr.rel (0) target = $region21
    $region20: #{conv_lstm_forward.1} parent=1 // pred_region
      %s38 = ssub.s32 8192, 8192
      %39 = vsyncadd [#allocation6], %s38
      %s40 = sshll.u32 [#allocation5], 4
      %s41 = int_to_ptr.vmem [resolvable:$true] %s40
      %46 = dma.hbm_to_vmem [thread:$0]  %s4, 8192, %s41, [#allocation6], 512, 512, 32
    $region21: #{conv_lstm_forward.1} parent=1 // pred_fallthru
      _
    // Predicated region
    $region22: #{conv_lstm_forward.1} parent=1 // pred_check
      _
    $region23: #{conv_lstm_forward.1} parent=1 // pred_check_branch
      %48 = sbr.rel (0) target = $region25
    $region24: #{conv_lstm_forward.1} parent=1 // pred_region
      _
    $region25: #{conv_lstm_forward.1} parent=1 // pred_fallthru
      _
    // Predicated region
    $region26: #{conv_lstm_forward.1} parent=1 // pred_check
      _
    $region27: #{conv_lstm_forward.1} parent=1 // pred_check_branch
      %50 = sbr.rel (0) target = $region29
    $region28: #{conv_lstm_forward.1} parent=1 // pred_region
      %s52 = ssub.s32 8192, 8192
      %53 = vsyncadd [#allocation6], %s52
      %s54 = sshll.u32 [#allocation7], 4
      %s55 = int_to_ptr.vmem [resolvable:$true] %s54
      %60 = dma.hbm_to_vmem [thread:$0]  %s6, 8192, %s55, [#allocation6], 512, 512, 32
    $region29: #{conv_lstm_forward.1} parent=1 // pred_fallthru
      _
    // Predicated region
    $region30: #{conv_lstm_forward.1} parent=1 // pred_check
      _
    $region31: #{conv_lstm_forward.1} parent=1 // pred_check_branch
      %62 = sbr.rel (0) target = $region33
    $region32: #{conv_lstm_forward.1} parent=1 // pred_region
      %s64 = ssub.s32 2048, 2048
      %65 = vsyncadd [#allocation9], %s64
      %s66 = sshll.u32 [#allocation8], 4
      %s67 = int_to_ptr.vmem [resolvable:$true] %s66
      %72 = dma.hbm_to_vmem [thread:$0]  %s7, 2048, %s67, [#allocation9], 128, 128, 8
    $region33: #{conv_lstm_forward.1} parent=1 // pred_fallthru
      _
    // Predicated region
    $region34: #{conv_lstm_forward.1} parent=1 // pred_check
      _
    $region35: #{conv_lstm_forward.1} parent=1 // pred_check_branch
      %74 = sbr.rel (0) target = $region37
    $region36: #{conv_lstm_forward.1} parent=1 // pred_region
      _
    $region37: #{conv_lstm_forward.1} parent=1 // pred_fallthru
      _
    // Predicated region
    $region38: #{conv_lstm_forward.1} parent=1 // pred_check
      _
    $region39: #{conv_lstm_forward.1} parent=1 // pred_check_branch
      %76 = sbr.rel (0) target = $region41
    $region40: #{conv_lstm_forward.1} parent=1 // pred_region
      %77 = dma.done [#allocation4], 512
    $region41: #{conv_lstm_forward.1} parent=1 // pred_fallthru
      _
    // Predicated region
    $region42: #{conv_lstm_forward.1} parent=1 // pred_check
      _
    $region43: #{conv_lstm_forward.1} parent=1 // pred_check_branch
      %79 = sbr.rel (0) target = $region45
    $region44: #{conv_lstm_forward.1} parent=1 // pred_region
      %80 = dma.done [#allocation6], 8192
    $region45: #{conv_lstm_forward.1} parent=1 // pred_fallthru
      _
    // Predicated region
    $region46: #{conv_lstm_forward.1} parent=1 // pred_check
      _
    $region47: #{conv_lstm_forward.1} parent=1 // pred_check_branch
      %82 = sbr.rel (0) target = $region49
    $region48: #{conv_lstm_forward.1} parent=1 // pred_region
      %83 = dma.done [#allocation6], 8192
    $region49: #{conv_lstm_forward.1} parent=1 // pred_fallthru
      _
    // Predicated region
    $region50: #{conv_lstm_forward.1} parent=1 // pred_check
      _
    $region51: #{conv_lstm_forward.1} parent=1 // pred_check_branch
      %85 = sbr.rel (0) target = $region53
    $region52: #{conv_lstm_forward.1} parent=1 // pred_region
      %86 = dma.done [#allocation9], 2048
    $region53: #{conv_lstm_forward.1} parent=1 // pred_fallthru
      _
    %v87 = vld [vmem:[%s0] sm:$0xff]
    %v88 = vld [vmem:[%s0 + $0x8] sm:$0xff]
    %v89 = vld [vmem:[%s0 + $0x10] sm:$0xff]
    %v90 = vld [vmem:[%s0 + $0x18] sm:$0xff]
    %v91 = vld [vmem:[%s0 + $0x20] sm:$0xff]
    %v92 = vld [vmem:[%s0 + $0x28] sm:$0xff]
    %v93 = vld [vmem:[%s0 + $0x30] sm:$0xff]
    %v94 = vld [vmem:[%s0 + $0x38] sm:$0xff]
    %v95 = vld [vmem:[%s0 + $0x40] sm:$0xff]
    %v96 = vld [vmem:[%s0 + $0x48] sm:$0xff]
    %v97 = vld [vmem:[%s0 + $0x50] sm:$0xff]
    %v98 = vld [vmem:[%s0 + $0x58] sm:$0xff]
    %v99 = vld [vmem:[%s0 + $0x60] sm:$0xff]
    %v100 = vld [vmem:[%s0 + $0x68] sm:$0xff]
    %v101 = vld [vmem:[%s0 + $0x70] sm:$0xff]
    %v102 = vld [vmem:[%s0 + $0x78] sm:$0xff]
    %v103 = vlaneseq
    %v104 = vand.u32 %v103, 127
    %105 = vset.pattern.permute.xlu0 0
    %106 = vperm.xlu0 %105, %v87
    %v107 = vpop.permute.xlu0 %106
    %108 = vset.pattern.permute.xlu0 0
    %109 = vperm.xlu0 %108, %v88
    %v110 = vpop.permute.xlu0 %109
    %111 = vset.pattern.permute.xlu0 0
    %112 = vperm.xlu0 %111, %v89
    %v113 = vpop.permute.xlu0 %112
    %114 = vset.pattern.permute.xlu0 0
    %115 = vperm.xlu0 %114, %v90
    %v116 = vpop.permute.xlu0 %115
    %117 = vset.pattern.permute.xlu0 0
    %118 = vperm.xlu0 %117, %v91
    %v119 = vpop.permute.xlu0 %118
    %120 = vset.pattern.permute.xlu0 0
    %121 = vperm.xlu0 %120, %v92
    %v122 = vpop.permute.xlu0 %121
    %123 = vset.pattern.permute.xlu0 0
    %124 = vperm.xlu0 %123, %v93
    %v125 = vpop.permute.xlu0 %124
    %126 = vset.pattern.permute.xlu0 0
    %127 = vperm.xlu0 %126, %v94
    %v128 = vpop.permute.xlu0 %127
    %129 = vset.pattern.permute.xlu0 0
    %130 = vperm.xlu0 %129, %v95
    %v131 = vpop.permute.xlu0 %130
    %132 = vset.pattern.permute.xlu0 0
    %133 = vperm.xlu0 %132, %v96
    %v134 = vpop.permute.xlu0 %133
    %135 = vset.pattern.permute.xlu0 0
    %136 = vperm.xlu0 %135, %v97
    %v137 = vpop.permute.xlu0 %136
    %138 = vset.pattern.permute.xlu0 0
    %139 = vperm.xlu0 %138, %v98
    %v140 = vpop.permute.xlu0 %139
    %141 = vset.pattern.permute.xlu0 0
    %142 = vperm.xlu0 %141, %v99
    %v143 = vpop.permute.xlu0 %142
    %144 = vset.pattern.permute.xlu0 0
    %145 = vperm.xlu0 %144, %v100
    %v146 = vpop.permute.xlu0 %145
    %147 = vset.pattern.permute.xlu0 0
    %148 = vperm.xlu0 %147, %v101
    %v149 = vpop.permute.xlu0 %148
    %150 = vset.pattern.permute.xlu0 0
    %151 = vperm.xlu0 %150, %v102
    %v152 = vpop.permute.xlu0 %151
    %vm153 = vcmp.eq.s32.totalorder %v107, %v104
    %vm154 = vcmp.eq.s32.totalorder %v110, %v104
    %vm155 = vcmp.eq.s32.totalorder %v113, %v104
    %vm156 = vcmp.eq.s32.totalorder %v116, %v104
    %vm157 = vcmp.eq.s32.totalorder %v119, %v104
    %vm158 = vcmp.eq.s32.totalorder %v122, %v104
    %vm159 = vcmp.eq.s32.totalorder %v125, %v104
    %vm160 = vcmp.eq.s32.totalorder %v128, %v104
    %vm161 = vcmp.eq.s32.totalorder %v131, %v104
    %vm162 = vcmp.eq.s32.totalorder %v134, %v104
    %vm163 = vcmp.eq.s32.totalorder %v137, %v104
    %vm164 = vcmp.eq.s32.totalorder %v140, %v104
    %vm165 = vcmp.eq.s32.totalorder %v143, %v104
    %vm166 = vcmp.eq.s32.totalorder %v146, %v104
    %vm167 = vcmp.eq.s32.totalorder %v149, %v104
    %vm168 = vcmp.eq.s32.totalorder %v152, %v104
    %v169 = vsel %vm153, 1, 0
    %v170 = vsel %vm154, 1, 0
    %v171 = vsel %vm155, 1, 0
    %v172 = vsel %vm156, 1, 0
    %v173 = vsel %vm157, 1, 0
    %v174 = vsel %vm158, 1, 0
    %v175 = vsel %vm159, 1, 0
    %v176 = vsel %vm160, 1, 0
    %v177 = vsel %vm161, 1, 0
    %v178 = vsel %vm162, 1, 0
    %v179 = vsel %vm163, 1, 0
    %v180 = vsel %vm164, 1, 0
    %v181 = vsel %vm165, 1, 0
    %v182 = vsel %vm166, 1, 0
    %v183 = vsel %vm167, 1, 0
    %v184 = vsel %vm168, 1, 0
    %v185 = vcvt.s32.f32 %v169
    %v186 = vcvt.s32.f32 %v170
    %v187 = vcvt.s32.f32 %v171
    %v188 = vcvt.s32.f32 %v172
    %v189 = vcvt.s32.f32 %v173
    %v190 = vcvt.s32.f32 %v174
    %v191 = vcvt.s32.f32 %v175
    %v192 = vcvt.s32.f32 %v176
    %v193 = vcvt.s32.f32 %v177
    %v194 = vcvt.s32.f32 %v178
    %v195 = vcvt.s32.f32 %v179
    %v196 = vcvt.s32.f32 %v180
    %v197 = vcvt.s32.f32 %v181
    %v198 = vcvt.s32.f32 %v182
    %v199 = vcvt.s32.f32 %v183
    %v200 = vcvt.s32.f32 %v184
    %v201 = vld [vmem:[#allocation3] sm:$0xff]
    %v202 = vld [vmem:[#allocation3 + $0x8] sm:$0xff]
    %v203 = vld [vmem:[#allocation3 + $0x10] sm:$0xff]
    %v204 = vld [vmem:[#allocation3 + $0x18] sm:$0xff]
    %vm205 = vcmask 261120
    %v207 = vsel %vm205, %v185, 0
    %v210 = vsel %vm205, %v186, 0
    %v213 = vsel %vm205, %v187, 0
    %v216 = vsel %vm205, %v188, 0
    %v219 = vsel %vm205, %v189, 0
    %v222 = vsel %vm205, %v190, 0
    %v225 = vsel %vm205, %v191, 0
    %v228 = vsel %vm205, %v192, 0
    %v231 = vsel %vm205, %v193, 0
    %v234 = vsel %vm205, %v194, 0
    %v237 = vsel %vm205, %v195, 0
    %v240 = vsel %vm205, %v196, 0
    %v243 = vsel %vm205, %v197, 0
    %v246 = vsel %vm205, %v198, 0
    %v249 = vsel %vm205, %v199, 0
    %v252 = vsel %vm205, %v200, 0
    %254 = vmatprep.subr.mxu0 0.0
    %255 = vmatpush1.msra.mxu0 0.0
    %256 = vmatprep.subr.mxu0 0.0
    %257 = vmatpush1.msra.mxu0 0.0
    %258 = vmatprep.subr.mxu0 0.0
    %259 = vmatpush1.msra.mxu0 0.0
    %260 = vmatprep.subr.mxu0 0.0
    %261 = vmatpush1.msra.mxu0 0.0
    %262 = vmatprep.subr.mxu0 0.0
    %263 = vmatpush1.msra.mxu0 0.0
    %264 = vmatprep.subr.mxu0 0.0
    %265 = vmatpush1.msra.mxu0 0.0
    %266 = vmatprep.subr.mxu0 0.0
    %267 = vmatpush1.msra.mxu0 0.0
    %268 = vmatprep.subr.mxu0 0.0
    %269 = vmatpush1.msra.mxu0 0.0
    %270 = vmatprep.subr.mxu0 0.0
    %271 = vmatpush1.msra.mxu0 0.0
    %272 = vmatprep.subr.mxu0 0.0
    %273 = vmatpush1.msra.mxu0 0.0
    %274 = vmatprep.subr.mxu0 0.0
    %275 = vmatpush1.msra.mxu0 0.0
    %276 = vmatprep.subr.mxu0 0.0
    %277 = vmatpush1.msra.mxu0 0.0
    %278 = vmatprep.subr.mxu0 0.0
    %279 = vmatpush1.msra.mxu0 %v204
    %280 = vmatprep.subr.mxu0 0.0
    %281 = vmatpush1.msra.mxu0 %v203
    %282 = vmatprep.subr.mxu0 0.0
    %283 = vmatpush1.msra.mxu0 %v202
    %284 = vmatprep.subr.mxu0 0.0
    %285 = vmatpush1.msra.mxu0 %v201
    %286 = vmatprep.subr.mxu0 0.0
    %287 = vmatpush2.msra.mxu0 0.0
    %288 = vmatprep.subr.mxu0 0.0
    %289 = vmatpush2.msra.mxu0 0.0
    %290 = vmatprep.subr.mxu0 0.0
    %291 = vmatpush2.msra.mxu0 0.0
    %292 = vmatprep.subr.mxu0 0.0
    %293 = vmatpush2.msra.mxu0 0.0
    %294 = vmatprep.subr.mxu0 0.0
    %295 = vmatpush2.msra.mxu0 0.0
    %296 = vmatprep.subr.mxu0 0.0
    %297 = vmatpush2.msra.mxu0 0.0
    %298 = vmatprep.subr.mxu0 0.0
    %299 = vmatpush2.msra.mxu0 0.0
    %300 = vmatprep.subr.mxu0 0.0
    %301 = vmatpush2.msra.mxu0 0.0
    %302 = vmatprep.subr.mxu0 0.0
    %303 = vmatpush2.msra.mxu0 0.0
    %304 = vmatprep.subr.mxu0 0.0
    %305 = vmatpush2.msra.mxu0 0.0
    %306 = vmatprep.subr.mxu0 0.0
    %307 = vmatpush2.msra.mxu0 0.0
    %308 = vmatprep.subr.mxu0 0.0
    %309 = vmatpush2.msra.mxu0 0.0
    %310 = vmatprep.subr.mxu0 0.0
    %311 = vmatpush2.msra.mxu0 0.0
    %312 = vmatprep.subr.mxu0 0.0
    %313 = vmatpush2.msra.mxu0 0.0
    %314 = vmatprep.subr.mxu0 0.0
    %315 = vmatpush2.msra.mxu0 0.0
    %316 = vmatprep.subr.mxu0 0.0
    %317 = vmatpush2.msra.mxu0 0.0
    %318 = vmatprep.mubr.f32.mxu0 0.0
    %319 = vmatmul.mubr.f32.gmra.mxu0 %v207
    %v320 = vpop.f32.mrf.mxu0
    %v321 = vadd.f32 0.0, %v320
    %v322 = vpop.f32.mrf.mxu0
    %323 = vmatprep.mubr.f32.mxu0 0.0
    %324 = vmatmul.mubr.f32.gmra.mxu0 %v210
    %v325 = vpop.f32.mrf.mxu0
    %v326 = vadd.f32 0.0, %v325
    %v327 = vpop.f32.mrf.mxu0
    %328 = vmatprep.mubr.f32.mxu0 0.0
    %329 = vmatmul.mubr.f32.gmra.mxu0 %v213
    %v330 = vpop.f32.mrf.mxu0
    %v331 = vadd.f32 0.0, %v330
    %v332 = vpop.f32.mrf.mxu0
    %333 = vmatprep.mubr.f32.mxu0 0.0
    %334 = vmatmul.mubr.f32.gmra.mxu0 %v216
    %v335 = vpop.f32.mrf.mxu0
    %v336 = vadd.f32 0.0, %v335
    %v337 = vpop.f32.mrf.mxu0
    %338 = vmatprep.mubr.f32.mxu0 0.0
    %339 = vmatmul.mubr.f32.gmra.mxu0 %v219
    %v340 = vpop.f32.mrf.mxu0
    %v341 = vadd.f32 0.0, %v340
    %v342 = vpop.f32.mrf.mxu0
    %343 = vmatprep.mubr.f32.mxu0 0.0
    %344 = vmatmul.mubr.f32.gmra.mxu0 %v222
    %v345 = vpop.f32.mrf.mxu0
    %v346 = vadd.f32 0.0, %v345
    %v347 = vpop.f32.mrf.mxu0
    %348 = vmatprep.mubr.f32.mxu0 0.0
    %349 = vmatmul.mubr.f32.gmra.mxu0 %v225
    %v350 = vpop.f32.mrf.mxu0
    %v351 = vadd.f32 0.0, %v350
    %v352 = vpop.f32.mrf.mxu0
    %353 = vmatprep.mubr.f32.mxu0 0.0
    %354 = vmatmul.mubr.f32.gmra.mxu0 %v228
    %v355 = vpop.f32.mrf.mxu0
    %v356 = vadd.f32 0.0, %v355
    %v357 = vpop.f32.mrf.mxu0
    %358 = vmatprep.mubr.f32.mxu0 0.0
    %359 = vmatmul.mubr.f32.gmra.mxu0 %v231
    %v360 = vpop.f32.mrf.mxu0
    %v361 = vadd.f32 0.0, %v360
    %v362 = vpop.f32.mrf.mxu0
    %363 = vmatprep.mubr.f32.mxu0 0.0
    %364 = vmatmul.mubr.f32.gmra.mxu0 %v234
    %v365 = vpop.f32.mrf.mxu0
    %v366 = vadd.f32 0.0, %v365
    %v367 = vpop.f32.mrf.mxu0
    %368 = vmatprep.mubr.f32.mxu0 0.0
    %369 = vmatmul.mubr.f32.gmra.mxu0 %v237
    %v370 = vpop.f32.mrf.mxu0
    %v371 = vadd.f32 0.0, %v370
    %v372 = vpop.f32.mrf.mxu0
    %373 = vmatprep.mubr.f32.mxu0 0.0
    %374 = vmatmul.mubr.f32.gmra.mxu0 %v240
    %v375 = vpop.f32.mrf.mxu0
    %v376 = vadd.f32 0.0, %v375
    %v377 = vpop.f32.mrf.mxu0
    %378 = vmatprep.mubr.f32.mxu0 0.0
    %379 = vmatmul.mubr.f32.gmra.mxu0 %v243
    %v380 = vpop.f32.mrf.mxu0
    %v381 = vadd.f32 0.0, %v380
    %v382 = vpop.f32.mrf.mxu0
    %383 = vmatprep.mubr.f32.mxu0 0.0
    %384 = vmatmul.mubr.f32.gmra.mxu0 %v246
    %v385 = vpop.f32.mrf.mxu0
    %v386 = vadd.f32 0.0, %v385
    %v387 = vpop.f32.mrf.mxu0
    %388 = vmatprep.mubr.f32.mxu0 0.0
    %389 = vmatmul.mubr.f32.gmra.mxu0 %v249
    %v390 = vpop.f32.mrf.mxu0
    %v391 = vadd.f32 0.0, %v390
    %v392 = vpop.f32.mrf.mxu0
    %393 = vmatprep.mubr.f32.mxu0 0.0
    %394 = vmatmul.mubr.f32.gmra.mxu0 %v252
    %v395 = vpop.f32.mrf.mxu0
    %v396 = vadd.f32 0.0, %v395
    %v397 = vpop.f32.mrf.mxu0
    %398 = vdwg.mxu0
    %v399 = vld [vmem:[%s2] sm:$0xff]
    %v400 = vld [vmem:[%s2 + $0x8] sm:$0xff]
    %v401 = vld [vmem:[%s2 + $0x10] sm:$0xff]
    %v402 = vld [vmem:[%s2 + $0x18] sm:$0xff]
    %v403 = vld [vmem:[%s2 + $0x20] sm:$0xff]
    %v404 = vld [vmem:[%s2 + $0x28] sm:$0xff]
    %v405 = vld [vmem:[%s2 + $0x30] sm:$0xff]
    %v406 = vld [vmem:[%s2 + $0x38] sm:$0xff]
    %s407 = scalar_lea.vmem %s2, 64
    %v408 = vld [vmem:[%s407] sm:$0xff]
    %v409 = vld [vmem:[%s407 + $0x8] sm:$0xff]
    %v410 = vld [vmem:[%s407 + $0x10] sm:$0xff]
    %v411 = vld [vmem:[%s407 + $0x18] sm:$0xff]
    %v412 = vld [vmem:[%s407 + $0x20] sm:$0xff]
    %v413 = vld [vmem:[%s407 + $0x28] sm:$0xff]
    %v414 = vld [vmem:[%s407 + $0x30] sm:$0xff]
    %v415 = vld [vmem:[%s407 + $0x38] sm:$0xff]
    %vm416 = vcmask 523264
    %v418 = vsel %vm416, %v326, 0
    %v421 = vsel %vm416, %v331, 0
    %v424 = vsel %vm416, %v336, 0
    %v427 = vsel %vm416, %v341, 0
    %v430 = vsel %vm416, %v346, 0
    %v433 = vsel %vm416, %v351, 0
    %v436 = vsel %vm416, %v356, 0
    %v439 = vsel %vm416, %v361, 0
    %v442 = vsel %vm416, %v366, 0
    %v445 = vsel %vm416, %v371, 0
    %v448 = vsel %vm416, %v376, 0
    %v451 = vsel %vm416, %v381, 0
    %v454 = vsel %vm416, %v386, 0
    %v457 = vsel %vm416, %v391, 0
    %459 = vmatprep.subr.mxu0 0.0
    %460 = vmatpush1.msra.mxu0 0.0
    %461 = vmatprep.subr.mxu0 0.0
    %462 = vmatpush1.msra.mxu0 0.0
    %463 = vmatprep.subr.mxu0 0.0
    %464 = vmatpush1.msra.mxu0 0.0
    %465 = vmatprep.subr.mxu0 0.0
    %466 = vmatpush1.msra.mxu0 0.0
    %467 = vmatprep.subr.mxu0 0.0
    %468 = vmatpush1.msra.mxu0 0.0
    %469 = vmatprep.subr.mxu0 0.0
    %470 = vmatpush1.msra.mxu0 0.0
    %471 = vmatprep.subr.mxu0 0.0
    %472 = vmatpush1.msra.mxu0 0.0
    %473 = vmatprep.subr.mxu0 0.0
    %474 = vmatpush1.msra.mxu0 0.0
    %475 = vmatprep.subr.mxu0 0.0
    %476 = vmatpush1.msra.mxu0 %v415
    %477 = vmatprep.subr.mxu0 0.0
    %478 = vmatpush1.msra.mxu0 %v414
    %479 = vmatprep.subr.mxu0 0.0
    %480 = vmatpush1.msra.mxu0 %v413
    %481 = vmatprep.subr.mxu0 0.0
    %482 = vmatpush1.msra.mxu0 %v412
    %483 = vmatprep.subr.mxu0 0.0
    %484 = vmatpush1.msra.mxu0 %v411
    %485 = vmatprep.subr.mxu0 0.0
    %486 = vmatpush1.msra.mxu0 %v410
    %487 = vmatprep.subr.mxu0 0.0
    %488 = vmatpush1.msra.mxu0 %v409
    %489 = vmatprep.subr.mxu0 0.0
    %490 = vmatpush1.msra.mxu0 %v408
    %491 = vmatprep.subr.mxu0 0.0
    %492 = vmatpush2.msra.mxu0 0.0
    %493 = vmatprep.subr.mxu0 0.0
    %494 = vmatpush2.msra.mxu0 0.0
    %495 = vmatprep.subr.mxu0 0.0
    %496 = vmatpush2.msra.mxu0 0.0
    %497 = vmatprep.subr.mxu0 0.0
    %498 = vmatpush2.msra.mxu0 0.0
    %499 = vmatprep.subr.mxu0 0.0
    %500 = vmatpush2.msra.mxu0 0.0
    %501 = vmatprep.subr.mxu0 0.0
    %502 = vmatpush2.msra.mxu0 0.0
    %503 = vmatprep.subr.mxu0 0.0
    %504 = vmatpush2.msra.mxu0 0.0
    %505 = vmatprep.subr.mxu0 0.0
    %506 = vmatpush2.msra.mxu0 0.0
    %507 = vmatprep.subr.mxu0 0.0
    %508 = vmatpush2.msra.mxu0 0.0
    %509 = vmatprep.subr.mxu0 0.0
    %510 = vmatpush2.msra.mxu0 0.0
    %511 = vmatprep.subr.mxu0 0.0
    %512 = vmatpush2.msra.mxu0 0.0
    %513 = vmatprep.subr.mxu0 0.0
    %514 = vmatpush2.msra.mxu0 0.0
    %515 = vmatprep.subr.mxu0 0.0
    %516 = vmatpush2.msra.mxu0 0.0
    %517 = vmatprep.subr.mxu0 0.0
    %518 = vmatpush2.msra.mxu0 0.0
    %519 = vmatprep.subr.mxu0 0.0
    %520 = vmatpush2.msra.mxu0 0.0
    %521 = vmatprep.subr.mxu0 0.0
    %522 = vmatpush2.msra.mxu0 0.0
    %523 = vmatprep.mubr.f32.mxu0 0.0
    %524 = vmatmul.mubr.f32.gmra.mxu0 %v418
    %v525 = vpop.f32.mrf.mxu0
    %v526 = vadd.f32 0.0, %v525
    %v527 = vpop.f32.mrf.mxu0
    %528 = vmatprep.mubr.f32.mxu0 0.0
    %529 = vmatmul.mubr.f32.gmra.mxu0 %v421
    %v530 = vpop.f32.mrf.mxu0
    %v531 = vadd.f32 0.0, %v530
    %v532 = vpop.f32.mrf.mxu0
    %533 = vmatprep.mubr.f32.mxu0 0.0
    %534 = vmatmul.mubr.f32.gmra.mxu0 %v424
    %v535 = vpop.f32.mrf.mxu0
    %v536 = vadd.f32 0.0, %v535
    %v537 = vpop.f32.mrf.mxu0
    %538 = vmatprep.mubr.f32.mxu0 0.0
    %539 = vmatmul.mubr.f32.gmra.mxu0 %v427
    %v540 = vpop.f32.mrf.mxu0
    %v541 = vadd.f32 0.0, %v540
    %v542 = vpop.f32.mrf.mxu0
    %543 = vmatprep.mubr.f32.mxu0 0.0
    %544 = vmatmul.mubr.f32.gmra.mxu0 %v430
    %v545 = vpop.f32.mrf.mxu0
    %v546 = vadd.f32 0.0, %v545
    %v547 = vpop.f32.mrf.mxu0
    %548 = vmatprep.mubr.f32.mxu0 0.0
    %549 = vmatmul.mubr.f32.gmra.mxu0 %v433
    %v550 = vpop.f32.mrf.mxu0
    %v551 = vadd.f32 0.0, %v550
    %v552 = vpop.f32.mrf.mxu0
    %553 = vmatprep.mubr.f32.mxu0 0.0
    %554 = vmatmul.mubr.f32.gmra.mxu0 %v436
    %v555 = vpop.f32.mrf.mxu0
    %v556 = vadd.f32 0.0, %v555
    %v557 = vpop.f32.mrf.mxu0
    %558 = vmatprep.mubr.f32.mxu0 0.0
    %559 = vmatmul.mubr.f32.gmra.mxu0 %v439
    %v560 = vpop.f32.mrf.mxu0
    %v561 = vadd.f32 0.0, %v560
    %v562 = vpop.f32.mrf.mxu0
    %563 = vmatprep.mubr.f32.mxu0 0.0
    %564 = vmatmul.mubr.f32.gmra.mxu0 %v442
    %v565 = vpop.f32.mrf.mxu0
    %v566 = vadd.f32 0.0, %v565
    %v567 = vpop.f32.mrf.mxu0
    %568 = vmatprep.mubr.f32.mxu0 0.0
    %569 = vmatmul.mubr.f32.gmra.mxu0 %v445
    %v570 = vpop.f32.mrf.mxu0
    %v571 = vadd.f32 0.0, %v570
    %v572 = vpop.f32.mrf.mxu0
    %573 = vmatprep.mubr.f32.mxu0 0.0
    %574 = vmatmul.mubr.f32.gmra.mxu0 %v448
    %v575 = vpop.f32.mrf.mxu0
    %v576 = vadd.f32 0.0, %v575
    %v577 = vpop.f32.mrf.mxu0
    %578 = vmatprep.mubr.f32.mxu0 0.0
    %579 = vmatmul.mubr.f32.gmra.mxu0 %v451
    %v580 = vpop.f32.mrf.mxu0
    %v581 = vadd.f32 0.0, %v580
    %v582 = vpop.f32.mrf.mxu0
    %583 = vmatprep.mubr.f32.mxu0 0.0
    %584 = vmatmul.mubr.f32.gmra.mxu0 %v454
    %v585 = vpop.f32.mrf.mxu0
    %v586 = vadd.f32 0.0, %v585
    %v587 = vpop.f32.mrf.mxu0
    %588 = vmatprep.mubr.f32.mxu0 0.0
    %589 = vmatmul.mubr.f32.gmra.mxu0 %v457
    %v590 = vpop.f32.mrf.mxu0
    %v591 = vadd.f32 0.0, %v590
    %v592 = vpop.f32.mrf.mxu0
    %593 = vdwg.mxu0
    %v595 = vsel %vm416, %v321, 0
    %597 = vmatprep.subr.mxu0 0.0
    %598 = vmatpush1.msra.mxu0 0.0
    %599 = vmatprep.subr.mxu0 0.0
    %600 = vmatpush1.msra.mxu0 0.0
    %601 = vmatprep.subr.mxu0 0.0
    %602 = vmatpush1.msra.mxu0 0.0
    %603 = vmatprep.subr.mxu0 0.0
    %604 = vmatpush1.msra.mxu0 0.0
    %605 = vmatprep.subr.mxu0 0.0
    %606 = vmatpush1.msra.mxu0 0.0
    %607 = vmatprep.subr.mxu0 0.0
    %608 = vmatpush1.msra.mxu0 0.0
    %609 = vmatprep.subr.mxu0 0.0
    %610 = vmatpush1.msra.mxu0 0.0
    %611 = vmatprep.subr.mxu0 0.0
    %612 = vmatpush1.msra.mxu0 0.0
    %613 = vmatprep.subr.mxu0 0.0
    %614 = vmatpush1.msra.mxu0 %v406
    %615 = vmatprep.subr.mxu0 0.0
    %616 = vmatpush1.msra.mxu0 %v405
    %617 = vmatprep.subr.mxu0 0.0
    %618 = vmatpush1.msra.mxu0 %v404
    %619 = vmatprep.subr.mxu0 0.0
    %620 = vmatpush1.msra.mxu0 %v403
    %621 = vmatprep.subr.mxu0 0.0
    %622 = vmatpush1.msra.mxu0 %v402
    %623 = vmatprep.subr.mxu0 0.0
    %624 = vmatpush1.msra.mxu0 %v401
    %625 = vmatprep.subr.mxu0 0.0
    %626 = vmatpush1.msra.mxu0 %v400
    %627 = vmatprep.subr.mxu0 0.0
    %628 = vmatpush1.msra.mxu0 %v399
    %629 = vmatprep.subr.mxu0 0.0
    %630 = vmatpush2.msra.mxu0 0.0
    %631 = vmatprep.subr.mxu0 0.0
    %632 = vmatpush2.msra.mxu0 0.0
    %633 = vmatprep.subr.mxu0 0.0
    %634 = vmatpush2.msra.mxu0 0.0
    %635 = vmatprep.subr.mxu0 0.0
    %636 = vmatpush2.msra.mxu0 0.0
    %637 = vmatprep.subr.mxu0 0.0
    %638 = vmatpush2.msra.mxu0 0.0
    %639 = vmatprep.subr.mxu0 0.0
    %640 = vmatpush2.msra.mxu0 0.0
    %641 = vmatprep.subr.mxu0 0.0
    %642 = vmatpush2.msra.mxu0 0.0
    %643 = vmatprep.subr.mxu0 0.0
    %644 = vmatpush2.msra.mxu0 0.0
    %645 = vmatprep.subr.mxu0 0.0
    %646 = vmatpush2.msra.mxu0 0.0
    %647 = vmatprep.subr.mxu0 0.0
    %648 = vmatpush2.msra.mxu0 0.0
    %649 = vmatprep.subr.mxu0 0.0
    %650 = vmatpush2.msra.mxu0 0.0
    %651 = vmatprep.subr.mxu0 0.0
    %652 = vmatpush2.msra.mxu0 0.0
    %653 = vmatprep.subr.mxu0 0.0
    %654 = vmatpush2.msra.mxu0 0.0
    %655 = vmatprep.subr.mxu0 0.0
    %656 = vmatpush2.msra.mxu0 0.0
    %657 = vmatprep.subr.mxu0 0.0
    %658 = vmatpush2.msra.mxu0 0.0
    %659 = vmatprep.subr.mxu0 0.0
    %660 = vmatpush2.msra.mxu0 0.0
    %661 = vmatprep.mubr.f32.mxu0 0.0
    %662 = vmatmul.mubr.f32.gmra.mxu0 %v595
    %v663 = vpop.f32.mrf.mxu0
    %v664 = vadd.f32 %v526, %v663
    %v665 = vpop.f32.mrf.mxu0
    %666 = vmatprep.mubr.f32.mxu0 0.0
    %667 = vmatmul.mubr.f32.gmra.mxu0 %v418
    %v668 = vpop.f32.mrf.mxu0
    %v669 = vadd.f32 %v531, %v668
    %v670 = vpop.f32.mrf.mxu0
    %671 = vmatprep.mubr.f32.mxu0 0.0
    %672 = vmatmul.mubr.f32.gmra.mxu0 %v421
    %v673 = vpop.f32.mrf.mxu0
    %v674 = vadd.f32 %v536, %v673
    %v675 = vpop.f32.mrf.mxu0
    %676 = vmatprep.mubr.f32.mxu0 0.0
    %677 = vmatmul.mubr.f32.gmra.mxu0 %v424
    %v678 = vpop.f32.mrf.mxu0
    %v679 = vadd.f32 %v541, %v678
    %v680 = vpop.f32.mrf.mxu0
    %681 = vmatprep.mubr.f32.mxu0 0.0
    %682 = vmatmul.mubr.f32.gmra.mxu0 %v427
    %v683 = vpop.f32.mrf.mxu0
    %v684 = vadd.f32 %v546, %v683
    %v685 = vpop.f32.mrf.mxu0
    %686 = vmatprep.mubr.f32.mxu0 0.0
    %687 = vmatmul.mubr.f32.gmra.mxu0 %v430
    %v688 = vpop.f32.mrf.mxu0
    %v689 = vadd.f32 %v551, %v688
    %v690 = vpop.f32.mrf.mxu0
    %691 = vmatprep.mubr.f32.mxu0 0.0
    %692 = vmatmul.mubr.f32.gmra.mxu0 %v433
    %v693 = vpop.f32.mrf.mxu0
    %v694 = vadd.f32 %v556, %v693
    %v695 = vpop.f32.mrf.mxu0
    %696 = vmatprep.mubr.f32.mxu0 0.0
    %697 = vmatmul.mubr.f32.gmra.mxu0 %v436
    %v698 = vpop.f32.mrf.mxu0
    %v699 = vadd.f32 %v561, %v698
    %v700 = vpop.f32.mrf.mxu0
    %701 = vmatprep.mubr.f32.mxu0 0.0
    %702 = vmatmul.mubr.f32.gmra.mxu0 %v439
    %v703 = vpop.f32.mrf.mxu0
    %v704 = vadd.f32 %v566, %v703
    %v705 = vpop.f32.mrf.mxu0
    %706 = vmatprep.mubr.f32.mxu0 0.0
    %707 = vmatmul.mubr.f32.gmra.mxu0 %v442
    %v708 = vpop.f32.mrf.mxu0
    %v709 = vadd.f32 %v571, %v708
    %v710 = vpop.f32.mrf.mxu0
    %711 = vmatprep.mubr.f32.mxu0 0.0
    %712 = vmatmul.mubr.f32.gmra.mxu0 %v445
    %v713 = vpop.f32.mrf.mxu0
    %v714 = vadd.f32 %v576, %v713
    %v715 = vpop.f32.mrf.mxu0
    %716 = vmatprep.mubr.f32.mxu0 0.0
    %717 = vmatmul.mubr.f32.gmra.mxu0 %v448
    %v718 = vpop.f32.mrf.mxu0
    %v719 = vadd.f32 %v581, %v718
    %v720 = vpop.f32.mrf.mxu0
    %721 = vmatprep.mubr.f32.mxu0 0.0
    %722 = vmatmul.mubr.f32.gmra.mxu0 %v451
    %v723 = vpop.f32.mrf.mxu0
    %v724 = vadd.f32 %v586, %v723
    %v725 = vpop.f32.mrf.mxu0
    %726 = vmatprep.mubr.f32.mxu0 0.0
    %727 = vmatmul.mubr.f32.gmra.mxu0 %v454
    %v728 = vpop.f32.mrf.mxu0
    %v729 = vadd.f32 %v591, %v728
    %v730 = vpop.f32.mrf.mxu0
    %731 = vdwg.mxu0
    %s732 = scalar_lea.vmem %s2, 128
    %v733 = vld [vmem:[%s732] sm:$0xff]
    %v734 = vld [vmem:[%s732 + $0x8] sm:$0xff]
    %v735 = vld [vmem:[%s732 + $0x10] sm:$0xff]
    %v736 = vld [vmem:[%s732 + $0x18] sm:$0xff]
    %v737 = vld [vmem:[%s732 + $0x20] sm:$0xff]
    %v738 = vld [vmem:[%s732 + $0x28] sm:$0xff]
    %v739 = vld [vmem:[%s732 + $0x30] sm:$0xff]
    %v740 = vld [vmem:[%s732 + $0x38] sm:$0xff]
    %v742 = vsel %vm416, %v396, 0
    %744 = vmatprep.subr.mxu0 0.0
    %745 = vmatpush1.msra.mxu0 0.0
    %746 = vmatprep.subr.mxu0 0.0
    %747 = vmatpush1.msra.mxu0 0.0
    %748 = vmatprep.subr.mxu0 0.0
    %749 = vmatpush1.msra.mxu0 0.0
    %750 = vmatprep.subr.mxu0 0.0
    %751 = vmatpush1.msra.mxu0 0.0
    %752 = vmatprep.subr.mxu0 0.0
    %753 = vmatpush1.msra.mxu0 0.0
    %754 = vmatprep.subr.mxu0 0.0
    %755 = vmatpush1.msra.mxu0 0.0
    %756 = vmatprep.subr.mxu0 0.0
    %757 = vmatpush1.msra.mxu0 0.0
    %758 = vmatprep.subr.mxu0 0.0
    %759 = vmatpush1.msra.mxu0 0.0
    %760 = vmatprep.subr.mxu0 0.0
    %761 = vmatpush1.msra.mxu0 %v740
    %762 = vmatprep.subr.mxu0 0.0
    %763 = vmatpush1.msra.mxu0 %v739
    %764 = vmatprep.subr.mxu0 0.0
    %765 = vmatpush1.msra.mxu0 %v738
    %766 = vmatprep.subr.mxu0 0.0
    %767 = vmatpush1.msra.mxu0 %v737
    %768 = vmatprep.subr.mxu0 0.0
    %769 = vmatpush1.msra.mxu0 %v736
    %770 = vmatprep.subr.mxu0 0.0
    %771 = vmatpush1.msra.mxu0 %v735
    %772 = vmatprep.subr.mxu0 0.0
    %773 = vmatpush1.msra.mxu0 %v734
    %774 = vmatprep.subr.mxu0 0.0
    %775 = vmatpush1.msra.mxu0 %v733
    %776 = vmatprep.subr.mxu0 0.0
    %777 = vmatpush2.msra.mxu0 0.0
    %778 = vmatprep.subr.mxu0 0.0
    %779 = vmatpush2.msra.mxu0 0.0
    %780 = vmatprep.subr.mxu0 0.0
    %781 = vmatpush2.msra.mxu0 0.0
    %782 = vmatprep.subr.mxu0 0.0
    %783 = vmatpush2.msra.mxu0 0.0
    %784 = vmatprep.subr.mxu0 0.0
    %785 = vmatpush2.msra.mxu0 0.0
    %786 = vmatprep.subr.mxu0 0.0
    %787 = vmatpush2.msra.mxu0 0.0
    %788 = vmatprep.subr.mxu0 0.0
    %789 = vmatpush2.msra.mxu0 0.0
    %790 = vmatprep.subr.mxu0 0.0
    %791 = vmatpush2.msra.mxu0 0.0
    %792 = vmatprep.subr.mxu0 0.0
    %793 = vmatpush2.msra.mxu0 0.0
    %794 = vmatprep.subr.mxu0 0.0
    %795 = vmatpush2.msra.mxu0 0.0
    %796 = vmatprep.subr.mxu0 0.0
    %797 = vmatpush2.msra.mxu0 0.0
    %798 = vmatprep.subr.mxu0 0.0
    %799 = vmatpush2.msra.mxu0 0.0
    %800 = vmatprep.subr.mxu0 0.0
    %801 = vmatpush2.msra.mxu0 0.0
    %802 = vmatprep.subr.mxu0 0.0
    %803 = vmatpush2.msra.mxu0 0.0
    %804 = vmatprep.subr.mxu0 0.0
    %805 = vmatpush2.msra.mxu0 0.0
    %806 = vmatprep.subr.mxu0 0.0
    %807 = vmatpush2.msra.mxu0 0.0
    %808 = vmatprep.mubr.f32.mxu0 0.0
    %809 = vmatmul.mubr.f32.gmra.mxu0 %v421
    %v810 = vpop.f32.mrf.mxu0
    %v811 = vadd.f32 0.0, %v810
    %v812 = vpop.f32.mrf.mxu0
    %813 = vmatprep.mubr.f32.mxu0 0.0
    %814 = vmatmul.mubr.f32.gmra.mxu0 %v424
    %v815 = vpop.f32.mrf.mxu0
    %v816 = vadd.f32 0.0, %v815
    %v817 = vpop.f32.mrf.mxu0
    %818 = vmatprep.mubr.f32.mxu0 0.0
    %819 = vmatmul.mubr.f32.gmra.mxu0 %v427
    %v820 = vpop.f32.mrf.mxu0
    %v821 = vadd.f32 0.0, %v820
    %v822 = vpop.f32.mrf.mxu0
    %823 = vmatprep.mubr.f32.mxu0 0.0
    %824 = vmatmul.mubr.f32.gmra.mxu0 %v430
    %v825 = vpop.f32.mrf.mxu0
    %v826 = vadd.f32 0.0, %v825
    %v827 = vpop.f32.mrf.mxu0
    %828 = vmatprep.mubr.f32.mxu0 0.0
    %829 = vmatmul.mubr.f32.gmra.mxu0 %v433
    %v830 = vpop.f32.mrf.mxu0
    %v831 = vadd.f32 0.0, %v830
    %v832 = vpop.f32.mrf.mxu0
    %833 = vmatprep.mubr.f32.mxu0 0.0
    %834 = vmatmul.mubr.f32.gmra.mxu0 %v436
    %v835 = vpop.f32.mrf.mxu0
    %v836 = vadd.f32 0.0, %v835
    %v837 = vpop.f32.mrf.mxu0
    %838 = vmatprep.mubr.f32.mxu0 0.0
    %839 = vmatmul.mubr.f32.gmra.mxu0 %v439
    %v840 = vpop.f32.mrf.mxu0
    %v841 = vadd.f32 0.0, %v840
    %v842 = vpop.f32.mrf.mxu0
    %843 = vmatprep.mubr.f32.mxu0 0.0
    %844 = vmatmul.mubr.f32.gmra.mxu0 %v442
    %v845 = vpop.f32.mrf.mxu0
    %v846 = vadd.f32 0.0, %v845
    %v847 = vpop.f32.mrf.mxu0
    %848 = vmatprep.mubr.f32.mxu0 0.0
    %849 = vmatmul.mubr.f32.gmra.mxu0 %v445
    %v850 = vpop.f32.mrf.mxu0
    %v851 = vadd.f32 0.0, %v850
    %v852 = vpop.f32.mrf.mxu0
    %853 = vmatprep.mubr.f32.mxu0 0.0
    %854 = vmatmul.mubr.f32.gmra.mxu0 %v448
    %v855 = vpop.f32.mrf.mxu0
    %v856 = vadd.f32 0.0, %v855
    %v857 = vpop.f32.mrf.mxu0
    %858 = vmatprep.mubr.f32.mxu0 0.0
    %859 = vmatmul.mubr.f32.gmra.mxu0 %v451
    %v860 = vpop.f32.mrf.mxu0
    %v861 = vadd.f32 0.0, %v860
    %v862 = vpop.f32.mrf.mxu0
    %863 = vmatprep.mubr.f32.mxu0 0.0
    %864 = vmatmul.mubr.f32.gmra.mxu0 %v454
    %v865 = vpop.f32.mrf.mxu0
    %v866 = vadd.f32 0.0, %v865
    %v867 = vpop.f32.mrf.mxu0
    %868 = vmatprep.mubr.f32.mxu0 0.0
    %869 = vmatmul.mubr.f32.gmra.mxu0 %v457
    %v870 = vpop.f32.mrf.mxu0
    %v871 = vadd.f32 0.0, %v870
    %v872 = vpop.f32.mrf.mxu0
    %873 = vmatprep.mubr.f32.mxu0 0.0
    %874 = vmatmul.mubr.f32.gmra.mxu0 %v742
    %v875 = vpop.f32.mrf.mxu0
    %v876 = vadd.f32 0.0, %v875
    %v877 = vpop.f32.mrf.mxu0
    %878 = vdwg.mxu0
    %v879 = vadd.f32 %v664, %v811
    %v880 = vadd.f32 %v669, %v816
    %v881 = vadd.f32 %v674, %v821
    %v882 = vadd.f32 %v679, %v826
    %v883 = vadd.f32 %v684, %v831
    %v884 = vadd.f32 %v689, %v836
    %v885 = vadd.f32 %v694, %v841
    %v886 = vadd.f32 %v699, %v846
    %v887 = vadd.f32 %v704, %v851
    %v888 = vadd.f32 %v709, %v856
    %v889 = vadd.f32 %v714, %v861
    %v890 = vadd.f32 %v719, %v866
    %v891 = vadd.f32 %v724, %v871
    %v892 = vadd.f32 %v729, %v876
    %v893 = vld [vmem:[%s3] sm:$0x1]
    %v895 = vlaneseq
    %v896 = vshrl.u32 %v895, 7
    %v897 = vsub.s32 0, %v896
    %v898 = vrot.slane %v893, %v897
    %v900 = vadd.f32 %v879, %v898
    %v901 = vadd.f32 %v880, %v898
    %v902 = vadd.f32 %v881, %v898
    %v903 = vadd.f32 %v882, %v898
    %v904 = vadd.f32 %v883, %v898
    %v905 = vadd.f32 %v884, %v898
    %v906 = vadd.f32 %v885, %v898
    %v907 = vadd.f32 %v886, %v898
    %v908 = vadd.f32 %v887, %v898
    %v909 = vadd.f32 %v888, %v898
    %v910 = vadd.f32 %v889, %v898
    %v911 = vadd.f32 %v890, %v898
    %v912 = vadd.f32 %v891, %v898
    %v913 = vadd.f32 %v892, %v898
    %v914 = vmax.f32 %v900, 0.0
    %v915 = vmax.f32 %v901, 0.0
    %v916 = vmax.f32 %v902, 0.0
    %v917 = vmax.f32 %v903, 0.0
    %v918 = vmax.f32 %v904, 0.0
    %v919 = vmax.f32 %v905, 0.0
    %v920 = vmax.f32 %v906, 0.0
    %v921 = vmax.f32 %v907, 0.0
    %v922 = vmax.f32 %v908, 0.0
    %v923 = vmax.f32 %v909, 0.0
    %v924 = vmax.f32 %v910, 0.0
    %v925 = vmax.f32 %v911, 0.0
    %v926 = vmax.f32 %v912, 0.0
    %v927 = vmax.f32 %v913, 0.0
    %v928 = vld [vmem:[#allocation5] sm:$0xff]
    %v929 = vld [vmem:[#allocation5 + $0x8] sm:$0xff]
    %v930 = vld [vmem:[#allocation5 + $0x10] sm:$0xff]
    %v931 = vld [vmem:[#allocation5 + $0x18] sm:$0xff]
    %v932 = vld [vmem:[#allocation5 + $0x20] sm:$0xff]
    %v933 = vld [vmem:[#allocation5 + $0x28] sm:$0xff]
    %v934 = vld [vmem:[#allocation5 + $0x30] sm:$0xff]
    %v935 = vld [vmem:[#allocation5 + $0x38] sm:$0xff]
    %v936 = vld [vmem:[#allocation5 + $0x40] sm:$0xff]
    %v937 = vld [vmem:[#allocation5 + $0x48] sm:$0xff]
    %v938 = vld [vmem:[#allocation5 + $0x50] sm:$0xff]
    %v939 = vld [vmem:[#allocation5 + $0x58] sm:$0xff]
    %v940 = vld [vmem:[#allocation5 + $0x60] sm:$0xff]
    %v941 = vld [vmem:[#allocation5 + $0x68] sm:$0xff]
    %v942 = vld [vmem:[#allocation5 + $0x70] sm:$0xff]
    %v943 = vld [vmem:[#allocation5 + $0x78] sm:$0xff]
    %v944 = vld [vmem:[#allocation5 + $0x80] sm:$0xff]
    %v945 = vld [vmem:[#allocation5 + $0x88] sm:$0xff]
    %v946 = vld [vmem:[#allocation5 + $0x90] sm:$0xff]
    %v947 = vld [vmem:[#allocation5 + $0x98] sm:$0xff]
    %v948 = vld [vmem:[#allocation5 + $0xa0] sm:$0xff]
    %v949 = vld [vmem:[#allocation5 + $0xa8] sm:$0xff]
    %v950 = vld [vmem:[#allocation5 + $0xb0] sm:$0xff]
    %v951 = vld [vmem:[#allocation5 + $0xb8] sm:$0xff]
    %v952 = vld [vmem:[#allocation5 + $0xc0] sm:$0xff]
    %v953 = vld [vmem:[#allocation5 + $0xc8] sm:$0xff]
    %v954 = vld [vmem:[#allocation5 + $0xd0] sm:$0xff]
    %v955 = vld [vmem:[#allocation5 + $0xd8] sm:$0xff]
    %v956 = vld [vmem:[#allocation5 + $0xe0] sm:$0xff]
    %v957 = vld [vmem:[#allocation5 + $0xe8] sm:$0xff]
    %v958 = vld [vmem:[#allocation5 + $0xf0] sm:$0xff]
    %v959 = vld [vmem:[#allocation5 + $0xf8] sm:$0xff]
    %v960 = vld [vmem:[#allocation5 + $0x100] sm:$0xff]
    %v961 = vld [vmem:[#allocation5 + $0x108] sm:$0xff]
    %v962 = vld [vmem:[#allocation5 + $0x110] sm:$0xff]
    %v963 = vld [vmem:[#allocation5 + $0x118] sm:$0xff]
    %v964 = vld [vmem:[#allocation5 + $0x120] sm:$0xff]
    %v965 = vld [vmem:[#allocation5 + $0x128] sm:$0xff]
    %v966 = vld [vmem:[#allocation5 + $0x130] sm:$0xff]
    %v967 = vld [vmem:[#allocation5 + $0x138] sm:$0xff]
    %v968 = vld [vmem:[#allocation5 + $0x140] sm:$0xff]
    %v969 = vld [vmem:[#allocation5 + $0x148] sm:$0xff]
    %v970 = vld [vmem:[#allocation5 + $0x150] sm:$0xff]
    %v971 = vld [vmem:[#allocation5 + $0x158] sm:$0xff]
    %v972 = vld [vmem:[#allocation5 + $0x160] sm:$0xff]
    %v973 = vld [vmem:[#allocation5 + $0x168] sm:$0xff]
    %v974 = vld [vmem:[#allocation5 + $0x170] sm:$0xff]
    %v975 = vld [vmem:[#allocation5 + $0x178] sm:$0xff]
    %v976 = vld [vmem:[#allocation5 + $0x180] sm:$0xff]
    %v977 = vld [vmem:[#allocation5 + $0x188] sm:$0xff]
    %v978 = vld [vmem:[#allocation5 + $0x190] sm:$0xff]
    %v979 = vld [vmem:[#allocation5 + $0x198] sm:$0xff]
    %v980 = vld [vmem:[#allocation5 + $0x1a0] sm:$0xff]
    %v981 = vld [vmem:[#allocation5 + $0x1a8] sm:$0xff]
    %v982 = vld [vmem:[#allocation5 + $0x1b0] sm:$0xff]
    %v983 = vld [vmem:[#allocation5 + $0x1b8] sm:$0xff]
    %v984 = vld [vmem:[#allocation5 + $0x1c0] sm:$0xff]
    %v985 = vld [vmem:[#allocation5 + $0x1c8] sm:$0xff]
    %v986 = vld [vmem:[#allocation5 + $0x1d0] sm:$0xff]
    %v987 = vld [vmem:[#allocation5 + $0x1d8] sm:$0xff]
    %v988 = vld [vmem:[#allocation5 + $0x1e0] sm:$0xff]
    %v989 = vld [vmem:[#allocation5 + $0x1e8] sm:$0xff]
    %v990 = vld [vmem:[#allocation5 + $0x1f0] sm:$0xff]
    %v991 = vld [vmem:[#allocation5 + $0x1f8] sm:$0xff]
    %v992 = vld [vmem:[%s5] sm:$0xf]
    %v994 = vlaneseq
    %v995 = vshrl.u32 %v994, 7
    %v996 = vsub.s32 0, %v995
    %v997 = vrot.slane %v992, %v996
    %v998 = vlaneseq
    %v999 = vshrl.u32 %v998, 7
    %v1000 = vsub.s32 1, %v999
    %v1001 = vrot.slane %v992, %v1000
    %v1002 = vlaneseq
    %v1003 = vshrl.u32 %v1002, 7
    %v1004 = vsub.s32 2, %v1003
    %v1005 = vrot.slane %v992, %v1004
    %v1006 = vlaneseq
    %v1007 = vshrl.u32 %v1006, 7
    %v1008 = vsub.s32 3, %v1007
    %v1009 = vrot.slane %v992, %v1008
    %1014 = vmatprep.subr.mxu0 %v989
    %1015 = vmatpush1.msra.mxu0 %v988
    %1016 = vmatprep.subr.mxu0 %v985
    %1017 = vmatpush1.msra.mxu0 %v984
    %1018 = vmatprep.subr.mxu0 %v981
    %1019 = vmatpush1.msra.mxu0 %v980
    %1020 = vmatprep.subr.mxu0 %v977
    %1021 = vmatpush1.msra.mxu0 %v976
    %1022 = vmatprep.subr.mxu0 %v973
    %1023 = vmatpush1.msra.mxu0 %v972
    %1024 = vmatprep.subr.mxu0 %v969
    %1025 = vmatpush1.msra.mxu0 %v968
    %1026 = vmatprep.subr.mxu0 %v965
    %1027 = vmatpush1.msra.mxu0 %v964
    %1028 = vmatprep.subr.mxu0 %v961
    %1029 = vmatpush1.msra.mxu0 %v960
    %1030 = vmatprep.subr.mxu0 %v957
    %1031 = vmatpush1.msra.mxu0 %v956
    %1032 = vmatprep.subr.mxu0 %v953
    %1033 = vmatpush1.msra.mxu0 %v952
    %1034 = vmatprep.subr.mxu0 %v949
    %1035 = vmatpush1.msra.mxu0 %v948
    %1036 = vmatprep.subr.mxu0 %v945
    %1037 = vmatpush1.msra.mxu0 %v944
    %1038 = vmatprep.subr.mxu0 %v941
    %1039 = vmatpush1.msra.mxu0 %v940
    %1040 = vmatprep.subr.mxu0 %v937
    %1041 = vmatpush1.msra.mxu0 %v936
    %1042 = vmatprep.subr.mxu0 %v933
    %1043 = vmatpush1.msra.mxu0 %v932
    %1044 = vmatprep.subr.mxu0 %v929
    %1045 = vmatpush1.msra.mxu0 %v928
    %1046 = vmatprep.subr.mxu0 0.0
    %1047 = vmatpush2.msra.mxu0 0.0
    %1048 = vmatprep.subr.mxu0 0.0
    %1049 = vmatpush2.msra.mxu0 0.0
    %1050 = vmatprep.subr.mxu0 0.0
    %1051 = vmatpush2.msra.mxu0 0.0
    %1052 = vmatprep.subr.mxu0 0.0
    %1053 = vmatpush2.msra.mxu0 0.0
    %1054 = vmatprep.subr.mxu0 0.0
    %1055 = vmatpush2.msra.mxu0 0.0
    %1056 = vmatprep.subr.mxu0 0.0
    %1057 = vmatpush2.msra.mxu0 0.0
    %1058 = vmatprep.subr.mxu0 0.0
    %1059 = vmatpush2.msra.mxu0 0.0
    %1060 = vmatprep.subr.mxu0 0.0
    %1061 = vmatpush2.msra.mxu0 0.0
    %1062 = vmatprep.subr.mxu0 0.0
    %1063 = vmatpush2.msra.mxu0 0.0
    %1064 = vmatprep.subr.mxu0 0.0
    %1065 = vmatpush2.msra.mxu0 0.0
    %1066 = vmatprep.subr.mxu0 0.0
    %1067 = vmatpush2.msra.mxu0 0.0
    %1068 = vmatprep.subr.mxu0 0.0
    %1069 = vmatpush2.msra.mxu0 0.0
    %1070 = vmatprep.subr.mxu0 0.0
    %1071 = vmatpush2.msra.mxu0 0.0
    %1072 = vmatprep.subr.mxu0 0.0
    %1073 = vmatpush2.msra.mxu0 0.0
    %1074 = vmatprep.subr.mxu0 0.0
    %1075 = vmatpush2.msra.mxu0 0.0
    %1076 = vmatprep.subr.mxu0 0.0
    %1077 = vmatpush2.msra.mxu0 0.0
    %1078 = vmatprep.mubr.f32.mxu0 0.0
    %1079 = vmatmul.mubr.f32.gmra.mxu0 %v914
    %v1080 = vpop.f32.mrf.mxu0
    %v1081 = vadd.f32 %v997, %v1080
    %v1082 = vpop.f32.mrf.mxu0
    %v1083 = vadd.f32 %v1001, %v1082
    %1084 = vmatprep.mubr.f32.mxu0 0.0
    %1085 = vmatmul.mubr.f32.gmra.mxu0 %v915
    %v1086 = vpop.f32.mrf.mxu0
    %v1087 = vadd.f32 %v997, %v1086
    %v1088 = vpop.f32.mrf.mxu0
    %v1089 = vadd.f32 %v1001, %v1088
    %1090 = vmatprep.mubr.f32.mxu0 0.0
    %1091 = vmatmul.mubr.f32.gmra.mxu0 %v916
    %v1092 = vpop.f32.mrf.mxu0
    %v1093 = vadd.f32 %v997, %v1092
    %v1094 = vpop.f32.mrf.mxu0
    %v1095 = vadd.f32 %v1001, %v1094
    %1096 = vmatprep.mubr.f32.mxu0 0.0
    %1097 = vmatmul.mubr.f32.gmra.mxu0 %v917
    %v1098 = vpop.f32.mrf.mxu0
    %v1099 = vadd.f32 %v997, %v1098
    %v1100 = vpop.f32.mrf.mxu0
    %v1101 = vadd.f32 %v1001, %v1100
    %1102 = vmatprep.mubr.f32.mxu0 0.0
    %1103 = vmatmul.mubr.f32.gmra.mxu0 %v918
    %v1104 = vpop.f32.mrf.mxu0
    %v1105 = vadd.f32 %v997, %v1104
    %v1106 = vpop.f32.mrf.mxu0
    %v1107 = vadd.f32 %v1001, %v1106
    %1108 = vmatprep.mubr.f32.mxu0 0.0
    %1109 = vmatmul.mubr.f32.gmra.mxu0 %v919
    %v1110 = vpop.f32.mrf.mxu0
    %v1111 = vadd.f32 %v997, %v1110
    %v1112 = vpop.f32.mrf.mxu0
    %v1113 = vadd.f32 %v1001, %v1112
    %1114 = vmatprep.mubr.f32.mxu0 0.0
    %1115 = vmatmul.mubr.f32.gmra.mxu0 %v920
    %v1116 = vpop.f32.mrf.mxu0
    %v1117 = vadd.f32 %v997, %v1116
    %v1118 = vpop.f32.mrf.mxu0
    %v1119 = vadd.f32 %v1001, %v1118
    %1120 = vmatprep.mubr.f32.mxu0 0.0
    %1121 = vmatmul.mubr.f32.gmra.mxu0 %v921
    %v1122 = vpop.f32.mrf.mxu0
    %v1123 = vadd.f32 %v997, %v1122
    %v1124 = vpop.f32.mrf.mxu0
    %v1125 = vadd.f32 %v1001, %v1124
    %1126 = vmatprep.mubr.f32.mxu0 0.0
    %1127 = vmatmul.mubr.f32.gmra.mxu0 %v922
    %v1128 = vpop.f32.mrf.mxu0
    %v1129 = vadd.f32 %v997, %v1128
    %v1130 = vpop.f32.mrf.mxu0
    %v1131 = vadd.f32 %v1001, %v1130
    %1132 = vmatprep.mubr.f32.mxu0 0.0
    %1133 = vmatmul.mubr.f32.gmra.mxu0 %v923
    %v1134 = vpop.f32.mrf.mxu0
    %v1135 = vadd.f32 %v997, %v1134
    %v1136 = vpop.f32.mrf.mxu0
    %v1137 = vadd.f32 %v1001, %v1136
    %1138 = vmatprep.mubr.f32.mxu0 0.0
    %1139 = vmatmul.mubr.f32.gmra.mxu0 %v924
    %v1140 = vpop.f32.mrf.mxu0
    %v1141 = vadd.f32 %v997, %v1140
    %v1142 = vpop.f32.mrf.mxu0
    %v1143 = vadd.f32 %v1001, %v1142
    %1144 = vmatprep.mubr.f32.mxu0 0.0
    %1145 = vmatmul.mubr.f32.gmra.mxu0 %v925
    %v1146 = vpop.f32.mrf.mxu0
    %v1147 = vadd.f32 %v997, %v1146
    %v1148 = vpop.f32.mrf.mxu0
    %v1149 = vadd.f32 %v1001, %v1148
    %1150 = vmatprep.mubr.f32.mxu0 0.0
    %1151 = vmatmul.mubr.f32.gmra.mxu0 %v926
    %v1152 = vpop.f32.mrf.mxu0
    %v1153 = vadd.f32 %v997, %v1152
    %v1154 = vpop.f32.mrf.mxu0
    %v1155 = vadd.f32 %v1001, %v1154
    %1156 = vmatprep.mubr.f32.mxu0 0.0
    %1157 = vmatmul.mubr.f32.gmra.mxu0 %v927
    %v1158 = vpop.f32.mrf.mxu0
    %v1159 = vadd.f32 %v997, %v1158
    %v1160 = vpop.f32.mrf.mxu0
    %v1161 = vadd.f32 %v1001, %v1160
    %1162 = vdwg.mxu0
    %1163 = vmatprep.subr.mxu0 %v991
    %1164 = vmatpush1.msra.mxu0 %v990
    %1165 = vmatprep.subr.mxu0 %v987
    %1166 = vmatpush1.msra.mxu0 %v986
    %1167 = vmatprep.subr.mxu0 %v983
    %1168 = vmatpush1.msra.mxu0 %v982
    %1169 = vmatprep.subr.mxu0 %v979
    %1170 = vmatpush1.msra.mxu0 %v978
    %1171 = vmatprep.subr.mxu0 %v975
    %1172 = vmatpush1.msra.mxu0 %v974
    %1173 = vmatprep.subr.mxu0 %v971
    %1174 = vmatpush1.msra.mxu0 %v970
    %1175 = vmatprep.subr.mxu0 %v967
    %1176 = vmatpush1.msra.mxu0 %v966
    %1177 = vmatprep.subr.mxu0 %v963
    %1178 = vmatpush1.msra.mxu0 %v962
    %1179 = vmatprep.subr.mxu0 %v959
    %1180 = vmatpush1.msra.mxu0 %v958
    %1181 = vmatprep.subr.mxu0 %v955
    %1182 = vmatpush1.msra.mxu0 %v954
    %1183 = vmatprep.subr.mxu0 %v951
    %1184 = vmatpush1.msra.mxu0 %v950
    %1185 = vmatprep.subr.mxu0 %v947
    %1186 = vmatpush1.msra.mxu0 %v946
    %1187 = vmatprep.subr.mxu0 %v943
    %1188 = vmatpush1.msra.mxu0 %v942
    %1189 = vmatprep.subr.mxu0 %v939
    %1190 = vmatpush1.msra.mxu0 %v938
    %1191 = vmatprep.subr.mxu0 %v935
    %1192 = vmatpush1.msra.mxu0 %v934
    %1193 = vmatprep.subr.mxu0 %v931
    %1194 = vmatpush1.msra.mxu0 %v930
    %1195 = vmatprep.subr.mxu0 0.0
    %1196 = vmatpush2.msra.mxu0 0.0
    %1197 = vmatprep.subr.mxu0 0.0
    %1198 = vmatpush2.msra.mxu0 0.0
    %1199 = vmatprep.subr.mxu0 0.0
    %1200 = vmatpush2.msra.mxu0 0.0
    %1201 = vmatprep.subr.mxu0 0.0
    %1202 = vmatpush2.msra.mxu0 0.0
    %1203 = vmatprep.subr.mxu0 0.0
    %1204 = vmatpush2.msra.mxu0 0.0
    %1205 = vmatprep.subr.mxu0 0.0
    %1206 = vmatpush2.msra.mxu0 0.0
    %1207 = vmatprep.subr.mxu0 0.0
    %1208 = vmatpush2.msra.mxu0 0.0
    %1209 = vmatprep.subr.mxu0 0.0
    %1210 = vmatpush2.msra.mxu0 0.0
    %1211 = vmatprep.subr.mxu0 0.0
    %1212 = vmatpush2.msra.mxu0 0.0
    %1213 = vmatprep.subr.mxu0 0.0
    %1214 = vmatpush2.msra.mxu0 0.0
    %1215 = vmatprep.subr.mxu0 0.0
    %1216 = vmatpush2.msra.mxu0 0.0
    %1217 = vmatprep.subr.mxu0 0.0
    %1218 = vmatpush2.msra.mxu0 0.0
    %1219 = vmatprep.subr.mxu0 0.0
    %1220 = vmatpush2.msra.mxu0 0.0
    %1221 = vmatprep.subr.mxu0 0.0
    %1222 = vmatpush2.msra.mxu0 0.0
    %1223 = vmatprep.subr.mxu0 0.0
    %1224 = vmatpush2.msra.mxu0 0.0
    %1225 = vmatprep.subr.mxu0 0.0
    %1226 = vmatpush2.msra.mxu0 0.0
    %1227 = vmatprep.mubr.f32.mxu0 0.0
    %1228 = vmatmul.mubr.f32.gmra.mxu0 %v914
    %v1229 = vpop.f32.mrf.mxu0
    %v1230 = vadd.f32 %v1005, %v1229
    %v1231 = vpop.f32.mrf.mxu0
    %v1232 = vadd.f32 %v1009, %v1231
    %1233 = vmatprep.mubr.f32.mxu0 0.0
    %1234 = vmatmul.mubr.f32.gmra.mxu0 %v915
    %v1235 = vpop.f32.mrf.mxu0
    %v1236 = vadd.f32 %v1005, %v1235
    %v1237 = vpop.f32.mrf.mxu0
    %v1238 = vadd.f32 %v1009, %v1237
    %1239 = vmatprep.mubr.f32.mxu0 0.0
    %1240 = vmatmul.mubr.f32.gmra.mxu0 %v916
    %v1241 = vpop.f32.mrf.mxu0
    %v1242 = vadd.f32 %v1005, %v1241
    %v1243 = vpop.f32.mrf.mxu0
    %v1244 = vadd.f32 %v1009, %v1243
    %1245 = vmatprep.mubr.f32.mxu0 0.0
    %1246 = vmatmul.mubr.f32.gmra.mxu0 %v917
    %v1247 = vpop.f32.mrf.mxu0
    %v1248 = vadd.f32 %v1005, %v1247
    %v1249 = vpop.f32.mrf.mxu0
    %v1250 = vadd.f32 %v1009, %v1249
    %1251 = vmatprep.mubr.f32.mxu0 0.0
    %1252 = vmatmul.mubr.f32.gmra.mxu0 %v918
    %v1253 = vpop.f32.mrf.mxu0
    %v1254 = vadd.f32 %v1005, %v1253
    %v1255 = vpop.f32.mrf.mxu0
    %v1256 = vadd.f32 %v1009, %v1255
    %1257 = vmatprep.mubr.f32.mxu0 0.0
    %1258 = vmatmul.mubr.f32.gmra.mxu0 %v919
    %v1259 = vpop.f32.mrf.mxu0
    %v1260 = vadd.f32 %v1005, %v1259
    %v1261 = vpop.f32.mrf.mxu0
    %v1262 = vadd.f32 %v1009, %v1261
    %1263 = vmatprep.mubr.f32.mxu0 0.0
    %1264 = vmatmul.mubr.f32.gmra.mxu0 %v920
    %v1265 = vpop.f32.mrf.mxu0
    %v1266 = vadd.f32 %v1005, %v1265
    %v1267 = vpop.f32.mrf.mxu0
    %v1268 = vadd.f32 %v1009, %v1267
    %1269 = vmatprep.mubr.f32.mxu0 0.0
    %1270 = vmatmul.mubr.f32.gmra.mxu0 %v921
    %v1271 = vpop.f32.mrf.mxu0
    %v1272 = vadd.f32 %v1005, %v1271
    %v1273 = vpop.f32.mrf.mxu0
    %v1274 = vadd.f32 %v1009, %v1273
    %1275 = vmatprep.mubr.f32.mxu0 0.0
    %1276 = vmatmul.mubr.f32.gmra.mxu0 %v922
    %v1277 = vpop.f32.mrf.mxu0
    %v1278 = vadd.f32 %v1005, %v1277
    %v1279 = vpop.f32.mrf.mxu0
    %v1280 = vadd.f32 %v1009, %v1279
    %1281 = vmatprep.mubr.f32.mxu0 0.0
    %1282 = vmatmul.mubr.f32.gmra.mxu0 %v923
    %v1283 = vpop.f32.mrf.mxu0
    %v1284 = vadd.f32 %v1005, %v1283
    %v1285 = vpop.f32.mrf.mxu0
    %v1286 = vadd.f32 %v1009, %v1285
    %1287 = vmatprep.mubr.f32.mxu0 0.0
    %1288 = vmatmul.mubr.f32.gmra.mxu0 %v924
    %v1289 = vpop.f32.mrf.mxu0
    %v1290 = vadd.f32 %v1005, %v1289
    %v1291 = vpop.f32.mrf.mxu0
    %v1292 = vadd.f32 %v1009, %v1291
    %1293 = vmatprep.mubr.f32.mxu0 0.0
    %1294 = vmatmul.mubr.f32.gmra.mxu0 %v925
    %v1295 = vpop.f32.mrf.mxu0
    %v1296 = vadd.f32 %v1005, %v1295
    %v1297 = vpop.f32.mrf.mxu0
    %v1298 = vadd.f32 %v1009, %v1297
    %1299 = vmatprep.mubr.f32.mxu0 0.0
    %1300 = vmatmul.mubr.f32.gmra.mxu0 %v926
    %v1301 = vpop.f32.mrf.mxu0
    %v1302 = vadd.f32 %v1005, %v1301
    %v1303 = vpop.f32.mrf.mxu0
    %v1304 = vadd.f32 %v1009, %v1303
    %1305 = vmatprep.mubr.f32.mxu0 0.0
    %1306 = vmatmul.mubr.f32.gmra.mxu0 %v927
    %v1307 = vpop.f32.mrf.mxu0
    %v1308 = vadd.f32 %v1005, %v1307
    %v1309 = vpop.f32.mrf.mxu0
    %v1310 = vadd.f32 %v1009, %v1309
    %1311 = vdwg.mxu0
    %1312 = vst [vmem:[#allocation2] sm:$0xff] %v1081
    %1313 = vst [vmem:[#allocation2 + $0x8] sm:$0xff] %v1083
    %1314 = vst [vmem:[#allocation2 + $0x10] sm:$0xff] %v1230
    %1315 = vst [vmem:[#allocation2 + $0x18] sm:$0xff] %v1232
    %1316 = vst [vmem:[#allocation2 + $0x20] sm:$0xff] %v1087
    %1317 = vst [vmem:[#allocation2 + $0x28] sm:$0xff] %v1089
    %1318 = vst [vmem:[#allocation2 + $0x30] sm:$0xff] %v1236
    %1319 = vst [vmem:[#allocation2 + $0x38] sm:$0xff] %v1238
    %1320 = vst [vmem:[#allocation2 + $0x40] sm:$0xff] %v1093
    %1321 = vst [vmem:[#allocation2 + $0x48] sm:$0xff] %v1095
    %1322 = vst [vmem:[#allocation2 + $0x50] sm:$0xff] %v1242
    %1323 = vst [vmem:[#allocation2 + $0x58] sm:$0xff] %v1244
    %1324 = vst [vmem:[#allocation2 + $0x60] sm:$0xff] %v1099
    %1325 = vst [vmem:[#allocation2 + $0x68] sm:$0xff] %v1101
    %1326 = vst [vmem:[#allocation2 + $0x70] sm:$0xff] %v1248
    %1327 = vst [vmem:[#allocation2 + $0x78] sm:$0xff] %v1250
    %1328 = vst [vmem:[#allocation2 + $0x80] sm:$0xff] %v1105
    %1329 = vst [vmem:[#allocation2 + $0x88] sm:$0xff] %v1107
    %1330 = vst [vmem:[#allocation2 + $0x90] sm:$0xff] %v1254
    %1331 = vst [vmem:[#allocation2 + $0x98] sm:$0xff] %v1256
    %1332 = vst [vmem:[#allocation2 + $0xa0] sm:$0xff] %v1111
    %1333 = vst [vmem:[#allocation2 + $0xa8] sm:$0xff] %v1113
    %1334 = vst [vmem:[#allocation2 + $0xb0] sm:$0xff] %v1260
    %1335 = vst [vmem:[#allocation2 + $0xb8] sm:$0xff] %v1262
    %1336 = vst [vmem:[#allocation2 + $0xc0] sm:$0xff] %v1117
    %1337 = vst [vmem:[#allocation2 + $0xc8] sm:$0xff] %v1119
    %1338 = vst [vmem:[#allocation2 + $0xd0] sm:$0xff] %v1266
    %1339 = vst [vmem:[#allocation2 + $0xd8] sm:$0xff] %v1268
    %1340 = vst [vmem:[#allocation2 + $0xe0] sm:$0xff] %v1123
    %1341 = vst [vmem:[#allocation2 + $0xe8] sm:$0xff] %v1125
    %1342 = vst [vmem:[#allocation2 + $0xf0] sm:$0xff] %v1272
    %1343 = vst [vmem:[#allocation2 + $0xf8] sm:$0xff] %v1274
    %1344 = vst [vmem:[#allocation2 + $0x100] sm:$0xff] %v1129
    %1345 = vst [vmem:[#allocation2 + $0x108] sm:$0xff] %v1131
    %1346 = vst [vmem:[#allocation2 + $0x110] sm:$0xff] %v1278
    %1347 = vst [vmem:[#allocation2 + $0x118] sm:$0xff] %v1280
    %1348 = vst [vmem:[#allocation2 + $0x120] sm:$0xff] %v1135
    %1349 = vst [vmem:[#allocation2 + $0x128] sm:$0xff] %v1137
    %1350 = vst [vmem:[#allocation2 + $0x130] sm:$0xff] %v1284
    %1351 = vst [vmem:[#allocation2 + $0x138] sm:$0xff] %v1286
    %1352 = vst [vmem:[#allocation2 + $0x140] sm:$0xff] %v1141
    %1353 = vst [vmem:[#allocation2 + $0x148] sm:$0xff] %v1143
    %1354 = vst [vmem:[#allocation2 + $0x150] sm:$0xff] %v1290
    %1355 = vst [vmem:[#allocation2 + $0x158] sm:$0xff] %v1292
    %1356 = vst [vmem:[#allocation2 + $0x160] sm:$0xff] %v1147
    %1357 = vst [vmem:[#allocation2 + $0x168] sm:$0xff] %v1149
    %1358 = vst [vmem:[#allocation2 + $0x170] sm:$0xff] %v1296
    %1359 = vst [vmem:[#allocation2 + $0x178] sm:$0xff] %v1298
    %1360 = vst [vmem:[#allocation2 + $0x180] sm:$0xff] %v1153
    %1361 = vst [vmem:[#allocation2 + $0x188] sm:$0xff] %v1155
    %1362 = vst [vmem:[#allocation2 + $0x190] sm:$0xff] %v1302
    %1363 = vst [vmem:[#allocation2 + $0x198] sm:$0xff] %v1304
    %1364 = vst [vmem:[#allocation2 + $0x1a0] sm:$0xff] %v1159
    %1365 = vst [vmem:[#allocation2 + $0x1a8] sm:$0xff] %v1161
    %1366 = vst [vmem:[#allocation2 + $0x1b0] sm:$0xff] %v1308
    %1367 = vst [vmem:[#allocation2 + $0x1b8] sm:$0xff] %v1310
    %v1368 = vld [vmem:[#allocation2] sm:$0xff]
    %v1369 = vld [vmem:[#allocation2 + $0x8] sm:$0xff]
    %v1370 = vld [vmem:[#allocation2 + $0x10] sm:$0xff]
    %v1371 = vld [vmem:[#allocation2 + $0x18] sm:$0xff]
    %v1372 = vld [vmem:[#allocation7] sm:$0xff]
    %v1373 = vld [vmem:[#allocation7 + $0x8] sm:$0xff]
    %v1374 = vld [vmem:[#allocation7 + $0x10] sm:$0xff]
    %v1375 = vld [vmem:[#allocation7 + $0x18] sm:$0xff]
    %v1376 = vld [vmem:[#allocation7 + $0x20] sm:$0xff]
    %v1377 = vld [vmem:[#allocation7 + $0x28] sm:$0xff]
    %v1378 = vld [vmem:[#allocation7 + $0x30] sm:$0xff]
    %v1379 = vld [vmem:[#allocation7 + $0x38] sm:$0xff]
    %v1380 = vld [vmem:[#allocation7 + $0x40] sm:$0xff]
    %v1381 = vld [vmem:[#allocation7 + $0x48] sm:$0xff]
    %v1382 = vld [vmem:[#allocation7 + $0x50] sm:$0xff]
    %v1383 = vld [vmem:[#allocation7 + $0x58] sm:$0xff]
    %v1384 = vld [vmem:[#allocation7 + $0x60] sm:$0xff]
    %v1385 = vld [vmem:[#allocation7 + $0x68] sm:$0xff]
    %v1386 = vld [vmem:[#allocation7 + $0x70] sm:$0xff]
    %v1387 = vld [vmem:[#allocation7 + $0x78] sm:$0xff]
    %v1388 = vld [vmem:[#allocation7 + $0x80] sm:$0xff]
    %v1389 = vld [vmem:[#allocation7 + $0x88] sm:$0xff]
    %v1390 = vld [vmem:[#allocation7 + $0x90] sm:$0xff]
    %v1391 = vld [vmem:[#allocation7 + $0x98] sm:$0xff]
    %v1392 = vld [vmem:[#allocation7 + $0xa0] sm:$0xff]
    %v1393 = vld [vmem:[#allocation7 + $0xa8] sm:$0xff]
    %v1394 = vld [vmem:[#allocation7 + $0xb0] sm:$0xff]
    %v1395 = vld [vmem:[#allocation7 + $0xb8] sm:$0xff]
    %v1396 = vld [vmem:[#allocation7 + $0xc0] sm:$0xff]
    %v1397 = vld [vmem:[#allocation7 + $0xc8] sm:$0xff]
    %v1398 = vld [vmem:[#allocation7 + $0xd0] sm:$0xff]
    %v1399 = vld [vmem:[#allocation7 + $0xd8] sm:$0xff]
    %v1400 = vld [vmem:[#allocation7 + $0xe0] sm:$0xff]
    %v1401 = vld [vmem:[#allocation7 + $0xe8] sm:$0xff]
    %v1402 = vld [vmem:[#allocation7 + $0xf0] sm:$0xff]
    %v1403 = vld [vmem:[#allocation7 + $0xf8] sm:$0xff]
    %v1404 = vld [vmem:[#allocation7 + $0x100] sm:$0xff]
    %v1405 = vld [vmem:[#allocation7 + $0x108] sm:$0xff]
    %v1406 = vld [vmem:[#allocation7 + $0x110] sm:$0xff]
    %v1407 = vld [vmem:[#allocation7 + $0x118] sm:$0xff]
    %v1408 = vld [vmem:[#allocation7 + $0x120] sm:$0xff]
    %v1409 = vld [vmem:[#allocation7 + $0x128] sm:$0xff]
    %v1410 = vld [vmem:[#allocation7 + $0x130] sm:$0xff]
    %v1411 = vld [vmem:[#allocation7 + $0x138] sm:$0xff]
    %v1412 = vld [vmem:[#allocation7 + $0x140] sm:$0xff]
    %v1413 = vld [vmem:[#allocation7 + $0x148] sm:$0xff]
    %v1414 = vld [vmem:[#allocation7 + $0x150] sm:$0xff]
    %v1415 = vld [vmem:[#allocation7 + $0x158] sm:$0xff]
    %v1416 = vld [vmem:[#allocation7 + $0x160] sm:$0xff]
    %v1417 = vld [vmem:[#allocation7 + $0x168] sm:$0xff]
    %v1418 = vld [vmem:[#allocation7 + $0x170] sm:$0xff]
    %v1419 = vld [vmem:[#allocation7 + $0x178] sm:$0xff]
    %v1420 = vld [vmem:[#allocation7 + $0x180] sm:$0xff]
    %v1421 = vld [vmem:[#allocation7 + $0x188] sm:$0xff]
    %v1422 = vld [vmem:[#allocation7 + $0x190] sm:$0xff]
    %v1423 = vld [vmem:[#allocation7 + $0x198] sm:$0xff]
    %v1424 = vld [vmem:[#allocation7 + $0x1a0] sm:$0xff]
    %v1425 = vld [vmem:[#allocation7 + $0x1a8] sm:$0xff]
    %v1426 = vld [vmem:[#allocation7 + $0x1b0] sm:$0xff]
    %v1427 = vld [vmem:[#allocation7 + $0x1b8] sm:$0xff]
    %v1428 = vld [vmem:[#allocation7 + $0x1c0] sm:$0xff]
    %v1429 = vld [vmem:[#allocation7 + $0x1c8] sm:$0xff]
    %v1430 = vld [vmem:[#allocation7 + $0x1d0] sm:$0xff]
    %v1431 = vld [vmem:[#allocation7 + $0x1d8] sm:$0xff]
    %v1432 = vld [vmem:[#allocation7 + $0x1e0] sm:$0xff]
    %v1433 = vld [vmem:[#allocation7 + $0x1e8] sm:$0xff]
    %v1434 = vld [vmem:[#allocation7 + $0x1f0] sm:$0xff]
    %v1435 = vld [vmem:[#allocation7 + $0x1f8] sm:$0xff]
    %1436 = vmatprep.subr.mxu0 %v1433
    %1437 = vmatpush1.msra.mxu0 %v1432
    %1438 = vmatprep.subr.mxu0 %v1429
    %1439 = vmatpush1.msra.mxu0 %v1428
    %1440 = vmatprep.subr.mxu0 %v1425
    %1441 = vmatpush1.msra.mxu0 %v1424
    %1442 = vmatprep.subr.mxu0 %v1421
    %1443 = vmatpush1.msra.mxu0 %v1420
    %1444 = vmatprep.subr.mxu0 %v1417
    %1445 = vmatpush1.msra.mxu0 %v1416
    %1446 = vmatprep.subr.mxu0 %v1413
    %1447 = vmatpush1.msra.mxu0 %v1412
    %1448 = vmatprep.subr.mxu0 %v1409
    %1449 = vmatpush1.msra.mxu0 %v1408
    %1450 = vmatprep.subr.mxu0 %v1405
    %1451 = vmatpush1.msra.mxu0 %v1404
    %1452 = vmatprep.subr.mxu0 %v1401
    %1453 = vmatpush1.msra.mxu0 %v1400
    %1454 = vmatprep.subr.mxu0 %v1397
    %1455 = vmatpush1.msra.mxu0 %v1396
    %1456 = vmatprep.subr.mxu0 %v1393
    %1457 = vmatpush1.msra.mxu0 %v1392
    %1458 = vmatprep.subr.mxu0 %v1389
    %1459 = vmatpush1.msra.mxu0 %v1388
    %1460 = vmatprep.subr.mxu0 %v1385
    %1461 = vmatpush1.msra.mxu0 %v1384
    %1462 = vmatprep.subr.mxu0 %v1381
    %1463 = vmatpush1.msra.mxu0 %v1380
    %1464 = vmatprep.subr.mxu0 %v1377
    %1465 = vmatpush1.msra.mxu0 %v1376
    %1466 = vmatprep.subr.mxu0 %v1373
    %1467 = vmatpush1.msra.mxu0 %v1372
    %1468 = vmatprep.subr.mxu0 0.0
    %1469 = vmatpush2.msra.mxu0 0.0
    %1470 = vmatprep.subr.mxu0 0.0
    %1471 = vmatpush2.msra.mxu0 0.0
    %1472 = vmatprep.subr.mxu0 0.0
    %1473 = vmatpush2.msra.mxu0 0.0
    %1474 = vmatprep.subr.mxu0 0.0
    %1475 = vmatpush2.msra.mxu0 0.0
    %1476 = vmatprep.subr.mxu0 0.0
    %1477 = vmatpush2.msra.mxu0 0.0
    %1478 = vmatprep.subr.mxu0 0.0
    %1479 = vmatpush2.msra.mxu0 0.0
    %1480 = vmatprep.subr.mxu0 0.0
    %1481 = vmatpush2.msra.mxu0 0.0
    %1482 = vmatprep.subr.mxu0 0.0
    %1483 = vmatpush2.msra.mxu0 0.0
    %1484 = vmatprep.subr.mxu0 0.0
    %1485 = vmatpush2.msra.mxu0 0.0
    %1486 = vmatprep.subr.mxu0 0.0
    %1487 = vmatpush2.msra.mxu0 0.0
    %1488 = vmatprep.subr.mxu0 0.0
    %1489 = vmatpush2.msra.mxu0 0.0
    %1490 = vmatprep.subr.mxu0 0.0
    %1491 = vmatpush2.msra.mxu0 0.0
    %1492 = vmatprep.subr.mxu0 0.0
    %1493 = vmatpush2.msra.mxu0 0.0
    %1494 = vmatprep.subr.mxu0 0.0
    %1495 = vmatpush2.msra.mxu0 0.0
    %1496 = vmatprep.subr.mxu0 0.0
    %1497 = vmatpush2.msra.mxu0 0.0
    %1498 = vmatprep.subr.mxu0 0.0
    %1499 = vmatpush2.msra.mxu0 0.0
    %1500 = vmatprep.mubr.f32.mxu0 0.0
    %1501 = vmatmul.mubr.f32.gmra.mxu0 0.0
    %v1502 = vpop.f32.mrf.mxu0
    %v1503 = vadd.f32 0.0, %v1502
    %v1504 = vpop.f32.mrf.mxu0
    %v1505 = vadd.f32 0.0, %v1504
    %1506 = vdwg.mxu0
    %1507 = vmatprep.subr.mxu0 %v1435
    %1508 = vmatpush1.msra.mxu0 %v1434
    %1509 = vmatprep.subr.mxu0 %v1431
    %1510 = vmatpush1.msra.mxu0 %v1430
    %1511 = vmatprep.subr.mxu0 %v1427
    %1512 = vmatpush1.msra.mxu0 %v1426
    %1513 = vmatprep.subr.mxu0 %v1423
    %1514 = vmatpush1.msra.mxu0 %v1422
    %1515 = vmatprep.subr.mxu0 %v1419
    %1516 = vmatpush1.msra.mxu0 %v1418
    %1517 = vmatprep.subr.mxu0 %v1415
    %1518 = vmatpush1.msra.mxu0 %v1414
    %1519 = vmatprep.subr.mxu0 %v1411
    %1520 = vmatpush1.msra.mxu0 %v1410
    %1521 = vmatprep.subr.mxu0 %v1407
    %1522 = vmatpush1.msra.mxu0 %v1406
    %1523 = vmatprep.subr.mxu0 %v1403
    %1524 = vmatpush1.msra.mxu0 %v1402
    %1525 = vmatprep.subr.mxu0 %v1399
    %1526 = vmatpush1.msra.mxu0 %v1398
    %1527 = vmatprep.subr.mxu0 %v1395
    %1528 = vmatpush1.msra.mxu0 %v1394
    %1529 = vmatprep.subr.mxu0 %v1391
    %1530 = vmatpush1.msra.mxu0 %v1390
    %1531 = vmatprep.subr.mxu0 %v1387
    %1532 = vmatpush1.msra.mxu0 %v1386
    %1533 = vmatprep.subr.mxu0 %v1383
    %1534 = vmatpush1.msra.mxu0 %v1382
    %1535 = vmatprep.subr.mxu0 %v1379
    %1536 = vmatpush1.msra.mxu0 %v1378
    %1537 = vmatprep.subr.mxu0 %v1375
    %1538 = vmatpush1.msra.mxu0 %v1374
    %1539 = vmatprep.subr.mxu0 0.0
    %1540 = vmatpush2.msra.mxu0 0.0
    %1541 = vmatprep.subr.mxu0 0.0
    %1542 = vmatpush2.msra.mxu0 0.0
    %1543 = vmatprep.subr.mxu0 0.0
    %1544 = vmatpush2.msra.mxu0 0.0
    %1545 = vmatprep.subr.mxu0 0.0
    %1546 = vmatpush2.msra.mxu0 0.0
    %1547 = vmatprep.subr.mxu0 0.0
    %1548 = vmatpush2.msra.mxu0 0.0
    %1549 = vmatprep.subr.mxu0 0.0
    %1550 = vmatpush2.msra.mxu0 0.0
    %1551 = vmatprep.subr.mxu0 0.0
    %1552 = vmatpush2.msra.mxu0 0.0
    %1553 = vmatprep.subr.mxu0 0.0
    %1554 = vmatpush2.msra.mxu0 0.0
    %1555 = vmatprep.subr.mxu0 0.0
    %1556 = vmatpush2.msra.mxu0 0.0
    %1557 = vmatprep.subr.mxu0 0.0
    %1558 = vmatpush2.msra.mxu0 0.0
    %1559 = vmatprep.subr.mxu0 0.0
    %1560 = vmatpush2.msra.mxu0 0.0
    %1561 = vmatprep.subr.mxu0 0.0
    %1562 = vmatpush2.msra.mxu0 0.0
    %1563 = vmatprep.subr.mxu0 0.0
    %1564 = vmatpush2.msra.mxu0 0.0
    %1565 = vmatprep.subr.mxu0 0.0
    %1566 = vmatpush2.msra.mxu0 0.0
    %1567 = vmatprep.subr.mxu0 0.0
    %1568 = vmatpush2.msra.mxu0 0.0
    %1569 = vmatprep.subr.mxu0 0.0
    %1570 = vmatpush2.msra.mxu0 0.0
    %1571 = vmatprep.mubr.f32.mxu0 0.0
    %1572 = vmatmul.mubr.f32.gmra.mxu0 0.0
    %v1573 = vpop.f32.mrf.mxu0
    %v1574 = vadd.f32 0.0, %v1573
    %v1575 = vpop.f32.mrf.mxu0
    %v1576 = vadd.f32 0.0, %v1575
    %1577 = vdwg.mxu0
    %v1578 = vadd.f32 %v1368, %v1503
    %v1579 = vadd.f32 %v1369, %v1505
    %v1580 = vadd.f32 %v1370, %v1574
    %v1581 = vadd.f32 %v1371, %v1576
    %v1582 = vmul.f32 %v1578, 0.5
    %v1583 = vtanh.pop %v1582
    %v1584 = vmul.f32 %v1583, 0.5
    %v1585 = vadd.f32 %v1584, 0.5
    %v1586 = vmul.f32 %v1579, 0.5
    %v1587 = vtanh.pop %v1586
    %v1588 = vmul.f32 %v1587, 0.5
    %v1589 = vadd.f32 %v1588, 0.5
    %v1590 = vtanh.pop %v1580
    %v1591 = vmul.f32 %v1581, 0.5
    %v1592 = vtanh.pop %v1591
    %v1593 = vmul.f32 %v1592, 0.5
    %v1594 = vadd.f32 %v1593, 0.5
    %v1595 = vmul.f32 %v1589, 0.0
    %v1596 = vmul.f32 %v1585, %v1590
    %v1597 = vadd.f32 %v1595, %v1596
    %v1598 = vtanh.pop %v1597
    %v1599 = vmul.f32 %v1594, %v1598
    %v1600 = vld [vmem:[#allocation2 + $0x20] sm:$0xff]
    %v1601 = vld [vmem:[#allocation2 + $0x28] sm:$0xff]
    %v1602 = vld [vmem:[#allocation2 + $0x30] sm:$0xff]
    %v1603 = vld [vmem:[#allocation2 + $0x38] sm:$0xff]
    %1604 = vmatprep.subr.mxu0 %v1433
    %1605 = vmatpush1.msra.mxu0 %v1432
    %1606 = vmatprep.subr.mxu0 %v1429
    %1607 = vmatpush1.msra.mxu0 %v1428
    %1608 = vmatprep.subr.mxu0 %v1425
    %1609 = vmatpush1.msra.mxu0 %v1424
    %1610 = vmatprep.subr.mxu0 %v1421
    %1611 = vmatpush1.msra.mxu0 %v1420
    %1612 = vmatprep.subr.mxu0 %v1417
    %1613 = vmatpush1.msra.mxu0 %v1416
    %1614 = vmatprep.subr.mxu0 %v1413
    %1615 = vmatpush1.msra.mxu0 %v1412
    %1616 = vmatprep.subr.mxu0 %v1409
    %1617 = vmatpush1.msra.mxu0 %v1408
    %1618 = vmatprep.subr.mxu0 %v1405
    %1619 = vmatpush1.msra.mxu0 %v1404
    %1620 = vmatprep.subr.mxu0 %v1401
    %1621 = vmatpush1.msra.mxu0 %v1400
    %1622 = vmatprep.subr.mxu0 %v1397
    %1623 = vmatpush1.msra.mxu0 %v1396
    %1624 = vmatprep.subr.mxu0 %v1393
    %1625 = vmatpush1.msra.mxu0 %v1392
    %1626 = vmatprep.subr.mxu0 %v1389
    %1627 = vmatpush1.msra.mxu0 %v1388
    %1628 = vmatprep.subr.mxu0 %v1385
    %1629 = vmatpush1.msra.mxu0 %v1384
    %1630 = vmatprep.subr.mxu0 %v1381
    %1631 = vmatpush1.msra.mxu0 %v1380
    %1632 = vmatprep.subr.mxu0 %v1377
    %1633 = vmatpush1.msra.mxu0 %v1376
    %1634 = vmatprep.subr.mxu0 %v1373
    %1635 = vmatpush1.msra.mxu0 %v1372
    %1636 = vmatprep.subr.mxu0 0.0
    %1637 = vmatpush2.msra.mxu0 0.0
    %1638 = vmatprep.subr.mxu0 0.0
    %1639 = vmatpush2.msra.mxu0 0.0
    %1640 = vmatprep.subr.mxu0 0.0
    %1641 = vmatpush2.msra.mxu0 0.0
    %1642 = vmatprep.subr.mxu0 0.0
    %1643 = vmatpush2.msra.mxu0 0.0
    %1644 = vmatprep.subr.mxu0 0.0
    %1645 = vmatpush2.msra.mxu0 0.0
    %1646 = vmatprep.subr.mxu0 0.0
    %1647 = vmatpush2.msra.mxu0 0.0
    %1648 = vmatprep.subr.mxu0 0.0
    %1649 = vmatpush2.msra.mxu0 0.0
    %1650 = vmatprep.subr.mxu0 0.0
    %1651 = vmatpush2.msra.mxu0 0.0
    %1652 = vmatprep.subr.mxu0 0.0
    %1653 = vmatpush2.msra.mxu0 0.0
    %1654 = vmatprep.subr.mxu0 0.0
    %1655 = vmatpush2.msra.mxu0 0.0
    %1656 = vmatprep.subr.mxu0 0.0
    %1657 = vmatpush2.msra.mxu0 0.0
    %1658 = vmatprep.subr.mxu0 0.0
    %1659 = vmatpush2.msra.mxu0 0.0
    %1660 = vmatprep.subr.mxu0 0.0
    %1661 = vmatpush2.msra.mxu0 0.0
    %1662 = vmatprep.subr.mxu0 0.0
    %1663 = vmatpush2.msra.mxu0 0.0
    %1664 = vmatprep.subr.mxu0 0.0
    %1665 = vmatpush2.msra.mxu0 0.0
    %1666 = vmatprep.subr.mxu0 0.0
    %1667 = vmatpush2.msra.mxu0 0.0
    %1668 = vmatprep.mubr.f32.mxu0 0.0
    %1669 = vmatmul.mubr.f32.gmra.mxu0 %v1599
    %v1670 = vpop.f32.mrf.mxu0
    %v1671 = vadd.f32 0.0, %v1670
    %v1672 = vpop.f32.mrf.mxu0
    %v1673 = vadd.f32 0.0, %v1672
    %1674 = vdwg.mxu0
    %1675 = vmatprep.subr.mxu0 %v1435
    %1676 = vmatpush1.msra.mxu0 %v1434
    %1677 = vmatprep.subr.mxu0 %v1431
    %1678 = vmatpush1.msra.mxu0 %v1430
    %1679 = vmatprep.subr.mxu0 %v1427
    %1680 = vmatpush1.msra.mxu0 %v1426
    %1681 = vmatprep.subr.mxu0 %v1423
    %1682 = vmatpush1.msra.mxu0 %v1422
    %1683 = vmatprep.subr.mxu0 %v1419
    %1684 = vmatpush1.msra.mxu0 %v1418
    %1685 = vmatprep.subr.mxu0 %v1415
    %1686 = vmatpush1.msra.mxu0 %v1414
    %1687 = vmatprep.subr.mxu0 %v1411
    %1688 = vmatpush1.msra.mxu0 %v1410
    %1689 = vmatprep.subr.mxu0 %v1407
    %1690 = vmatpush1.msra.mxu0 %v1406
    %1691 = vmatprep.subr.mxu0 %v1403
    %1692 = vmatpush1.msra.mxu0 %v1402
    %1693 = vmatprep.subr.mxu0 %v1399
    %1694 = vmatpush1.msra.mxu0 %v1398
    %1695 = vmatprep.subr.mxu0 %v1395
    %1696 = vmatpush1.msra.mxu0 %v1394
    %1697 = vmatprep.subr.mxu0 %v1391
    %1698 = vmatpush1.msra.mxu0 %v1390
    %1699 = vmatprep.subr.mxu0 %v1387
    %1700 = vmatpush1.msra.mxu0 %v1386
    %1701 = vmatprep.subr.mxu0 %v1383
    %1702 = vmatpush1.msra.mxu0 %v1382
    %1703 = vmatprep.subr.mxu0 %v1379
    %1704 = vmatpush1.msra.mxu0 %v1378
    %1705 = vmatprep.subr.mxu0 %v1375
    %1706 = vmatpush1.msra.mxu0 %v1374
    %1707 = vmatprep.subr.mxu0 0.0
    %1708 = vmatpush2.msra.mxu0 0.0
    %1709 = vmatprep.subr.mxu0 0.0
    %1710 = vmatpush2.msra.mxu0 0.0
    %1711 = vmatprep.subr.mxu0 0.0
    %1712 = vmatpush2.msra.mxu0 0.0
    %1713 = vmatprep.subr.mxu0 0.0
    %1714 = vmatpush2.msra.mxu0 0.0
    %1715 = vmatprep.subr.mxu0 0.0
    %1716 = vmatpush2.msra.mxu0 0.0
    %1717 = vmatprep.subr.mxu0 0.0
    %1718 = vmatpush2.msra.mxu0 0.0
    %1719 = vmatprep.subr.mxu0 0.0
    %1720 = vmatpush2.msra.mxu0 0.0
    %1721 = vmatprep.subr.mxu0 0.0
    %1722 = vmatpush2.msra.mxu0 0.0
    %1723 = vmatprep.subr.mxu0 0.0
    %1724 = vmatpush2.msra.mxu0 0.0
    %1725 = vmatprep.subr.mxu0 0.0
    %1726 = vmatpush2.msra.mxu0 0.0
    %1727 = vmatprep.subr.mxu0 0.0
    %1728 = vmatpush2.msra.mxu0 0.0
    %1729 = vmatprep.subr.mxu0 0.0
    %1730 = vmatpush2.msra.mxu0 0.0
    %1731 = vmatprep.subr.mxu0 0.0
    %1732 = vmatpush2.msra.mxu0 0.0
    %1733 = vmatprep.subr.mxu0 0.0
    %1734 = vmatpush2.msra.mxu0 0.0
    %1735 = vmatprep.subr.mxu0 0.0
    %1736 = vmatpush2.msra.mxu0 0.0
    %1737 = vmatprep.subr.mxu0 0.0
    %1738 = vmatpush2.msra.mxu0 0.0
    %1739 = vmatprep.mubr.f32.mxu0 0.0
    %1740 = vmatmul.mubr.f32.gmra.mxu0 %v1599
    %v1741 = vpop.f32.mrf.mxu0
    %v1742 = vadd.f32 0.0, %v1741
    %v1743 = vpop.f32.mrf.mxu0
    %v1744 = vadd.f32 0.0, %v1743
    %1745 = vdwg.mxu0
    %v1746 = vadd.f32 %v1600, %v1671
    %v1747 = vadd.f32 %v1601, %v1673
    %v1748 = vadd.f32 %v1602, %v1742
    %v1749 = vadd.f32 %v1603, %v1744
    %v1750 = vmul.f32 %v1746, 0.5
    %v1751 = vtanh.pop %v1750
    %v1752 = vmul.f32 %v1751, 0.5
    %v1753 = vadd.f32 %v1752, 0.5
    %v1754 = vmul.f32 %v1747, 0.5
    %v1755 = vtanh.pop %v1754
    %v1756 = vmul.f32 %v1755, 0.5
    %v1757 = vadd.f32 %v1756, 0.5
    %v1758 = vtanh.pop %v1748
    %v1759 = vmul.f32 %v1749, 0.5
    %v1760 = vtanh.pop %v1759
    %v1761 = vmul.f32 %v1760, 0.5
    %v1762 = vadd.f32 %v1761, 0.5
    %v1763 = vmul.f32 %v1757, %v1597
    %v1764 = vmul.f32 %v1753, %v1758
    %v1765 = vadd.f32 %v1763, %v1764
    %v1766 = vtanh.pop %v1765
    %v1767 = vmul.f32 %v1762, %v1766
    %v1768 = vld [vmem:[#allocation2 + $0x40] sm:$0xff]
    %v1769 = vld [vmem:[#allocation2 + $0x48] sm:$0xff]
    %v1770 = vld [vmem:[#allocation2 + $0x50] sm:$0xff]
    %v1771 = vld [vmem:[#allocation2 + $0x58] sm:$0xff]
    %1772 = vmatprep.subr.mxu0 %v1433
    %1773 = vmatpush1.msra.mxu0 %v1432
    %1774 = vmatprep.subr.mxu0 %v1429
    %1775 = vmatpush1.msra.mxu0 %v1428
    %1776 = vmatprep.subr.mxu0 %v1425
    %1777 = vmatpush1.msra.mxu0 %v1424
    %1778 = vmatprep.subr.mxu0 %v1421
    %1779 = vmatpush1.msra.mxu0 %v1420
    %1780 = vmatprep.subr.mxu0 %v1417
    %1781 = vmatpush1.msra.mxu0 %v1416
    %1782 = vmatprep.subr.mxu0 %v1413
    %1783 = vmatpush1.msra.mxu0 %v1412
    %1784 = vmatprep.subr.mxu0 %v1409
    %1785 = vmatpush1.msra.mxu0 %v1408
    %1786 = vmatprep.subr.mxu0 %v1405
    %1787 = vmatpush1.msra.mxu0 %v1404
    %1788 = vmatprep.subr.mxu0 %v1401
    %1789 = vmatpush1.msra.mxu0 %v1400
    %1790 = vmatprep.subr.mxu0 %v1397
    %1791 = vmatpush1.msra.mxu0 %v1396
    %1792 = vmatprep.subr.mxu0 %v1393
    %1793 = vmatpush1.msra.mxu0 %v1392
    %1794 = vmatprep.subr.mxu0 %v1389
    %1795 = vmatpush1.msra.mxu0 %v1388
    %1796 = vmatprep.subr.mxu0 %v1385
    %1797 = vmatpush1.msra.mxu0 %v1384
    %1798 = vmatprep.subr.mxu0 %v1381
    %1799 = vmatpush1.msra.mxu0 %v1380
    %1800 = vmatprep.subr.mxu0 %v1377
    %1801 = vmatpush1.msra.mxu0 %v1376
    %1802 = vmatprep.subr.mxu0 %v1373
    %1803 = vmatpush1.msra.mxu0 %v1372
    %1804 = vmatprep.subr.mxu0 0.0
    %1805 = vmatpush2.msra.mxu0 0.0
    %1806 = vmatprep.subr.mxu0 0.0
    %1807 = vmatpush2.msra.mxu0 0.0
    %1808 = vmatprep.subr.mxu0 0.0
    %1809 = vmatpush2.msra.mxu0 0.0
    %1810 = vmatprep.subr.mxu0 0.0
    %1811 = vmatpush2.msra.mxu0 0.0
    %1812 = vmatprep.subr.mxu0 0.0
    %1813 = vmatpush2.msra.mxu0 0.0
    %1814 = vmatprep.subr.mxu0 0.0
    %1815 = vmatpush2.msra.mxu0 0.0
    %1816 = vmatprep.subr.mxu0 0.0
    %1817 = vmatpush2.msra.mxu0 0.0
    %1818 = vmatprep.subr.mxu0 0.0
    %1819 = vmatpush2.msra.mxu0 0.0
    %1820 = vmatprep.subr.mxu0 0.0
    %1821 = vmatpush2.msra.mxu0 0.0
    %1822 = vmatprep.subr.mxu0 0.0
    %1823 = vmatpush2.msra.mxu0 0.0
    %1824 = vmatprep.subr.mxu0 0.0
    %1825 = vmatpush2.msra.mxu0 0.0
    %1826 = vmatprep.subr.mxu0 0.0
    %1827 = vmatpush2.msra.mxu0 0.0
    %1828 = vmatprep.subr.mxu0 0.0
    %1829 = vmatpush2.msra.mxu0 0.0
    %1830 = vmatprep.subr.mxu0 0.0
    %1831 = vmatpush2.msra.mxu0 0.0
    %1832 = vmatprep.subr.mxu0 0.0
    %1833 = vmatpush2.msra.mxu0 0.0
    %1834 = vmatprep.subr.mxu0 0.0
    %1835 = vmatpush2.msra.mxu0 0.0
    %1836 = vmatprep.mubr.f32.mxu0 0.0
    %1837 = vmatmul.mubr.f32.gmra.mxu0 %v1767
    %v1838 = vpop.f32.mrf.mxu0
    %v1839 = vadd.f32 0.0, %v1838
    %v1840 = vpop.f32.mrf.mxu0
    %v1841 = vadd.f32 0.0, %v1840
    %1842 = vdwg.mxu0
    %1843 = vmatprep.subr.mxu0 %v1435
    %1844 = vmatpush1.msra.mxu0 %v1434
    %1845 = vmatprep.subr.mxu0 %v1431
    %1846 = vmatpush1.msra.mxu0 %v1430
    %1847 = vmatprep.subr.mxu0 %v1427
    %1848 = vmatpush1.msra.mxu0 %v1426
    %1849 = vmatprep.subr.mxu0 %v1423
    %1850 = vmatpush1.msra.mxu0 %v1422
    %1851 = vmatprep.subr.mxu0 %v1419
    %1852 = vmatpush1.msra.mxu0 %v1418
    %1853 = vmatprep.subr.mxu0 %v1415
    %1854 = vmatpush1.msra.mxu0 %v1414
    %1855 = vmatprep.subr.mxu0 %v1411
    %1856 = vmatpush1.msra.mxu0 %v1410
    %1857 = vmatprep.subr.mxu0 %v1407
    %1858 = vmatpush1.msra.mxu0 %v1406
    %1859 = vmatprep.subr.mxu0 %v1403
    %1860 = vmatpush1.msra.mxu0 %v1402
    %1861 = vmatprep.subr.mxu0 %v1399
    %1862 = vmatpush1.msra.mxu0 %v1398
    %1863 = vmatprep.subr.mxu0 %v1395
    %1864 = vmatpush1.msra.mxu0 %v1394
    %1865 = vmatprep.subr.mxu0 %v1391
    %1866 = vmatpush1.msra.mxu0 %v1390
    %1867 = vmatprep.subr.mxu0 %v1387
    %1868 = vmatpush1.msra.mxu0 %v1386
    %1869 = vmatprep.subr.mxu0 %v1383
    %1870 = vmatpush1.msra.mxu0 %v1382
    %1871 = vmatprep.subr.mxu0 %v1379
    %1872 = vmatpush1.msra.mxu0 %v1378
    %1873 = vmatprep.subr.mxu0 %v1375
    %1874 = vmatpush1.msra.mxu0 %v1374
    %1875 = vmatprep.subr.mxu0 0.0
    %1876 = vmatpush2.msra.mxu0 0.0
    %1877 = vmatprep.subr.mxu0 0.0
    %1878 = vmatpush2.msra.mxu0 0.0
    %1879 = vmatprep.subr.mxu0 0.0
    %1880 = vmatpush2.msra.mxu0 0.0
    %1881 = vmatprep.subr.mxu0 0.0
    %1882 = vmatpush2.msra.mxu0 0.0
    %1883 = vmatprep.subr.mxu0 0.0
    %1884 = vmatpush2.msra.mxu0 0.0
    %1885 = vmatprep.subr.mxu0 0.0
    %1886 = vmatpush2.msra.mxu0 0.0
    %1887 = vmatprep.subr.mxu0 0.0
    %1888 = vmatpush2.msra.mxu0 0.0
    %1889 = vmatprep.subr.mxu0 0.0
    %1890 = vmatpush2.msra.mxu0 0.0
    %1891 = vmatprep.subr.mxu0 0.0
    %1892 = vmatpush2.msra.mxu0 0.0
    %1893 = vmatprep.subr.mxu0 0.0
    %1894 = vmatpush2.msra.mxu0 0.0
    %1895 = vmatprep.subr.mxu0 0.0
    %1896 = vmatpush2.msra.mxu0 0.0
    %1897 = vmatprep.subr.mxu0 0.0
    %1898 = vmatpush2.msra.mxu0 0.0
    %1899 = vmatprep.subr.mxu0 0.0
    %1900 = vmatpush2.msra.mxu0 0.0
    %1901 = vmatprep.subr.mxu0 0.0
    %1902 = vmatpush2.msra.mxu0 0.0
    %1903 = vmatprep.subr.mxu0 0.0
    %1904 = vmatpush2.msra.mxu0 0.0
    %1905 = vmatprep.subr.mxu0 0.0
    %1906 = vmatpush2.msra.mxu0 0.0
    %1907 = vmatprep.mubr.f32.mxu0 0.0
    %1908 = vmatmul.mubr.f32.gmra.mxu0 %v1767
    %v1909 = vpop.f32.mrf.mxu0
    %v1910 = vadd.f32 0.0, %v1909
    %v1911 = vpop.f32.mrf.mxu0
    %v1912 = vadd.f32 0.0, %v1911
    %1913 = vdwg.mxu0
    %v1914 = vadd.f32 %v1768, %v1839
    %v1915 = vadd.f32 %v1769, %v1841
    %v1916 = vadd.f32 %v1770, %v1910
    %v1917 = vadd.f32 %v1771, %v1912
    %v1918 = vmul.f32 %v1914, 0.5
    %v1919 = vtanh.pop %v1918
    %v1920 = vmul.f32 %v1919, 0.5
    %v1921 = vadd.f32 %v1920, 0.5
    %v1922 = vmul.f32 %v1915, 0.5
    %v1923 = vtanh.pop %v1922
    %v1924 = vmul.f32 %v1923, 0.5
    %v1925 = vadd.f32 %v1924, 0.5
    %v1926 = vtanh.pop %v1916
    %v1927 = vmul.f32 %v1917, 0.5
    %v1928 = vtanh.pop %v1927
    %v1929 = vmul.f32 %v1928, 0.5
    %v1930 = vadd.f32 %v1929, 0.5
    %v1931 = vmul.f32 %v1925, %v1765
    %v1932 = vmul.f32 %v1921, %v1926
    %v1933 = vadd.f32 %v1931, %v1932
    %v1934 = vtanh.pop %v1933
    %v1935 = vmul.f32 %v1930, %v1934
    %v1936 = vld [vmem:[#allocation2 + $0x60] sm:$0xff]
    %v1937 = vld [vmem:[#allocation2 + $0x68] sm:$0xff]
    %v1938 = vld [vmem:[#allocation2 + $0x70] sm:$0xff]
    %v1939 = vld [vmem:[#allocation2 + $0x78] sm:$0xff]
    %1940 = vmatprep.subr.mxu0 %v1433
    %1941 = vmatpush1.msra.mxu0 %v1432
    %1942 = vmatprep.subr.mxu0 %v1429
    %1943 = vmatpush1.msra.mxu0 %v1428
    %1944 = vmatprep.subr.mxu0 %v1425
    %1945 = vmatpush1.msra.mxu0 %v1424
    %1946 = vmatprep.subr.mxu0 %v1421
    %1947 = vmatpush1.msra.mxu0 %v1420
    %1948 = vmatprep.subr.mxu0 %v1417
    %1949 = vmatpush1.msra.mxu0 %v1416
    %1950 = vmatprep.subr.mxu0 %v1413
    %1951 = vmatpush1.msra.mxu0 %v1412
    %1952 = vmatprep.subr.mxu0 %v1409
    %1953 = vmatpush1.msra.mxu0 %v1408
    %1954 = vmatprep.subr.mxu0 %v1405
    %1955 = vmatpush1.msra.mxu0 %v1404
    %1956 = vmatprep.subr.mxu0 %v1401
    %1957 = vmatpush1.msra.mxu0 %v1400
    %1958 = vmatprep.subr.mxu0 %v1397
    %1959 = vmatpush1.msra.mxu0 %v1396
    %1960 = vmatprep.subr.mxu0 %v1393
    %1961 = vmatpush1.msra.mxu0 %v1392
    %1962 = vmatprep.subr.mxu0 %v1389
    %1963 = vmatpush1.msra.mxu0 %v1388
    %1964 = vmatprep.subr.mxu0 %v1385
    %1965 = vmatpush1.msra.mxu0 %v1384
    %1966 = vmatprep.subr.mxu0 %v1381
    %1967 = vmatpush1.msra.mxu0 %v1380
    %1968 = vmatprep.subr.mxu0 %v1377
    %1969 = vmatpush1.msra.mxu0 %v1376
    %1970 = vmatprep.subr.mxu0 %v1373
    %1971 = vmatpush1.msra.mxu0 %v1372
    %1972 = vmatprep.subr.mxu0 0.0
    %1973 = vmatpush2.msra.mxu0 0.0
    %1974 = vmatprep.subr.mxu0 0.0
    %1975 = vmatpush2.msra.mxu0 0.0
    %1976 = vmatprep.subr.mxu0 0.0
    %1977 = vmatpush2.msra.mxu0 0.0
    %1978 = vmatprep.subr.mxu0 0.0
    %1979 = vmatpush2.msra.mxu0 0.0
    %1980 = vmatprep.subr.mxu0 0.0
    %1981 = vmatpush2.msra.mxu0 0.0
    %1982 = vmatprep.subr.mxu0 0.0
    %1983 = vmatpush2.msra.mxu0 0.0
    %1984 = vmatprep.subr.mxu0 0.0
    %1985 = vmatpush2.msra.mxu0 0.0
    %1986 = vmatprep.subr.mxu0 0.0
    %1987 = vmatpush2.msra.mxu0 0.0
    %1988 = vmatprep.subr.mxu0 0.0
    %1989 = vmatpush2.msra.mxu0 0.0
    %1990 = vmatprep.subr.mxu0 0.0
    %1991 = vmatpush2.msra.mxu0 0.0
    %1992 = vmatprep.subr.mxu0 0.0
    %1993 = vmatpush2.msra.mxu0 0.0
    %1994 = vmatprep.subr.mxu0 0.0
    %1995 = vmatpush2.msra.mxu0 0.0
    %1996 = vmatprep.subr.mxu0 0.0
    %1997 = vmatpush2.msra.mxu0 0.0
    %1998 = vmatprep.subr.mxu0 0.0
    %1999 = vmatpush2.msra.mxu0 0.0
    %2000 = vmatprep.subr.mxu0 0.0
    %2001 = vmatpush2.msra.mxu0 0.0
    %2002 = vmatprep.subr.mxu0 0.0
    %2003 = vmatpush2.msra.mxu0 0.0
    %2004 = vmatprep.mubr.f32.mxu0 0.0
    %2005 = vmatmul.mubr.f32.gmra.mxu0 %v1935
    %v2006 = vpop.f32.mrf.mxu0
    %v2007 = vadd.f32 0.0, %v2006
    %v2008 = vpop.f32.mrf.mxu0
    %v2009 = vadd.f32 0.0, %v2008
    %2010 = vdwg.mxu0
    %2011 = vmatprep.subr.mxu0 %v1435
    %2012 = vmatpush1.msra.mxu0 %v1434
    %2013 = vmatprep.subr.mxu0 %v1431
    %2014 = vmatpush1.msra.mxu0 %v1430
    %2015 = vmatprep.subr.mxu0 %v1427
    %2016 = vmatpush1.msra.mxu0 %v1426
    %2017 = vmatprep.subr.mxu0 %v1423
    %2018 = vmatpush1.msra.mxu0 %v1422
    %2019 = vmatprep.subr.mxu0 %v1419
    %2020 = vmatpush1.msra.mxu0 %v1418
    %2021 = vmatprep.subr.mxu0 %v1415
    %2022 = vmatpush1.msra.mxu0 %v1414
    %2023 = vmatprep.subr.mxu0 %v1411
    %2024 = vmatpush1.msra.mxu0 %v1410
    %2025 = vmatprep.subr.mxu0 %v1407
    %2026 = vmatpush1.msra.mxu0 %v1406
    %2027 = vmatprep.subr.mxu0 %v1403
    %2028 = vmatpush1.msra.mxu0 %v1402
    %2029 = vmatprep.subr.mxu0 %v1399
    %2030 = vmatpush1.msra.mxu0 %v1398
    %2031 = vmatprep.subr.mxu0 %v1395
    %2032 = vmatpush1.msra.mxu0 %v1394
    %2033 = vmatprep.subr.mxu0 %v1391
    %2034 = vmatpush1.msra.mxu0 %v1390
    %2035 = vmatprep.subr.mxu0 %v1387
    %2036 = vmatpush1.msra.mxu0 %v1386
    %2037 = vmatprep.subr.mxu0 %v1383
    %2038 = vmatpush1.msra.mxu0 %v1382
    %2039 = vmatprep.subr.mxu0 %v1379
    %2040 = vmatpush1.msra.mxu0 %v1378
    %2041 = vmatprep.subr.mxu0 %v1375
    %2042 = vmatpush1.msra.mxu0 %v1374
    %2043 = vmatprep.subr.mxu0 0.0
    %2044 = vmatpush2.msra.mxu0 0.0
    %2045 = vmatprep.subr.mxu0 0.0
    %2046 = vmatpush2.msra.mxu0 0.0
    %2047 = vmatprep.subr.mxu0 0.0
    %2048 = vmatpush2.msra.mxu0 0.0
    %2049 = vmatprep.subr.mxu0 0.0
    %2050 = vmatpush2.msra.mxu0 0.0
    %2051 = vmatprep.subr.mxu0 0.0
    %2052 = vmatpush2.msra.mxu0 0.0
    %2053 = vmatprep.subr.mxu0 0.0
    %2054 = vmatpush2.msra.mxu0 0.0
    %2055 = vmatprep.subr.mxu0 0.0
    %2056 = vmatpush2.msra.mxu0 0.0
    %2057 = vmatprep.subr.mxu0 0.0
    %2058 = vmatpush2.msra.mxu0 0.0
    %2059 = vmatprep.subr.mxu0 0.0
    %2060 = vmatpush2.msra.mxu0 0.0
    %2061 = vmatprep.subr.mxu0 0.0
    %2062 = vmatpush2.msra.mxu0 0.0
    %2063 = vmatprep.subr.mxu0 0.0
    %2064 = vmatpush2.msra.mxu0 0.0
    %2065 = vmatprep.subr.mxu0 0.0
    %2066 = vmatpush2.msra.mxu0 0.0
    %2067 = vmatprep.subr.mxu0 0.0
    %2068 = vmatpush2.msra.mxu0 0.0
    %2069 = vmatprep.subr.mxu0 0.0
    %2070 = vmatpush2.msra.mxu0 0.0
    %2071 = vmatprep.subr.mxu0 0.0
    %2072 = vmatpush2.msra.mxu0 0.0
    %2073 = vmatprep.subr.mxu0 0.0
    %2074 = vmatpush2.msra.mxu0 0.0
    %2075 = vmatprep.mubr.f32.mxu0 0.0
    %2076 = vmatmul.mubr.f32.gmra.mxu0 %v1935
    %v2077 = vpop.f32.mrf.mxu0
    %v2078 = vadd.f32 0.0, %v2077
    %v2079 = vpop.f32.mrf.mxu0
    %v2080 = vadd.f32 0.0, %v2079
    %2081 = vdwg.mxu0
    %v2082 = vadd.f32 %v1936, %v2007
    %v2083 = vadd.f32 %v1937, %v2009
    %v2084 = vadd.f32 %v1938, %v2078
    %v2085 = vadd.f32 %v1939, %v2080
    %v2086 = vmul.f32 %v2082, 0.5
    %v2087 = vtanh.pop %v2086
    %v2088 = vmul.f32 %v2087, 0.5
    %v2089 = vadd.f32 %v2088, 0.5
    %v2090 = vmul.f32 %v2083, 0.5
    %v2091 = vtanh.pop %v2090
    %v2092 = vmul.f32 %v2091, 0.5
    %v2093 = vadd.f32 %v2092, 0.5
    %v2094 = vtanh.pop %v2084
    %v2095 = vmul.f32 %v2085, 0.5
    %v2096 = vtanh.pop %v2095
    %v2097 = vmul.f32 %v2096, 0.5
    %v2098 = vadd.f32 %v2097, 0.5
    %v2099 = vmul.f32 %v2093, %v1933
    %v2100 = vmul.f32 %v2089, %v2094
    %v2101 = vadd.f32 %v2099, %v2100
    %v2102 = vtanh.pop %v2101
    %v2103 = vmul.f32 %v2098, %v2102
    %v2104 = vld [vmem:[#allocation2 + $0x80] sm:$0xff]
    %v2105 = vld [vmem:[#allocation2 + $0x88] sm:$0xff]
    %v2106 = vld [vmem:[#allocation2 + $0x90] sm:$0xff]
    %v2107 = vld [vmem:[#allocation2 + $0x98] sm:$0xff]
    %2108 = vmatprep.subr.mxu0 %v1433
    %2109 = vmatpush1.msra.mxu0 %v1432
    %2110 = vmatprep.subr.mxu0 %v1429
    %2111 = vmatpush1.msra.mxu0 %v1428
    %2112 = vmatprep.subr.mxu0 %v1425
    %2113 = vmatpush1.msra.mxu0 %v1424
    %2114 = vmatprep.subr.mxu0 %v1421
    %2115 = vmatpush1.msra.mxu0 %v1420
    %2116 = vmatprep.subr.mxu0 %v1417
    %2117 = vmatpush1.msra.mxu0 %v1416
    %2118 = vmatprep.subr.mxu0 %v1413
    %2119 = vmatpush1.msra.mxu0 %v1412
    %2120 = vmatprep.subr.mxu0 %v1409
    %2121 = vmatpush1.msra.mxu0 %v1408
    %2122 = vmatprep.subr.mxu0 %v1405
    %2123 = vmatpush1.msra.mxu0 %v1404
    %2124 = vmatprep.subr.mxu0 %v1401
    %2125 = vmatpush1.msra.mxu0 %v1400
    %2126 = vmatprep.subr.mxu0 %v1397
    %2127 = vmatpush1.msra.mxu0 %v1396
    %2128 = vmatprep.subr.mxu0 %v1393
    %2129 = vmatpush1.msra.mxu0 %v1392
    %2130 = vmatprep.subr.mxu0 %v1389
    %2131 = vmatpush1.msra.mxu0 %v1388
    %2132 = vmatprep.subr.mxu0 %v1385
    %2133 = vmatpush1.msra.mxu0 %v1384
    %2134 = vmatprep.subr.mxu0 %v1381
    %2135 = vmatpush1.msra.mxu0 %v1380
    %2136 = vmatprep.subr.mxu0 %v1377
    %2137 = vmatpush1.msra.mxu0 %v1376
    %2138 = vmatprep.subr.mxu0 %v1373
    %2139 = vmatpush1.msra.mxu0 %v1372
    %2140 = vmatprep.subr.mxu0 0.0
    %2141 = vmatpush2.msra.mxu0 0.0
    %2142 = vmatprep.subr.mxu0 0.0
    %2143 = vmatpush2.msra.mxu0 0.0
    %2144 = vmatprep.subr.mxu0 0.0
    %2145 = vmatpush2.msra.mxu0 0.0
    %2146 = vmatprep.subr.mxu0 0.0
    %2147 = vmatpush2.msra.mxu0 0.0
    %2148 = vmatprep.subr.mxu0 0.0
    %2149 = vmatpush2.msra.mxu0 0.0
    %2150 = vmatprep.subr.mxu0 0.0
    %2151 = vmatpush2.msra.mxu0 0.0
    %2152 = vmatprep.subr.mxu0 0.0
    %2153 = vmatpush2.msra.mxu0 0.0
    %2154 = vmatprep.subr.mxu0 0.0
    %2155 = vmatpush2.msra.mxu0 0.0
    %2156 = vmatprep.subr.mxu0 0.0
    %2157 = vmatpush2.msra.mxu0 0.0
    %2158 = vmatprep.subr.mxu0 0.0
    %2159 = vmatpush2.msra.mxu0 0.0
    %2160 = vmatprep.subr.mxu0 0.0
    %2161 = vmatpush2.msra.mxu0 0.0
    %2162 = vmatprep.subr.mxu0 0.0
    %2163 = vmatpush2.msra.mxu0 0.0
    %2164 = vmatprep.subr.mxu0 0.0
    %2165 = vmatpush2.msra.mxu0 0.0
    %2166 = vmatprep.subr.mxu0 0.0
    %2167 = vmatpush2.msra.mxu0 0.0
    %2168 = vmatprep.subr.mxu0 0.0
    %2169 = vmatpush2.msra.mxu0 0.0
    %2170 = vmatprep.subr.mxu0 0.0
    %2171 = vmatpush2.msra.mxu0 0.0
    %2172 = vmatprep.mubr.f32.mxu0 0.0
    %2173 = vmatmul.mubr.f32.gmra.mxu0 %v2103
    %v2174 = vpop.f32.mrf.mxu0
    %v2175 = vadd.f32 0.0, %v2174
    %v2176 = vpop.f32.mrf.mxu0
    %v2177 = vadd.f32 0.0, %v2176
    %2178 = vdwg.mxu0
    %2179 = vmatprep.subr.mxu0 %v1435
    %2180 = vmatpush1.msra.mxu0 %v1434
    %2181 = vmatprep.subr.mxu0 %v1431
    %2182 = vmatpush1.msra.mxu0 %v1430
    %2183 = vmatprep.subr.mxu0 %v1427
    %2184 = vmatpush1.msra.mxu0 %v1426
    %2185 = vmatprep.subr.mxu0 %v1423
    %2186 = vmatpush1.msra.mxu0 %v1422
    %2187 = vmatprep.subr.mxu0 %v1419
    %2188 = vmatpush1.msra.mxu0 %v1418
    %2189 = vmatprep.subr.mxu0 %v1415
    %2190 = vmatpush1.msra.mxu0 %v1414
    %2191 = vmatprep.subr.mxu0 %v1411
    %2192 = vmatpush1.msra.mxu0 %v1410
    %2193 = vmatprep.subr.mxu0 %v1407
    %2194 = vmatpush1.msra.mxu0 %v1406
    %2195 = vmatprep.subr.mxu0 %v1403
    %2196 = vmatpush1.msra.mxu0 %v1402
    %2197 = vmatprep.subr.mxu0 %v1399
    %2198 = vmatpush1.msra.mxu0 %v1398
    %2199 = vmatprep.subr.mxu0 %v1395
    %2200 = vmatpush1.msra.mxu0 %v1394
    %2201 = vmatprep.subr.mxu0 %v1391
    %2202 = vmatpush1.msra.mxu0 %v1390
    %2203 = vmatprep.subr.mxu0 %v1387
    %2204 = vmatpush1.msra.mxu0 %v1386
    %2205 = vmatprep.subr.mxu0 %v1383
    %2206 = vmatpush1.msra.mxu0 %v1382
    %2207 = vmatprep.subr.mxu0 %v1379
    %2208 = vmatpush1.msra.mxu0 %v1378
    %2209 = vmatprep.subr.mxu0 %v1375
    %2210 = vmatpush1.msra.mxu0 %v1374
    %2211 = vmatprep.subr.mxu0 0.0
    %2212 = vmatpush2.msra.mxu0 0.0
    %2213 = vmatprep.subr.mxu0 0.0
    %2214 = vmatpush2.msra.mxu0 0.0
    %2215 = vmatprep.subr.mxu0 0.0
    %2216 = vmatpush2.msra.mxu0 0.0
    %2217 = vmatprep.subr.mxu0 0.0
    %2218 = vmatpush2.msra.mxu0 0.0
    %2219 = vmatprep.subr.mxu0 0.0
    %2220 = vmatpush2.msra.mxu0 0.0
    %2221 = vmatprep.subr.mxu0 0.0
    %2222 = vmatpush2.msra.mxu0 0.0
    %2223 = vmatprep.subr.mxu0 0.0
    %2224 = vmatpush2.msra.mxu0 0.0
    %2225 = vmatprep.subr.mxu0 0.0
    %2226 = vmatpush2.msra.mxu0 0.0
    %2227 = vmatprep.subr.mxu0 0.0
    %2228 = vmatpush2.msra.mxu0 0.0
    %2229 = vmatprep.subr.mxu0 0.0
    %2230 = vmatpush2.msra.mxu0 0.0
    %2231 = vmatprep.subr.mxu0 0.0
    %2232 = vmatpush2.msra.mxu0 0.0
    %2233 = vmatprep.subr.mxu0 0.0
    %2234 = vmatpush2.msra.mxu0 0.0
    %2235 = vmatprep.subr.mxu0 0.0
    %2236 = vmatpush2.msra.mxu0 0.0
    %2237 = vmatprep.subr.mxu0 0.0
    %2238 = vmatpush2.msra.mxu0 0.0
    %2239 = vmatprep.subr.mxu0 0.0
    %2240 = vmatpush2.msra.mxu0 0.0
    %2241 = vmatprep.subr.mxu0 0.0
    %2242 = vmatpush2.msra.mxu0 0.0
    %2243 = vmatprep.mubr.f32.mxu0 0.0
    %2244 = vmatmul.mubr.f32.gmra.mxu0 %v2103
    %v2245 = vpop.f32.mrf.mxu0
    %v2246 = vadd.f32 0.0, %v2245
    %v2247 = vpop.f32.mrf.mxu0
    %v2248 = vadd.f32 0.0, %v2247
    %2249 = vdwg.mxu0
    %v2250 = vadd.f32 %v2104, %v2175
    %v2251 = vadd.f32 %v2105, %v2177
    %v2252 = vadd.f32 %v2106, %v2246
    %v2253 = vadd.f32 %v2107, %v2248
    %v2254 = vmul.f32 %v2250, 0.5
    %v2255 = vtanh.pop %v2254
    %v2256 = vmul.f32 %v2255, 0.5
    %v2257 = vadd.f32 %v2256, 0.5
    %v2258 = vmul.f32 %v2251, 0.5
    %v2259 = vtanh.pop %v2258
    %v2260 = vmul.f32 %v2259, 0.5
    %v2261 = vadd.f32 %v2260, 0.5
    %v2262 = vtanh.pop %v2252
    %v2263 = vmul.f32 %v2253, 0.5
    %v2264 = vtanh.pop %v2263
    %v2265 = vmul.f32 %v2264, 0.5
    %v2266 = vadd.f32 %v2265, 0.5
    %v2267 = vmul.f32 %v2261, %v2101
    %v2268 = vmul.f32 %v2257, %v2262
    %v2269 = vadd.f32 %v2267, %v2268
    %v2270 = vtanh.pop %v2269
    %v2271 = vmul.f32 %v2266, %v2270
    %v2272 = vld [vmem:[#allocation2 + $0xa0] sm:$0xff]
    %v2273 = vld [vmem:[#allocation2 + $0xa8] sm:$0xff]
    %v2274 = vld [vmem:[#allocation2 + $0xb0] sm:$0xff]
    %v2275 = vld [vmem:[#allocation2 + $0xb8] sm:$0xff]
    %2276 = vmatprep.subr.mxu0 %v1433
    %2277 = vmatpush1.msra.mxu0 %v1432
    %2278 = vmatprep.subr.mxu0 %v1429
    %2279 = vmatpush1.msra.mxu0 %v1428
    %2280 = vmatprep.subr.mxu0 %v1425
    %2281 = vmatpush1.msra.mxu0 %v1424
    %2282 = vmatprep.subr.mxu0 %v1421
    %2283 = vmatpush1.msra.mxu0 %v1420
    %2284 = vmatprep.subr.mxu0 %v1417
    %2285 = vmatpush1.msra.mxu0 %v1416
    %2286 = vmatprep.subr.mxu0 %v1413
    %2287 = vmatpush1.msra.mxu0 %v1412
    %2288 = vmatprep.subr.mxu0 %v1409
    %2289 = vmatpush1.msra.mxu0 %v1408
    %2290 = vmatprep.subr.mxu0 %v1405
    %2291 = vmatpush1.msra.mxu0 %v1404
    %2292 = vmatprep.subr.mxu0 %v1401
    %2293 = vmatpush1.msra.mxu0 %v1400
    %2294 = vmatprep.subr.mxu0 %v1397
    %2295 = vmatpush1.msra.mxu0 %v1396
    %2296 = vmatprep.subr.mxu0 %v1393
    %2297 = vmatpush1.msra.mxu0 %v1392
    %2298 = vmatprep.subr.mxu0 %v1389
    %2299 = vmatpush1.msra.mxu0 %v1388
    %2300 = vmatprep.subr.mxu0 %v1385
    %2301 = vmatpush1.msra.mxu0 %v1384
    %2302 = vmatprep.subr.mxu0 %v1381
    %2303 = vmatpush1.msra.mxu0 %v1380
    %2304 = vmatprep.subr.mxu0 %v1377
    %2305 = vmatpush1.msra.mxu0 %v1376
    %2306 = vmatprep.subr.mxu0 %v1373
    %2307 = vmatpush1.msra.mxu0 %v1372
    %2308 = vmatprep.subr.mxu0 0.0
    %2309 = vmatpush2.msra.mxu0 0.0
    %2310 = vmatprep.subr.mxu0 0.0
    %2311 = vmatpush2.msra.mxu0 0.0
    %2312 = vmatprep.subr.mxu0 0.0
    %2313 = vmatpush2.msra.mxu0 0.0
    %2314 = vmatprep.subr.mxu0 0.0
    %2315 = vmatpush2.msra.mxu0 0.0
    %2316 = vmatprep.subr.mxu0 0.0
    %2317 = vmatpush2.msra.mxu0 0.0
    %2318 = vmatprep.subr.mxu0 0.0
    %2319 = vmatpush2.msra.mxu0 0.0
    %2320 = vmatprep.subr.mxu0 0.0
    %2321 = vmatpush2.msra.mxu0 0.0
    %2322 = vmatprep.subr.mxu0 0.0
    %2323 = vmatpush2.msra.mxu0 0.0
    %2324 = vmatprep.subr.mxu0 0.0
    %2325 = vmatpush2.msra.mxu0 0.0
    %2326 = vmatprep.subr.mxu0 0.0
    %2327 = vmatpush2.msra.mxu0 0.0
    %2328 = vmatprep.subr.mxu0 0.0
    %2329 = vmatpush2.msra.mxu0 0.0
    %2330 = vmatprep.subr.mxu0 0.0
    %2331 = vmatpush2.msra.mxu0 0.0
    %2332 = vmatprep.subr.mxu0 0.0
    %2333 = vmatpush2.msra.mxu0 0.0
    %2334 = vmatprep.subr.mxu0 0.0
    %2335 = vmatpush2.msra.mxu0 0.0
    %2336 = vmatprep.subr.mxu0 0.0
    %2337 = vmatpush2.msra.mxu0 0.0
    %2338 = vmatprep.subr.mxu0 0.0
    %2339 = vmatpush2.msra.mxu0 0.0
    %2340 = vmatprep.mubr.f32.mxu0 0.0
    %2341 = vmatmul.mubr.f32.gmra.mxu0 %v2271
    %v2342 = vpop.f32.mrf.mxu0
    %v2343 = vadd.f32 0.0, %v2342
    %v2344 = vpop.f32.mrf.mxu0
    %v2345 = vadd.f32 0.0, %v2344
    %2346 = vdwg.mxu0
    %2347 = vmatprep.subr.mxu0 %v1435
    %2348 = vmatpush1.msra.mxu0 %v1434
    %2349 = vmatprep.subr.mxu0 %v1431
    %2350 = vmatpush1.msra.mxu0 %v1430
    %2351 = vmatprep.subr.mxu0 %v1427
    %2352 = vmatpush1.msra.mxu0 %v1426
    %2353 = vmatprep.subr.mxu0 %v1423
    %2354 = vmatpush1.msra.mxu0 %v1422
    %2355 = vmatprep.subr.mxu0 %v1419
    %2356 = vmatpush1.msra.mxu0 %v1418
    %2357 = vmatprep.subr.mxu0 %v1415
    %2358 = vmatpush1.msra.mxu0 %v1414
    %2359 = vmatprep.subr.mxu0 %v1411
    %2360 = vmatpush1.msra.mxu0 %v1410
    %2361 = vmatprep.subr.mxu0 %v1407
    %2362 = vmatpush1.msra.mxu0 %v1406
    %2363 = vmatprep.subr.mxu0 %v1403
    %2364 = vmatpush1.msra.mxu0 %v1402
    %2365 = vmatprep.subr.mxu0 %v1399
    %2366 = vmatpush1.msra.mxu0 %v1398
    %2367 = vmatprep.subr.mxu0 %v1395
    %2368 = vmatpush1.msra.mxu0 %v1394
    %2369 = vmatprep.subr.mxu0 %v1391
    %2370 = vmatpush1.msra.mxu0 %v1390
    %2371 = vmatprep.subr.mxu0 %v1387
    %2372 = vmatpush1.msra.mxu0 %v1386
    %2373 = vmatprep.subr.mxu0 %v1383
    %2374 = vmatpush1.msra.mxu0 %v1382
    %2375 = vmatprep.subr.mxu0 %v1379
    %2376 = vmatpush1.msra.mxu0 %v1378
    %2377 = vmatprep.subr.mxu0 %v1375
    %2378 = vmatpush1.msra.mxu0 %v1374
    %2379 = vmatprep.subr.mxu0 0.0
    %2380 = vmatpush2.msra.mxu0 0.0
    %2381 = vmatprep.subr.mxu0 0.0
    %2382 = vmatpush2.msra.mxu0 0.0
    %2383 = vmatprep.subr.mxu0 0.0
    %2384 = vmatpush2.msra.mxu0 0.0
    %2385 = vmatprep.subr.mxu0 0.0
    %2386 = vmatpush2.msra.mxu0 0.0
    %2387 = vmatprep.subr.mxu0 0.0
    %2388 = vmatpush2.msra.mxu0 0.0
    %2389 = vmatprep.subr.mxu0 0.0
    %2390 = vmatpush2.msra.mxu0 0.0
    %2391 = vmatprep.subr.mxu0 0.0
    %2392 = vmatpush2.msra.mxu0 0.0
    %2393 = vmatprep.subr.mxu0 0.0
    %2394 = vmatpush2.msra.mxu0 0.0
    %2395 = vmatprep.subr.mxu0 0.0
    %2396 = vmatpush2.msra.mxu0 0.0
    %2397 = vmatprep.subr.mxu0 0.0
    %2398 = vmatpush2.msra.mxu0 0.0
    %2399 = vmatprep.subr.mxu0 0.0
    %2400 = vmatpush2.msra.mxu0 0.0
    %2401 = vmatprep.subr.mxu0 0.0
    %2402 = vmatpush2.msra.mxu0 0.0
    %2403 = vmatprep.subr.mxu0 0.0
    %2404 = vmatpush2.msra.mxu0 0.0
    %2405 = vmatprep.subr.mxu0 0.0
    %2406 = vmatpush2.msra.mxu0 0.0
    %2407 = vmatprep.subr.mxu0 0.0
    %2408 = vmatpush2.msra.mxu0 0.0
    %2409 = vmatprep.subr.mxu0 0.0
    %2410 = vmatpush2.msra.mxu0 0.0
    %2411 = vmatprep.mubr.f32.mxu0 0.0
    %2412 = vmatmul.mubr.f32.gmra.mxu0 %v2271
    %v2413 = vpop.f32.mrf.mxu0
    %v2414 = vadd.f32 0.0, %v2413
    %v2415 = vpop.f32.mrf.mxu0
    %v2416 = vadd.f32 0.0, %v2415
    %2417 = vdwg.mxu0
    %v2418 = vadd.f32 %v2272, %v2343
    %v2419 = vadd.f32 %v2273, %v2345
    %v2420 = vadd.f32 %v2274, %v2414
    %v2421 = vadd.f32 %v2275, %v2416
    %v2422 = vmul.f32 %v2418, 0.5
    %v2423 = vtanh.pop %v2422
    %v2424 = vmul.f32 %v2423, 0.5
    %v2425 = vadd.f32 %v2424, 0.5
    %v2426 = vmul.f32 %v2419, 0.5
    %v2427 = vtanh.pop %v2426
    %v2428 = vmul.f32 %v2427, 0.5
    %v2429 = vadd.f32 %v2428, 0.5
    %v2430 = vtanh.pop %v2420
    %v2431 = vmul.f32 %v2421, 0.5
    %v2432 = vtanh.pop %v2431
    %v2433 = vmul.f32 %v2432, 0.5
    %v2434 = vadd.f32 %v2433, 0.5
    %v2435 = vmul.f32 %v2429, %v2269
    %v2436 = vmul.f32 %v2425, %v2430
    %v2437 = vadd.f32 %v2435, %v2436
    %v2438 = vtanh.pop %v2437
    %v2439 = vmul.f32 %v2434, %v2438
    %v2440 = vld [vmem:[#allocation2 + $0xc0] sm:$0xff]
    %v2441 = vld [vmem:[#allocation2 + $0xc8] sm:$0xff]
    %v2442 = vld [vmem:[#allocation2 + $0xd0] sm:$0xff]
    %v2443 = vld [vmem:[#allocation2 + $0xd8] sm:$0xff]
    %2444 = vmatprep.subr.mxu0 %v1433
    %2445 = vmatpush1.msra.mxu0 %v1432
    %2446 = vmatprep.subr.mxu0 %v1429
    %2447 = vmatpush1.msra.mxu0 %v1428
    %2448 = vmatprep.subr.mxu0 %v1425
    %2449 = vmatpush1.msra.mxu0 %v1424
    %2450 = vmatprep.subr.mxu0 %v1421
    %2451 = vmatpush1.msra.mxu0 %v1420
    %2452 = vmatprep.subr.mxu0 %v1417
    %2453 = vmatpush1.msra.mxu0 %v1416
    %2454 = vmatprep.subr.mxu0 %v1413
    %2455 = vmatpush1.msra.mxu0 %v1412
    %2456 = vmatprep.subr.mxu0 %v1409
    %2457 = vmatpush1.msra.mxu0 %v1408
    %2458 = vmatprep.subr.mxu0 %v1405
    %2459 = vmatpush1.msra.mxu0 %v1404
    %2460 = vmatprep.subr.mxu0 %v1401
    %2461 = vmatpush1.msra.mxu0 %v1400
    %2462 = vmatprep.subr.mxu0 %v1397
    %2463 = vmatpush1.msra.mxu0 %v1396
    %2464 = vmatprep.subr.mxu0 %v1393
    %2465 = vmatpush1.msra.mxu0 %v1392
    %2466 = vmatprep.subr.mxu0 %v1389
    %2467 = vmatpush1.msra.mxu0 %v1388
    %2468 = vmatprep.subr.mxu0 %v1385
    %2469 = vmatpush1.msra.mxu0 %v1384
    %2470 = vmatprep.subr.mxu0 %v1381
    %2471 = vmatpush1.msra.mxu0 %v1380
    %2472 = vmatprep.subr.mxu0 %v1377
    %2473 = vmatpush1.msra.mxu0 %v1376
    %2474 = vmatprep.subr.mxu0 %v1373
    %2475 = vmatpush1.msra.mxu0 %v1372
    %2476 = vmatprep.subr.mxu0 0.0
    %2477 = vmatpush2.msra.mxu0 0.0
    %2478 = vmatprep.subr.mxu0 0.0
    %2479 = vmatpush2.msra.mxu0 0.0
    %2480 = vmatprep.subr.mxu0 0.0
    %2481 = vmatpush2.msra.mxu0 0.0
    %2482 = vmatprep.subr.mxu0 0.0
    %2483 = vmatpush2.msra.mxu0 0.0
    %2484 = vmatprep.subr.mxu0 0.0
    %2485 = vmatpush2.msra.mxu0 0.0
    %2486 = vmatprep.subr.mxu0 0.0
    %2487 = vmatpush2.msra.mxu0 0.0
    %2488 = vmatprep.subr.mxu0 0.0
    %2489 = vmatpush2.msra.mxu0 0.0
    %2490 = vmatprep.subr.mxu0 0.0
    %2491 = vmatpush2.msra.mxu0 0.0
    %2492 = vmatprep.subr.mxu0 0.0
    %2493 = vmatpush2.msra.mxu0 0.0
    %2494 = vmatprep.subr.mxu0 0.0
    %2495 = vmatpush2.msra.mxu0 0.0
    %2496 = vmatprep.subr.mxu0 0.0
    %2497 = vmatpush2.msra.mxu0 0.0
    %2498 = vmatprep.subr.mxu0 0.0
    %2499 = vmatpush2.msra.mxu0 0.0
    %2500 = vmatprep.subr.mxu0 0.0
    %2501 = vmatpush2.msra.mxu0 0.0
    %2502 = vmatprep.subr.mxu0 0.0
    %2503 = vmatpush2.msra.mxu0 0.0
    %2504 = vmatprep.subr.mxu0 0.0
    %2505 = vmatpush2.msra.mxu0 0.0
    %2506 = vmatprep.subr.mxu0 0.0
    %2507 = vmatpush2.msra.mxu0 0.0
    %2508 = vmatprep.mubr.f32.mxu0 0.0
    %2509 = vmatmul.mubr.f32.gmra.mxu0 %v2439
    %v2510 = vpop.f32.mrf.mxu0
    %v2511 = vadd.f32 0.0, %v2510
    %v2512 = vpop.f32.mrf.mxu0
    %v2513 = vadd.f32 0.0, %v2512
    %2514 = vdwg.mxu0
    %2515 = vmatprep.subr.mxu0 %v1435
    %2516 = vmatpush1.msra.mxu0 %v1434
    %2517 = vmatprep.subr.mxu0 %v1431
    %2518 = vmatpush1.msra.mxu0 %v1430
    %2519 = vmatprep.subr.mxu0 %v1427
    %2520 = vmatpush1.msra.mxu0 %v1426
    %2521 = vmatprep.subr.mxu0 %v1423
    %2522 = vmatpush1.msra.mxu0 %v1422
    %2523 = vmatprep.subr.mxu0 %v1419
    %2524 = vmatpush1.msra.mxu0 %v1418
    %2525 = vmatprep.subr.mxu0 %v1415
    %2526 = vmatpush1.msra.mxu0 %v1414
    %2527 = vmatprep.subr.mxu0 %v1411
    %2528 = vmatpush1.msra.mxu0 %v1410
    %2529 = vmatprep.subr.mxu0 %v1407
    %2530 = vmatpush1.msra.mxu0 %v1406
    %2531 = vmatprep.subr.mxu0 %v1403
    %2532 = vmatpush1.msra.mxu0 %v1402
    %2533 = vmatprep.subr.mxu0 %v1399
    %2534 = vmatpush1.msra.mxu0 %v1398
    %2535 = vmatprep.subr.mxu0 %v1395
    %2536 = vmatpush1.msra.mxu0 %v1394
    %2537 = vmatprep.subr.mxu0 %v1391
    %2538 = vmatpush1.msra.mxu0 %v1390
    %2539 = vmatprep.subr.mxu0 %v1387
    %2540 = vmatpush1.msra.mxu0 %v1386
    %2541 = vmatprep.subr.mxu0 %v1383
    %2542 = vmatpush1.msra.mxu0 %v1382
    %2543 = vmatprep.subr.mxu0 %v1379
    %2544 = vmatpush1.msra.mxu0 %v1378
    %2545 = vmatprep.subr.mxu0 %v1375
    %2546 = vmatpush1.msra.mxu0 %v1374
    %2547 = vmatprep.subr.mxu0 0.0
    %2548 = vmatpush2.msra.mxu0 0.0
    %2549 = vmatprep.subr.mxu0 0.0
    %2550 = vmatpush2.msra.mxu0 0.0
    %2551 = vmatprep.subr.mxu0 0.0
    %2552 = vmatpush2.msra.mxu0 0.0
    %2553 = vmatprep.subr.mxu0 0.0
    %2554 = vmatpush2.msra.mxu0 0.0
    %2555 = vmatprep.subr.mxu0 0.0
    %2556 = vmatpush2.msra.mxu0 0.0
    %2557 = vmatprep.subr.mxu0 0.0
    %2558 = vmatpush2.msra.mxu0 0.0
    %2559 = vmatprep.subr.mxu0 0.0
    %2560 = vmatpush2.msra.mxu0 0.0
    %2561 = vmatprep.subr.mxu0 0.0
    %2562 = vmatpush2.msra.mxu0 0.0
    %2563 = vmatprep.subr.mxu0 0.0
    %2564 = vmatpush2.msra.mxu0 0.0
    %2565 = vmatprep.subr.mxu0 0.0
    %2566 = vmatpush2.msra.mxu0 0.0
    %2567 = vmatprep.subr.mxu0 0.0
    %2568 = vmatpush2.msra.mxu0 0.0
    %2569 = vmatprep.subr.mxu0 0.0
    %2570 = vmatpush2.msra.mxu0 0.0
    %2571 = vmatprep.subr.mxu0 0.0
    %2572 = vmatpush2.msra.mxu0 0.0
    %2573 = vmatprep.subr.mxu0 0.0
    %2574 = vmatpush2.msra.mxu0 0.0
    %2575 = vmatprep.subr.mxu0 0.0
    %2576 = vmatpush2.msra.mxu0 0.0
    %2577 = vmatprep.subr.mxu0 0.0
    %2578 = vmatpush2.msra.mxu0 0.0
    %2579 = vmatprep.mubr.f32.mxu0 0.0
    %2580 = vmatmul.mubr.f32.gmra.mxu0 %v2439
    %v2581 = vpop.f32.mrf.mxu0
    %v2582 = vadd.f32 0.0, %v2581
    %v2583 = vpop.f32.mrf.mxu0
    %v2584 = vadd.f32 0.0, %v2583
    %2585 = vdwg.mxu0
    %v2586 = vadd.f32 %v2440, %v2511
    %v2587 = vadd.f32 %v2441, %v2513
    %v2588 = vadd.f32 %v2442, %v2582
    %v2589 = vadd.f32 %v2443, %v2584
    %v2590 = vmul.f32 %v2586, 0.5
    %v2591 = vtanh.pop %v2590
    %v2592 = vmul.f32 %v2591, 0.5
    %v2593 = vadd.f32 %v2592, 0.5
    %v2594 = vmul.f32 %v2587, 0.5
    %v2595 = vtanh.pop %v2594
    %v2596 = vmul.f32 %v2595, 0.5
    %v2597 = vadd.f32 %v2596, 0.5
    %v2598 = vtanh.pop %v2588
    %v2599 = vmul.f32 %v2589, 0.5
    %v2600 = vtanh.pop %v2599
    %v2601 = vmul.f32 %v2600, 0.5
    %v2602 = vadd.f32 %v2601, 0.5
    %v2603 = vmul.f32 %v2597, %v2437
    %v2604 = vmul.f32 %v2593, %v2598
    %v2605 = vadd.f32 %v2603, %v2604
    %v2606 = vtanh.pop %v2605
    %v2607 = vmul.f32 %v2602, %v2606
    %v2608 = vld [vmem:[#allocation2 + $0xe0] sm:$0xff]
    %v2609 = vld [vmem:[#allocation2 + $0xe8] sm:$0xff]
    %v2610 = vld [vmem:[#allocation2 + $0xf0] sm:$0xff]
    %v2611 = vld [vmem:[#allocation2 + $0xf8] sm:$0xff]
    %2612 = vmatprep.subr.mxu0 %v1433
    %2613 = vmatpush1.msra.mxu0 %v1432
    %2614 = vmatprep.subr.mxu0 %v1429
    %2615 = vmatpush1.msra.mxu0 %v1428
    %2616 = vmatprep.subr.mxu0 %v1425
    %2617 = vmatpush1.msra.mxu0 %v1424
    %2618 = vmatprep.subr.mxu0 %v1421
    %2619 = vmatpush1.msra.mxu0 %v1420
    %2620 = vmatprep.subr.mxu0 %v1417
    %2621 = vmatpush1.msra.mxu0 %v1416
    %2622 = vmatprep.subr.mxu0 %v1413
    %2623 = vmatpush1.msra.mxu0 %v1412
    %2624 = vmatprep.subr.mxu0 %v1409
    %2625 = vmatpush1.msra.mxu0 %v1408
    %2626 = vmatprep.subr.mxu0 %v1405
    %2627 = vmatpush1.msra.mxu0 %v1404
    %2628 = vmatprep.subr.mxu0 %v1401
    %2629 = vmatpush1.msra.mxu0 %v1400
    %2630 = vmatprep.subr.mxu0 %v1397
    %2631 = vmatpush1.msra.mxu0 %v1396
    %2632 = vmatprep.subr.mxu0 %v1393
    %2633 = vmatpush1.msra.mxu0 %v1392
    %2634 = vmatprep.subr.mxu0 %v1389
    %2635 = vmatpush1.msra.mxu0 %v1388
    %2636 = vmatprep.subr.mxu0 %v1385
    %2637 = vmatpush1.msra.mxu0 %v1384
    %2638 = vmatprep.subr.mxu0 %v1381
    %2639 = vmatpush1.msra.mxu0 %v1380
    %2640 = vmatprep.subr.mxu0 %v1377
    %2641 = vmatpush1.msra.mxu0 %v1376
    %2642 = vmatprep.subr.mxu0 %v1373
    %2643 = vmatpush1.msra.mxu0 %v1372
    %2644 = vmatprep.subr.mxu0 0.0
    %2645 = vmatpush2.msra.mxu0 0.0
    %2646 = vmatprep.subr.mxu0 0.0
    %2647 = vmatpush2.msra.mxu0 0.0
    %2648 = vmatprep.subr.mxu0 0.0
    %2649 = vmatpush2.msra.mxu0 0.0
    %2650 = vmatprep.subr.mxu0 0.0
    %2651 = vmatpush2.msra.mxu0 0.0
    %2652 = vmatprep.subr.mxu0 0.0
    %2653 = vmatpush2.msra.mxu0 0.0
    %2654 = vmatprep.subr.mxu0 0.0
    %2655 = vmatpush2.msra.mxu0 0.0
    %2656 = vmatprep.subr.mxu0 0.0
    %2657 = vmatpush2.msra.mxu0 0.0
    %2658 = vmatprep.subr.mxu0 0.0
    %2659 = vmatpush2.msra.mxu0 0.0
    %2660 = vmatprep.subr.mxu0 0.0
    %2661 = vmatpush2.msra.mxu0 0.0
    %2662 = vmatprep.subr.mxu0 0.0
    %2663 = vmatpush2.msra.mxu0 0.0
    %2664 = vmatprep.subr.mxu0 0.0
    %2665 = vmatpush2.msra.mxu0 0.0
    %2666 = vmatprep.subr.mxu0 0.0
    %2667 = vmatpush2.msra.mxu0 0.0
    %2668 = vmatprep.subr.mxu0 0.0
    %2669 = vmatpush2.msra.mxu0 0.0
    %2670 = vmatprep.subr.mxu0 0.0
    %2671 = vmatpush2.msra.mxu0 0.0
    %2672 = vmatprep.subr.mxu0 0.0
    %2673 = vmatpush2.msra.mxu0 0.0
    %2674 = vmatprep.subr.mxu0 0.0
    %2675 = vmatpush2.msra.mxu0 0.0
    %2676 = vmatprep.mubr.f32.mxu0 0.0
    %2677 = vmatmul.mubr.f32.gmra.mxu0 %v2607
    %v2678 = vpop.f32.mrf.mxu0
    %v2679 = vadd.f32 0.0, %v2678
    %v2680 = vpop.f32.mrf.mxu0
    %v2681 = vadd.f32 0.0, %v2680
    %2682 = vdwg.mxu0
    %2683 = vmatprep.subr.mxu0 %v1435
    %2684 = vmatpush1.msra.mxu0 %v1434
    %2685 = vmatprep.subr.mxu0 %v1431
    %2686 = vmatpush1.msra.mxu0 %v1430
    %2687 = vmatprep.subr.mxu0 %v1427
    %2688 = vmatpush1.msra.mxu0 %v1426
    %2689 = vmatprep.subr.mxu0 %v1423
    %2690 = vmatpush1.msra.mxu0 %v1422
    %2691 = vmatprep.subr.mxu0 %v1419
    %2692 = vmatpush1.msra.mxu0 %v1418
    %2693 = vmatprep.subr.mxu0 %v1415
    %2694 = vmatpush1.msra.mxu0 %v1414
    %2695 = vmatprep.subr.mxu0 %v1411
    %2696 = vmatpush1.msra.mxu0 %v1410
    %2697 = vmatprep.subr.mxu0 %v1407
    %2698 = vmatpush1.msra.mxu0 %v1406
    %2699 = vmatprep.subr.mxu0 %v1403
    %2700 = vmatpush1.msra.mxu0 %v1402
    %2701 = vmatprep.subr.mxu0 %v1399
    %2702 = vmatpush1.msra.mxu0 %v1398
    %2703 = vmatprep.subr.mxu0 %v1395
    %2704 = vmatpush1.msra.mxu0 %v1394
    %2705 = vmatprep.subr.mxu0 %v1391
    %2706 = vmatpush1.msra.mxu0 %v1390
    %2707 = vmatprep.subr.mxu0 %v1387
    %2708 = vmatpush1.msra.mxu0 %v1386
    %2709 = vmatprep.subr.mxu0 %v1383
    %2710 = vmatpush1.msra.mxu0 %v1382
    %2711 = vmatprep.subr.mxu0 %v1379
    %2712 = vmatpush1.msra.mxu0 %v1378
    %2713 = vmatprep.subr.mxu0 %v1375
    %2714 = vmatpush1.msra.mxu0 %v1374
    %2715 = vmatprep.subr.mxu0 0.0
    %2716 = vmatpush2.msra.mxu0 0.0
    %2717 = vmatprep.subr.mxu0 0.0
    %2718 = vmatpush2.msra.mxu0 0.0
    %2719 = vmatprep.subr.mxu0 0.0
    %2720 = vmatpush2.msra.mxu0 0.0
    %2721 = vmatprep.subr.mxu0 0.0
    %2722 = vmatpush2.msra.mxu0 0.0
    %2723 = vmatprep.subr.mxu0 0.0
    %2724 = vmatpush2.msra.mxu0 0.0
    %2725 = vmatprep.subr.mxu0 0.0
    %2726 = vmatpush2.msra.mxu0 0.0
    %2727 = vmatprep.subr.mxu0 0.0
    %2728 = vmatpush2.msra.mxu0 0.0
    %2729 = vmatprep.subr.mxu0 0.0
    %2730 = vmatpush2.msra.mxu0 0.0
    %2731 = vmatprep.subr.mxu0 0.0
    %2732 = vmatpush2.msra.mxu0 0.0
    %2733 = vmatprep.subr.mxu0 0.0
    %2734 = vmatpush2.msra.mxu0 0.0
    %2735 = vmatprep.subr.mxu0 0.0
    %2736 = vmatpush2.msra.mxu0 0.0
    %2737 = vmatprep.subr.mxu0 0.0
    %2738 = vmatpush2.msra.mxu0 0.0
    %2739 = vmatprep.subr.mxu0 0.0
    %2740 = vmatpush2.msra.mxu0 0.0
    %2741 = vmatprep.subr.mxu0 0.0
    %2742 = vmatpush2.msra.mxu0 0.0
    %2743 = vmatprep.subr.mxu0 0.0
    %2744 = vmatpush2.msra.mxu0 0.0
    %2745 = vmatprep.subr.mxu0 0.0
    %2746 = vmatpush2.msra.mxu0 0.0
    %2747 = vmatprep.mubr.f32.mxu0 0.0
    %2748 = vmatmul.mubr.f32.gmra.mxu0 %v2607
    %v2749 = vpop.f32.mrf.mxu0
    %v2750 = vadd.f32 0.0, %v2749
    %v2751 = vpop.f32.mrf.mxu0
    %v2752 = vadd.f32 0.0, %v2751
    %2753 = vdwg.mxu0
    %v2754 = vadd.f32 %v2608, %v2679
    %v2755 = vadd.f32 %v2609, %v2681
    %v2756 = vadd.f32 %v2610, %v2750
    %v2757 = vadd.f32 %v2611, %v2752
    %v2758 = vmul.f32 %v2754, 0.5
    %v2759 = vtanh.pop %v2758
    %v2760 = vmul.f32 %v2759, 0.5
    %v2761 = vadd.f32 %v2760, 0.5
    %v2762 = vmul.f32 %v2755, 0.5
    %v2763 = vtanh.pop %v2762
    %v2764 = vmul.f32 %v2763, 0.5
    %v2765 = vadd.f32 %v2764, 0.5
    %v2766 = vtanh.pop %v2756
    %v2767 = vmul.f32 %v2757, 0.5
    %v2768 = vtanh.pop %v2767
    %v2769 = vmul.f32 %v2768, 0.5
    %v2770 = vadd.f32 %v2769, 0.5
    %v2771 = vmul.f32 %v2765, %v2605
    %v2772 = vmul.f32 %v2761, %v2766
    %v2773 = vadd.f32 %v2771, %v2772
    %v2774 = vtanh.pop %v2773
    %v2775 = vmul.f32 %v2770, %v2774
    %v2776 = vld [vmem:[#allocation2 + $0x100] sm:$0xff]
    %v2777 = vld [vmem:[#allocation2 + $0x108] sm:$0xff]
    %v2778 = vld [vmem:[#allocation2 + $0x110] sm:$0xff]
    %v2779 = vld [vmem:[#allocation2 + $0x118] sm:$0xff]
    %2780 = vmatprep.subr.mxu0 %v1433
    %2781 = vmatpush1.msra.mxu0 %v1432
    %2782 = vmatprep.subr.mxu0 %v1429
    %2783 = vmatpush1.msra.mxu0 %v1428
    %2784 = vmatprep.subr.mxu0 %v1425
    %2785 = vmatpush1.msra.mxu0 %v1424
    %2786 = vmatprep.subr.mxu0 %v1421
    %2787 = vmatpush1.msra.mxu0 %v1420
    %2788 = vmatprep.subr.mxu0 %v1417
    %2789 = vmatpush1.msra.mxu0 %v1416
    %2790 = vmatprep.subr.mxu0 %v1413
    %2791 = vmatpush1.msra.mxu0 %v1412
    %2792 = vmatprep.subr.mxu0 %v1409
    %2793 = vmatpush1.msra.mxu0 %v1408
    %2794 = vmatprep.subr.mxu0 %v1405
    %2795 = vmatpush1.msra.mxu0 %v1404
    %2796 = vmatprep.subr.mxu0 %v1401
    %2797 = vmatpush1.msra.mxu0 %v1400
    %2798 = vmatprep.subr.mxu0 %v1397
    %2799 = vmatpush1.msra.mxu0 %v1396
    %2800 = vmatprep.subr.mxu0 %v1393
    %2801 = vmatpush1.msra.mxu0 %v1392
    %2802 = vmatprep.subr.mxu0 %v1389
    %2803 = vmatpush1.msra.mxu0 %v1388
    %2804 = vmatprep.subr.mxu0 %v1385
    %2805 = vmatpush1.msra.mxu0 %v1384
    %2806 = vmatprep.subr.mxu0 %v1381
    %2807 = vmatpush1.msra.mxu0 %v1380
    %2808 = vmatprep.subr.mxu0 %v1377
    %2809 = vmatpush1.msra.mxu0 %v1376
    %2810 = vmatprep.subr.mxu0 %v1373
    %2811 = vmatpush1.msra.mxu0 %v1372
    %2812 = vmatprep.subr.mxu0 0.0
    %2813 = vmatpush2.msra.mxu0 0.0
    %2814 = vmatprep.subr.mxu0 0.0
    %2815 = vmatpush2.msra.mxu0 0.0
    %2816 = vmatprep.subr.mxu0 0.0
    %2817 = vmatpush2.msra.mxu0 0.0
    %2818 = vmatprep.subr.mxu0 0.0
    %2819 = vmatpush2.msra.mxu0 0.0
    %2820 = vmatprep.subr.mxu0 0.0
    %2821 = vmatpush2.msra.mxu0 0.0
    %2822 = vmatprep.subr.mxu0 0.0
    %2823 = vmatpush2.msra.mxu0 0.0
    %2824 = vmatprep.subr.mxu0 0.0
    %2825 = vmatpush2.msra.mxu0 0.0
    %2826 = vmatprep.subr.mxu0 0.0
    %2827 = vmatpush2.msra.mxu0 0.0
    %2828 = vmatprep.subr.mxu0 0.0
    %2829 = vmatpush2.msra.mxu0 0.0
    %2830 = vmatprep.subr.mxu0 0.0
    %2831 = vmatpush2.msra.mxu0 0.0
    %2832 = vmatprep.subr.mxu0 0.0
    %2833 = vmatpush2.msra.mxu0 0.0
    %2834 = vmatprep.subr.mxu0 0.0
    %2835 = vmatpush2.msra.mxu0 0.0
    %2836 = vmatprep.subr.mxu0 0.0
    %2837 = vmatpush2.msra.mxu0 0.0
    %2838 = vmatprep.subr.mxu0 0.0
    %2839 = vmatpush2.msra.mxu0 0.0
    %2840 = vmatprep.subr.mxu0 0.0
    %2841 = vmatpush2.msra.mxu0 0.0
    %2842 = vmatprep.subr.mxu0 0.0
    %2843 = vmatpush2.msra.mxu0 0.0
    %2844 = vmatprep.mubr.f32.mxu0 0.0
    %2845 = vmatmul.mubr.f32.gmra.mxu0 %v2775
    %v2846 = vpop.f32.mrf.mxu0
    %v2847 = vadd.f32 0.0, %v2846
    %v2848 = vpop.f32.mrf.mxu0
    %v2849 = vadd.f32 0.0, %v2848
    %2850 = vdwg.mxu0
    %2851 = vmatprep.subr.mxu0 %v1435
    %2852 = vmatpush1.msra.mxu0 %v1434
    %2853 = vmatprep.subr.mxu0 %v1431
    %2854 = vmatpush1.msra.mxu0 %v1430
    %2855 = vmatprep.subr.mxu0 %v1427
    %2856 = vmatpush1.msra.mxu0 %v1426
    %2857 = vmatprep.subr.mxu0 %v1423
    %2858 = vmatpush1.msra.mxu0 %v1422
    %2859 = vmatprep.subr.mxu0 %v1419
    %2860 = vmatpush1.msra.mxu0 %v1418
    %2861 = vmatprep.subr.mxu0 %v1415
    %2862 = vmatpush1.msra.mxu0 %v1414
    %2863 = vmatprep.subr.mxu0 %v1411
    %2864 = vmatpush1.msra.mxu0 %v1410
    %2865 = vmatprep.subr.mxu0 %v1407
    %2866 = vmatpush1.msra.mxu0 %v1406
    %2867 = vmatprep.subr.mxu0 %v1403
    %2868 = vmatpush1.msra.mxu0 %v1402
    %2869 = vmatprep.subr.mxu0 %v1399
    %2870 = vmatpush1.msra.mxu0 %v1398
    %2871 = vmatprep.subr.mxu0 %v1395
    %2872 = vmatpush1.msra.mxu0 %v1394
    %2873 = vmatprep.subr.mxu0 %v1391
    %2874 = vmatpush1.msra.mxu0 %v1390
    %2875 = vmatprep.subr.mxu0 %v1387
    %2876 = vmatpush1.msra.mxu0 %v1386
    %2877 = vmatprep.subr.mxu0 %v1383
    %2878 = vmatpush1.msra.mxu0 %v1382
    %2879 = vmatprep.subr.mxu0 %v1379
    %2880 = vmatpush1.msra.mxu0 %v1378
    %2881 = vmatprep.subr.mxu0 %v1375
    %2882 = vmatpush1.msra.mxu0 %v1374
    %2883 = vmatprep.subr.mxu0 0.0
    %2884 = vmatpush2.msra.mxu0 0.0
    %2885 = vmatprep.subr.mxu0 0.0
    %2886 = vmatpush2.msra.mxu0 0.0
    %2887 = vmatprep.subr.mxu0 0.0
    %2888 = vmatpush2.msra.mxu0 0.0
    %2889 = vmatprep.subr.mxu0 0.0
    %2890 = vmatpush2.msra.mxu0 0.0
    %2891 = vmatprep.subr.mxu0 0.0
    %2892 = vmatpush2.msra.mxu0 0.0
    %2893 = vmatprep.subr.mxu0 0.0
    %2894 = vmatpush2.msra.mxu0 0.0
    %2895 = vmatprep.subr.mxu0 0.0
    %2896 = vmatpush2.msra.mxu0 0.0
    %2897 = vmatprep.subr.mxu0 0.0
    %2898 = vmatpush2.msra.mxu0 0.0
    %2899 = vmatprep.subr.mxu0 0.0
    %2900 = vmatpush2.msra.mxu0 0.0
    %2901 = vmatprep.subr.mxu0 0.0
    %2902 = vmatpush2.msra.mxu0 0.0
    %2903 = vmatprep.subr.mxu0 0.0
    %2904 = vmatpush2.msra.mxu0 0.0
    %2905 = vmatprep.subr.mxu0 0.0
    %2906 = vmatpush2.msra.mxu0 0.0
    %2907 = vmatprep.subr.mxu0 0.0
    %2908 = vmatpush2.msra.mxu0 0.0
    %2909 = vmatprep.subr.mxu0 0.0
    %2910 = vmatpush2.msra.mxu0 0.0
    %2911 = vmatprep.subr.mxu0 0.0
    %2912 = vmatpush2.msra.mxu0 0.0
    %2913 = vmatprep.subr.mxu0 0.0
    %2914 = vmatpush2.msra.mxu0 0.0
    %2915 = vmatprep.mubr.f32.mxu0 0.0
    %2916 = vmatmul.mubr.f32.gmra.mxu0 %v2775
    %v2917 = vpop.f32.mrf.mxu0
    %v2918 = vadd.f32 0.0, %v2917
    %v2919 = vpop.f32.mrf.mxu0
    %v2920 = vadd.f32 0.0, %v2919
    %2921 = vdwg.mxu0
    %v2922 = vadd.f32 %v2776, %v2847
    %v2923 = vadd.f32 %v2777, %v2849
    %v2924 = vadd.f32 %v2778, %v2918
    %v2925 = vadd.f32 %v2779, %v2920
    %v2926 = vmul.f32 %v2922, 0.5
    %v2927 = vtanh.pop %v2926
    %v2928 = vmul.f32 %v2927, 0.5
    %v2929 = vadd.f32 %v2928, 0.5
    %v2930 = vmul.f32 %v2923, 0.5
    %v2931 = vtanh.pop %v2930
    %v2932 = vmul.f32 %v2931, 0.5
    %v2933 = vadd.f32 %v2932, 0.5
    %v2934 = vtanh.pop %v2924
    %v2935 = vmul.f32 %v2925, 0.5
    %v2936 = vtanh.pop %v2935
    %v2937 = vmul.f32 %v2936, 0.5
    %v2938 = vadd.f32 %v2937, 0.5
    %v2939 = vmul.f32 %v2933, %v2773
    %v2940 = vmul.f32 %v2929, %v2934
    %v2941 = vadd.f32 %v2939, %v2940
    %v2942 = vtanh.pop %v2941
    %v2943 = vmul.f32 %v2938, %v2942
    %v2944 = vld [vmem:[#allocation2 + $0x120] sm:$0xff]
    %v2945 = vld [vmem:[#allocation2 + $0x128] sm:$0xff]
    %v2946 = vld [vmem:[#allocation2 + $0x130] sm:$0xff]
    %v2947 = vld [vmem:[#allocation2 + $0x138] sm:$0xff]
    %2948 = vmatprep.subr.mxu0 %v1433
    %2949 = vmatpush1.msra.mxu0 %v1432
    %2950 = vmatprep.subr.mxu0 %v1429
    %2951 = vmatpush1.msra.mxu0 %v1428
    %2952 = vmatprep.subr.mxu0 %v1425
    %2953 = vmatpush1.msra.mxu0 %v1424
    %2954 = vmatprep.subr.mxu0 %v1421
    %2955 = vmatpush1.msra.mxu0 %v1420
    %2956 = vmatprep.subr.mxu0 %v1417
    %2957 = vmatpush1.msra.mxu0 %v1416
    %2958 = vmatprep.subr.mxu0 %v1413
    %2959 = vmatpush1.msra.mxu0 %v1412
    %2960 = vmatprep.subr.mxu0 %v1409
    %2961 = vmatpush1.msra.mxu0 %v1408
    %2962 = vmatprep.subr.mxu0 %v1405
    %2963 = vmatpush1.msra.mxu0 %v1404
    %2964 = vmatprep.subr.mxu0 %v1401
    %2965 = vmatpush1.msra.mxu0 %v1400
    %2966 = vmatprep.subr.mxu0 %v1397
    %2967 = vmatpush1.msra.mxu0 %v1396
    %2968 = vmatprep.subr.mxu0 %v1393
    %2969 = vmatpush1.msra.mxu0 %v1392
    %2970 = vmatprep.subr.mxu0 %v1389
    %2971 = vmatpush1.msra.mxu0 %v1388
    %2972 = vmatprep.subr.mxu0 %v1385
    %2973 = vmatpush1.msra.mxu0 %v1384
    %2974 = vmatprep.subr.mxu0 %v1381
    %2975 = vmatpush1.msra.mxu0 %v1380
    %2976 = vmatprep.subr.mxu0 %v1377
    %2977 = vmatpush1.msra.mxu0 %v1376
    %2978 = vmatprep.subr.mxu0 %v1373
    %2979 = vmatpush1.msra.mxu0 %v1372
    %2980 = vmatprep.subr.mxu0 0.0
    %2981 = vmatpush2.msra.mxu0 0.0
    %2982 = vmatprep.subr.mxu0 0.0
    %2983 = vmatpush2.msra.mxu0 0.0
    %2984 = vmatprep.subr.mxu0 0.0
    %2985 = vmatpush2.msra.mxu0 0.0
    %2986 = vmatprep.subr.mxu0 0.0
    %2987 = vmatpush2.msra.mxu0 0.0
    %2988 = vmatprep.subr.mxu0 0.0
    %2989 = vmatpush2.msra.mxu0 0.0
    %2990 = vmatprep.subr.mxu0 0.0
    %2991 = vmatpush2.msra.mxu0 0.0
    %2992 = vmatprep.subr.mxu0 0.0
    %2993 = vmatpush2.msra.mxu0 0.0
    %2994 = vmatprep.subr.mxu0 0.0
    %2995 = vmatpush2.msra.mxu0 0.0
    %2996 = vmatprep.subr.mxu0 0.0
    %2997 = vmatpush2.msra.mxu0 0.0
    %2998 = vmatprep.subr.mxu0 0.0
    %2999 = vmatpush2.msra.mxu0 0.0
    %3000 = vmatprep.subr.mxu0 0.0
    %3001 = vmatpush2.msra.mxu0 0.0
    %3002 = vmatprep.subr.mxu0 0.0
    %3003 = vmatpush2.msra.mxu0 0.0
    %3004 = vmatprep.subr.mxu0 0.0
    %3005 = vmatpush2.msra.mxu0 0.0
    %3006 = vmatprep.subr.mxu0 0.0
    %3007 = vmatpush2.msra.mxu0 0.0
    %3008 = vmatprep.subr.mxu0 0.0
    %3009 = vmatpush2.msra.mxu0 0.0
    %3010 = vmatprep.subr.mxu0 0.0
    %3011 = vmatpush2.msra.mxu0 0.0
    %3012 = vmatprep.mubr.f32.mxu0 0.0
    %3013 = vmatmul.mubr.f32.gmra.mxu0 %v2943
    %v3014 = vpop.f32.mrf.mxu0
    %v3015 = vadd.f32 0.0, %v3014
    %v3016 = vpop.f32.mrf.mxu0
    %v3017 = vadd.f32 0.0, %v3016
    %3018 = vdwg.mxu0
    %3019 = vmatprep.subr.mxu0 %v1435
    %3020 = vmatpush1.msra.mxu0 %v1434
    %3021 = vmatprep.subr.mxu0 %v1431
    %3022 = vmatpush1.msra.mxu0 %v1430
    %3023 = vmatprep.subr.mxu0 %v1427
    %3024 = vmatpush1.msra.mxu0 %v1426
    %3025 = vmatprep.subr.mxu0 %v1423
    %3026 = vmatpush1.msra.mxu0 %v1422
    %3027 = vmatprep.subr.mxu0 %v1419
    %3028 = vmatpush1.msra.mxu0 %v1418
    %3029 = vmatprep.subr.mxu0 %v1415
    %3030 = vmatpush1.msra.mxu0 %v1414
    %3031 = vmatprep.subr.mxu0 %v1411
    %3032 = vmatpush1.msra.mxu0 %v1410
    %3033 = vmatprep.subr.mxu0 %v1407
    %3034 = vmatpush1.msra.mxu0 %v1406
    %3035 = vmatprep.subr.mxu0 %v1403
    %3036 = vmatpush1.msra.mxu0 %v1402
    %3037 = vmatprep.subr.mxu0 %v1399
    %3038 = vmatpush1.msra.mxu0 %v1398
    %3039 = vmatprep.subr.mxu0 %v1395
    %3040 = vmatpush1.msra.mxu0 %v1394
    %3041 = vmatprep.subr.mxu0 %v1391
    %3042 = vmatpush1.msra.mxu0 %v1390
    %3043 = vmatprep.subr.mxu0 %v1387
    %3044 = vmatpush1.msra.mxu0 %v1386
    %3045 = vmatprep.subr.mxu0 %v1383
    %3046 = vmatpush1.msra.mxu0 %v1382
    %3047 = vmatprep.subr.mxu0 %v1379
    %3048 = vmatpush1.msra.mxu0 %v1378
    %3049 = vmatprep.subr.mxu0 %v1375
    %3050 = vmatpush1.msra.mxu0 %v1374
    %3051 = vmatprep.subr.mxu0 0.0
    %3052 = vmatpush2.msra.mxu0 0.0
    %3053 = vmatprep.subr.mxu0 0.0
    %3054 = vmatpush2.msra.mxu0 0.0
    %3055 = vmatprep.subr.mxu0 0.0
    %3056 = vmatpush2.msra.mxu0 0.0
    %3057 = vmatprep.subr.mxu0 0.0
    %3058 = vmatpush2.msra.mxu0 0.0
    %3059 = vmatprep.subr.mxu0 0.0
    %3060 = vmatpush2.msra.mxu0 0.0
    %3061 = vmatprep.subr.mxu0 0.0
    %3062 = vmatpush2.msra.mxu0 0.0
    %3063 = vmatprep.subr.mxu0 0.0
    %3064 = vmatpush2.msra.mxu0 0.0
    %3065 = vmatprep.subr.mxu0 0.0
    %3066 = vmatpush2.msra.mxu0 0.0
    %3067 = vmatprep.subr.mxu0 0.0
    %3068 = vmatpush2.msra.mxu0 0.0
    %3069 = vmatprep.subr.mxu0 0.0
    %3070 = vmatpush2.msra.mxu0 0.0
    %3071 = vmatprep.subr.mxu0 0.0
    %3072 = vmatpush2.msra.mxu0 0.0
    %3073 = vmatprep.subr.mxu0 0.0
    %3074 = vmatpush2.msra.mxu0 0.0
    %3075 = vmatprep.subr.mxu0 0.0
    %3076 = vmatpush2.msra.mxu0 0.0
    %3077 = vmatprep.subr.mxu0 0.0
    %3078 = vmatpush2.msra.mxu0 0.0
    %3079 = vmatprep.subr.mxu0 0.0
    %3080 = vmatpush2.msra.mxu0 0.0
    %3081 = vmatprep.subr.mxu0 0.0
    %3082 = vmatpush2.msra.mxu0 0.0
    %3083 = vmatprep.mubr.f32.mxu0 0.0
    %3084 = vmatmul.mubr.f32.gmra.mxu0 %v2943
    %v3085 = vpop.f32.mrf.mxu0
    %v3086 = vadd.f32 0.0, %v3085
    %v3087 = vpop.f32.mrf.mxu0
    %v3088 = vadd.f32 0.0, %v3087
    %3089 = vdwg.mxu0
    %v3090 = vadd.f32 %v2944, %v3015
    %v3091 = vadd.f32 %v2945, %v3017
    %v3092 = vadd.f32 %v2946, %v3086
    %v3093 = vadd.f32 %v2947, %v3088
    %v3094 = vmul.f32 %v3090, 0.5
    %v3095 = vtanh.pop %v3094
    %v3096 = vmul.f32 %v3095, 0.5
    %v3097 = vadd.f32 %v3096, 0.5
    %v3098 = vmul.f32 %v3091, 0.5
    %v3099 = vtanh.pop %v3098
    %v3100 = vmul.f32 %v3099, 0.5
    %v3101 = vadd.f32 %v3100, 0.5
    %v3102 = vtanh.pop %v3092
    %v3103 = vmul.f32 %v3093, 0.5
    %v3104 = vtanh.pop %v3103
    %v3105 = vmul.f32 %v3104, 0.5
    %v3106 = vadd.f32 %v3105, 0.5
    %v3107 = vmul.f32 %v3101, %v2941
    %v3108 = vmul.f32 %v3097, %v3102
    %v3109 = vadd.f32 %v3107, %v3108
    %v3110 = vtanh.pop %v3109
    %v3111 = vmul.f32 %v3106, %v3110
    %v3112 = vld [vmem:[#allocation2 + $0x140] sm:$0xff]
    %v3113 = vld [vmem:[#allocation2 + $0x148] sm:$0xff]
    %v3114 = vld [vmem:[#allocation2 + $0x150] sm:$0xff]
    %v3115 = vld [vmem:[#allocation2 + $0x158] sm:$0xff]
    %3116 = vmatprep.subr.mxu0 %v1433
    %3117 = vmatpush1.msra.mxu0 %v1432
    %3118 = vmatprep.subr.mxu0 %v1429
    %3119 = vmatpush1.msra.mxu0 %v1428
    %3120 = vmatprep.subr.mxu0 %v1425
    %3121 = vmatpush1.msra.mxu0 %v1424
    %3122 = vmatprep.subr.mxu0 %v1421
    %3123 = vmatpush1.msra.mxu0 %v1420
    %3124 = vmatprep.subr.mxu0 %v1417
    %3125 = vmatpush1.msra.mxu0 %v1416
    %3126 = vmatprep.subr.mxu0 %v1413
    %3127 = vmatpush1.msra.mxu0 %v1412
    %3128 = vmatprep.subr.mxu0 %v1409
    %3129 = vmatpush1.msra.mxu0 %v1408
    %3130 = vmatprep.subr.mxu0 %v1405
    %3131 = vmatpush1.msra.mxu0 %v1404
    %3132 = vmatprep.subr.mxu0 %v1401
    %3133 = vmatpush1.msra.mxu0 %v1400
    %3134 = vmatprep.subr.mxu0 %v1397
    %3135 = vmatpush1.msra.mxu0 %v1396
    %3136 = vmatprep.subr.mxu0 %v1393
    %3137 = vmatpush1.msra.mxu0 %v1392
    %3138 = vmatprep.subr.mxu0 %v1389
    %3139 = vmatpush1.msra.mxu0 %v1388
    %3140 = vmatprep.subr.mxu0 %v1385
    %3141 = vmatpush1.msra.mxu0 %v1384
    %3142 = vmatprep.subr.mxu0 %v1381
    %3143 = vmatpush1.msra.mxu0 %v1380
    %3144 = vmatprep.subr.mxu0 %v1377
    %3145 = vmatpush1.msra.mxu0 %v1376
    %3146 = vmatprep.subr.mxu0 %v1373
    %3147 = vmatpush1.msra.mxu0 %v1372
    %3148 = vmatprep.subr.mxu0 0.0
    %3149 = vmatpush2.msra.mxu0 0.0
    %3150 = vmatprep.subr.mxu0 0.0
    %3151 = vmatpush2.msra.mxu0 0.0
    %3152 = vmatprep.subr.mxu0 0.0
    %3153 = vmatpush2.msra.mxu0 0.0
    %3154 = vmatprep.subr.mxu0 0.0
    %3155 = vmatpush2.msra.mxu0 0.0
    %3156 = vmatprep.subr.mxu0 0.0
    %3157 = vmatpush2.msra.mxu0 0.0
    %3158 = vmatprep.subr.mxu0 0.0
    %3159 = vmatpush2.msra.mxu0 0.0
    %3160 = vmatprep.subr.mxu0 0.0
    %3161 = vmatpush2.msra.mxu0 0.0
    %3162 = vmatprep.subr.mxu0 0.0
    %3163 = vmatpush2.msra.mxu0 0.0
    %3164 = vmatprep.subr.mxu0 0.0
    %3165 = vmatpush2.msra.mxu0 0.0
    %3166 = vmatprep.subr.mxu0 0.0
    %3167 = vmatpush2.msra.mxu0 0.0
    %3168 = vmatprep.subr.mxu0 0.0
    %3169 = vmatpush2.msra.mxu0 0.0
    %3170 = vmatprep.subr.mxu0 0.0
    %3171 = vmatpush2.msra.mxu0 0.0
    %3172 = vmatprep.subr.mxu0 0.0
    %3173 = vmatpush2.msra.mxu0 0.0
    %3174 = vmatprep.subr.mxu0 0.0
    %3175 = vmatpush2.msra.mxu0 0.0
    %3176 = vmatprep.subr.mxu0 0.0
    %3177 = vmatpush2.msra.mxu0 0.0
    %3178 = vmatprep.subr.mxu0 0.0
    %3179 = vmatpush2.msra.mxu0 0.0
    %3180 = vmatprep.mubr.f32.mxu0 0.0
    %3181 = vmatmul.mubr.f32.gmra.mxu0 %v3111
    %v3182 = vpop.f32.mrf.mxu0
    %v3183 = vadd.f32 0.0, %v3182
    %v3184 = vpop.f32.mrf.mxu0
    %v3185 = vadd.f32 0.0, %v3184
    %3186 = vdwg.mxu0
    %3187 = vmatprep.subr.mxu0 %v1435
    %3188 = vmatpush1.msra.mxu0 %v1434
    %3189 = vmatprep.subr.mxu0 %v1431
    %3190 = vmatpush1.msra.mxu0 %v1430
    %3191 = vmatprep.subr.mxu0 %v1427
    %3192 = vmatpush1.msra.mxu0 %v1426
    %3193 = vmatprep.subr.mxu0 %v1423
    %3194 = vmatpush1.msra.mxu0 %v1422
    %3195 = vmatprep.subr.mxu0 %v1419
    %3196 = vmatpush1.msra.mxu0 %v1418
    %3197 = vmatprep.subr.mxu0 %v1415
    %3198 = vmatpush1.msra.mxu0 %v1414
    %3199 = vmatprep.subr.mxu0 %v1411
    %3200 = vmatpush1.msra.mxu0 %v1410
    %3201 = vmatprep.subr.mxu0 %v1407
    %3202 = vmatpush1.msra.mxu0 %v1406
    %3203 = vmatprep.subr.mxu0 %v1403
    %3204 = vmatpush1.msra.mxu0 %v1402
    %3205 = vmatprep.subr.mxu0 %v1399
    %3206 = vmatpush1.msra.mxu0 %v1398
    %3207 = vmatprep.subr.mxu0 %v1395
    %3208 = vmatpush1.msra.mxu0 %v1394
    %3209 = vmatprep.subr.mxu0 %v1391
    %3210 = vmatpush1.msra.mxu0 %v1390
    %3211 = vmatprep.subr.mxu0 %v1387
    %3212 = vmatpush1.msra.mxu0 %v1386
    %3213 = vmatprep.subr.mxu0 %v1383
    %3214 = vmatpush1.msra.mxu0 %v1382
    %3215 = vmatprep.subr.mxu0 %v1379
    %3216 = vmatpush1.msra.mxu0 %v1378
    %3217 = vmatprep.subr.mxu0 %v1375
    %3218 = vmatpush1.msra.mxu0 %v1374
    %3219 = vmatprep.subr.mxu0 0.0
    %3220 = vmatpush2.msra.mxu0 0.0
    %3221 = vmatprep.subr.mxu0 0.0
    %3222 = vmatpush2.msra.mxu0 0.0
    %3223 = vmatprep.subr.mxu0 0.0
    %3224 = vmatpush2.msra.mxu0 0.0
    %3225 = vmatprep.subr.mxu0 0.0
    %3226 = vmatpush2.msra.mxu0 0.0
    %3227 = vmatprep.subr.mxu0 0.0
    %3228 = vmatpush2.msra.mxu0 0.0
    %3229 = vmatprep.subr.mxu0 0.0
    %3230 = vmatpush2.msra.mxu0 0.0
    %3231 = vmatprep.subr.mxu0 0.0
    %3232 = vmatpush2.msra.mxu0 0.0
    %3233 = vmatprep.subr.mxu0 0.0
    %3234 = vmatpush2.msra.mxu0 0.0
    %3235 = vmatprep.subr.mxu0 0.0
    %3236 = vmatpush2.msra.mxu0 0.0
    %3237 = vmatprep.subr.mxu0 0.0
    %3238 = vmatpush2.msra.mxu0 0.0
    %3239 = vmatprep.subr.mxu0 0.0
    %3240 = vmatpush2.msra.mxu0 0.0
    %3241 = vmatprep.subr.mxu0 0.0
    %3242 = vmatpush2.msra.mxu0 0.0
    %3243 = vmatprep.subr.mxu0 0.0
    %3244 = vmatpush2.msra.mxu0 0.0
    %3245 = vmatprep.subr.mxu0 0.0
    %3246 = vmatpush2.msra.mxu0 0.0
    %3247 = vmatprep.subr.mxu0 0.0
    %3248 = vmatpush2.msra.mxu0 0.0
    %3249 = vmatprep.subr.mxu0 0.0
    %3250 = vmatpush2.msra.mxu0 0.0
    %3251 = vmatprep.mubr.f32.mxu0 0.0
    %3252 = vmatmul.mubr.f32.gmra.mxu0 %v3111
    %v3253 = vpop.f32.mrf.mxu0
    %v3254 = vadd.f32 0.0, %v3253
    %v3255 = vpop.f32.mrf.mxu0
    %v3256 = vadd.f32 0.0, %v3255
    %3257 = vdwg.mxu0
    %v3258 = vadd.f32 %v3112, %v3183
    %v3259 = vadd.f32 %v3113, %v3185
    %v3260 = vadd.f32 %v3114, %v3254
    %v3261 = vadd.f32 %v3115, %v3256
    %v3262 = vmul.f32 %v3258, 0.5
    %v3263 = vtanh.pop %v3262
    %v3264 = vmul.f32 %v3263, 0.5
    %v3265 = vadd.f32 %v3264, 0.5
    %v3266 = vmul.f32 %v3259, 0.5
    %v3267 = vtanh.pop %v3266
    %v3268 = vmul.f32 %v3267, 0.5
    %v3269 = vadd.f32 %v3268, 0.5
    %v3270 = vtanh.pop %v3260
    %v3271 = vmul.f32 %v3261, 0.5
    %v3272 = vtanh.pop %v3271
    %v3273 = vmul.f32 %v3272, 0.5
    %v3274 = vadd.f32 %v3273, 0.5
    %v3275 = vmul.f32 %v3269, %v3109
    %v3276 = vmul.f32 %v3265, %v3270
    %v3277 = vadd.f32 %v3275, %v3276
    %v3278 = vtanh.pop %v3277
    %v3279 = vmul.f32 %v3274, %v3278
    %v3280 = vld [vmem:[#allocation2 + $0x160] sm:$0xff]
    %v3281 = vld [vmem:[#allocation2 + $0x168] sm:$0xff]
    %v3282 = vld [vmem:[#allocation2 + $0x170] sm:$0xff]
    %v3283 = vld [vmem:[#allocation2 + $0x178] sm:$0xff]
    %3284 = vmatprep.subr.mxu0 %v1433
    %3285 = vmatpush1.msra.mxu0 %v1432
    %3286 = vmatprep.subr.mxu0 %v1429
    %3287 = vmatpush1.msra.mxu0 %v1428
    %3288 = vmatprep.subr.mxu0 %v1425
    %3289 = vmatpush1.msra.mxu0 %v1424
    %3290 = vmatprep.subr.mxu0 %v1421
    %3291 = vmatpush1.msra.mxu0 %v1420
    %3292 = vmatprep.subr.mxu0 %v1417
    %3293 = vmatpush1.msra.mxu0 %v1416
    %3294 = vmatprep.subr.mxu0 %v1413
    %3295 = vmatpush1.msra.mxu0 %v1412
    %3296 = vmatprep.subr.mxu0 %v1409
    %3297 = vmatpush1.msra.mxu0 %v1408
    %3298 = vmatprep.subr.mxu0 %v1405
    %3299 = vmatpush1.msra.mxu0 %v1404
    %3300 = vmatprep.subr.mxu0 %v1401
    %3301 = vmatpush1.msra.mxu0 %v1400
    %3302 = vmatprep.subr.mxu0 %v1397
    %3303 = vmatpush1.msra.mxu0 %v1396
    %3304 = vmatprep.subr.mxu0 %v1393
    %3305 = vmatpush1.msra.mxu0 %v1392
    %3306 = vmatprep.subr.mxu0 %v1389
    %3307 = vmatpush1.msra.mxu0 %v1388
    %3308 = vmatprep.subr.mxu0 %v1385
    %3309 = vmatpush1.msra.mxu0 %v1384
    %3310 = vmatprep.subr.mxu0 %v1381
    %3311 = vmatpush1.msra.mxu0 %v1380
    %3312 = vmatprep.subr.mxu0 %v1377
    %3313 = vmatpush1.msra.mxu0 %v1376
    %3314 = vmatprep.subr.mxu0 %v1373
    %3315 = vmatpush1.msra.mxu0 %v1372
    %3316 = vmatprep.subr.mxu0 0.0
    %3317 = vmatpush2.msra.mxu0 0.0
    %3318 = vmatprep.subr.mxu0 0.0
    %3319 = vmatpush2.msra.mxu0 0.0
    %3320 = vmatprep.subr.mxu0 0.0
    %3321 = vmatpush2.msra.mxu0 0.0
    %3322 = vmatprep.subr.mxu0 0.0
    %3323 = vmatpush2.msra.mxu0 0.0
    %3324 = vmatprep.subr.mxu0 0.0
    %3325 = vmatpush2.msra.mxu0 0.0
    %3326 = vmatprep.subr.mxu0 0.0
    %3327 = vmatpush2.msra.mxu0 0.0
    %3328 = vmatprep.subr.mxu0 0.0
    %3329 = vmatpush2.msra.mxu0 0.0
    %3330 = vmatprep.subr.mxu0 0.0
    %3331 = vmatpush2.msra.mxu0 0.0
    %3332 = vmatprep.subr.mxu0 0.0
    %3333 = vmatpush2.msra.mxu0 0.0
    %3334 = vmatprep.subr.mxu0 0.0
    %3335 = vmatpush2.msra.mxu0 0.0
    %3336 = vmatprep.subr.mxu0 0.0
    %3337 = vmatpush2.msra.mxu0 0.0
    %3338 = vmatprep.subr.mxu0 0.0
    %3339 = vmatpush2.msra.mxu0 0.0
    %3340 = vmatprep.subr.mxu0 0.0
    %3341 = vmatpush2.msra.mxu0 0.0
    %3342 = vmatprep.subr.mxu0 0.0
    %3343 = vmatpush2.msra.mxu0 0.0
    %3344 = vmatprep.subr.mxu0 0.0
    %3345 = vmatpush2.msra.mxu0 0.0
    %3346 = vmatprep.subr.mxu0 0.0
    %3347 = vmatpush2.msra.mxu0 0.0
    %3348 = vmatprep.mubr.f32.mxu0 0.0
    %3349 = vmatmul.mubr.f32.gmra.mxu0 %v3279
    %v3350 = vpop.f32.mrf.mxu0
    %v3351 = vadd.f32 0.0, %v3350
    %v3352 = vpop.f32.mrf.mxu0
    %v3353 = vadd.f32 0.0, %v3352
    %3354 = vdwg.mxu0
    %3355 = vmatprep.subr.mxu0 %v1435
    %3356 = vmatpush1.msra.mxu0 %v1434
    %3357 = vmatprep.subr.mxu0 %v1431
    %3358 = vmatpush1.msra.mxu0 %v1430
    %3359 = vmatprep.subr.mxu0 %v1427
    %3360 = vmatpush1.msra.mxu0 %v1426
    %3361 = vmatprep.subr.mxu0 %v1423
    %3362 = vmatpush1.msra.mxu0 %v1422
    %3363 = vmatprep.subr.mxu0 %v1419
    %3364 = vmatpush1.msra.mxu0 %v1418
    %3365 = vmatprep.subr.mxu0 %v1415
    %3366 = vmatpush1.msra.mxu0 %v1414
    %3367 = vmatprep.subr.mxu0 %v1411
    %3368 = vmatpush1.msra.mxu0 %v1410
    %3369 = vmatprep.subr.mxu0 %v1407
    %3370 = vmatpush1.msra.mxu0 %v1406
    %3371 = vmatprep.subr.mxu0 %v1403
    %3372 = vmatpush1.msra.mxu0 %v1402
    %3373 = vmatprep.subr.mxu0 %v1399
    %3374 = vmatpush1.msra.mxu0 %v1398
    %3375 = vmatprep.subr.mxu0 %v1395
    %3376 = vmatpush1.msra.mxu0 %v1394
    %3377 = vmatprep.subr.mxu0 %v1391
    %3378 = vmatpush1.msra.mxu0 %v1390
    %3379 = vmatprep.subr.mxu0 %v1387
    %3380 = vmatpush1.msra.mxu0 %v1386
    %3381 = vmatprep.subr.mxu0 %v1383
    %3382 = vmatpush1.msra.mxu0 %v1382
    %3383 = vmatprep.subr.mxu0 %v1379
    %3384 = vmatpush1.msra.mxu0 %v1378
    %3385 = vmatprep.subr.mxu0 %v1375
    %3386 = vmatpush1.msra.mxu0 %v1374
    %3387 = vmatprep.subr.mxu0 0.0
    %3388 = vmatpush2.msra.mxu0 0.0
    %3389 = vmatprep.subr.mxu0 0.0
    %3390 = vmatpush2.msra.mxu0 0.0
    %3391 = vmatprep.subr.mxu0 0.0
    %3392 = vmatpush2.msra.mxu0 0.0
    %3393 = vmatprep.subr.mxu0 0.0
    %3394 = vmatpush2.msra.mxu0 0.0
    %3395 = vmatprep.subr.mxu0 0.0
    %3396 = vmatpush2.msra.mxu0 0.0
    %3397 = vmatprep.subr.mxu0 0.0
    %3398 = vmatpush2.msra.mxu0 0.0
    %3399 = vmatprep.subr.mxu0 0.0
    %3400 = vmatpush2.msra.mxu0 0.0
    %3401 = vmatprep.subr.mxu0 0.0
    %3402 = vmatpush2.msra.mxu0 0.0
    %3403 = vmatprep.subr.mxu0 0.0
    %3404 = vmatpush2.msra.mxu0 0.0
    %3405 = vmatprep.subr.mxu0 0.0
    %3406 = vmatpush2.msra.mxu0 0.0
    %3407 = vmatprep.subr.mxu0 0.0
    %3408 = vmatpush2.msra.mxu0 0.0
    %3409 = vmatprep.subr.mxu0 0.0
    %3410 = vmatpush2.msra.mxu0 0.0
    %3411 = vmatprep.subr.mxu0 0.0
    %3412 = vmatpush2.msra.mxu0 0.0
    %3413 = vmatprep.subr.mxu0 0.0
    %3414 = vmatpush2.msra.mxu0 0.0
    %3415 = vmatprep.subr.mxu0 0.0
    %3416 = vmatpush2.msra.mxu0 0.0
    %3417 = vmatprep.subr.mxu0 0.0
    %3418 = vmatpush2.msra.mxu0 0.0
    %3419 = vmatprep.mubr.f32.mxu0 0.0
    %3420 = vmatmul.mubr.f32.gmra.mxu0 %v3279
    %v3421 = vpop.f32.mrf.mxu0
    %v3422 = vadd.f32 0.0, %v3421
    %v3423 = vpop.f32.mrf.mxu0
    %v3424 = vadd.f32 0.0, %v3423
    %3425 = vdwg.mxu0
    %v3426 = vadd.f32 %v3280, %v3351
    %v3427 = vadd.f32 %v3281, %v3353
    %v3428 = vadd.f32 %v3282, %v3422
    %v3429 = vadd.f32 %v3283, %v3424
    %v3430 = vmul.f32 %v3426, 0.5
    %v3431 = vtanh.pop %v3430
    %v3432 = vmul.f32 %v3431, 0.5
    %v3433 = vadd.f32 %v3432, 0.5
    %v3434 = vmul.f32 %v3427, 0.5
    %v3435 = vtanh.pop %v3434
    %v3436 = vmul.f32 %v3435, 0.5
    %v3437 = vadd.f32 %v3436, 0.5
    %v3438 = vtanh.pop %v3428
    %v3439 = vmul.f32 %v3429, 0.5
    %v3440 = vtanh.pop %v3439
    %v3441 = vmul.f32 %v3440, 0.5
    %v3442 = vadd.f32 %v3441, 0.5
    %v3443 = vmul.f32 %v3437, %v3277
    %v3444 = vmul.f32 %v3433, %v3438
    %v3445 = vadd.f32 %v3443, %v3444
    %v3446 = vtanh.pop %v3445
    %v3447 = vmul.f32 %v3442, %v3446
    %v3448 = vld [vmem:[#allocation2 + $0x180] sm:$0xff]
    %v3449 = vld [vmem:[#allocation2 + $0x188] sm:$0xff]
    %v3450 = vld [vmem:[#allocation2 + $0x190] sm:$0xff]
    %v3451 = vld [vmem:[#allocation2 + $0x198] sm:$0xff]
    %3452 = vmatprep.subr.mxu0 %v1433
    %3453 = vmatpush1.msra.mxu0 %v1432
    %3454 = vmatprep.subr.mxu0 %v1429
    %3455 = vmatpush1.msra.mxu0 %v1428
    %3456 = vmatprep.subr.mxu0 %v1425
    %3457 = vmatpush1.msra.mxu0 %v1424
    %3458 = vmatprep.subr.mxu0 %v1421
    %3459 = vmatpush1.msra.mxu0 %v1420
    %3460 = vmatprep.subr.mxu0 %v1417
    %3461 = vmatpush1.msra.mxu0 %v1416
    %3462 = vmatprep.subr.mxu0 %v1413
    %3463 = vmatpush1.msra.mxu0 %v1412
    %3464 = vmatprep.subr.mxu0 %v1409
    %3465 = vmatpush1.msra.mxu0 %v1408
    %3466 = vmatprep.subr.mxu0 %v1405
    %3467 = vmatpush1.msra.mxu0 %v1404
    %3468 = vmatprep.subr.mxu0 %v1401
    %3469 = vmatpush1.msra.mxu0 %v1400
    %3470 = vmatprep.subr.mxu0 %v1397
    %3471 = vmatpush1.msra.mxu0 %v1396
    %3472 = vmatprep.subr.mxu0 %v1393
    %3473 = vmatpush1.msra.mxu0 %v1392
    %3474 = vmatprep.subr.mxu0 %v1389
    %3475 = vmatpush1.msra.mxu0 %v1388
    %3476 = vmatprep.subr.mxu0 %v1385
    %3477 = vmatpush1.msra.mxu0 %v1384
    %3478 = vmatprep.subr.mxu0 %v1381
    %3479 = vmatpush1.msra.mxu0 %v1380
    %3480 = vmatprep.subr.mxu0 %v1377
    %3481 = vmatpush1.msra.mxu0 %v1376
    %3482 = vmatprep.subr.mxu0 %v1373
    %3483 = vmatpush1.msra.mxu0 %v1372
    %3484 = vmatprep.subr.mxu0 0.0
    %3485 = vmatpush2.msra.mxu0 0.0
    %3486 = vmatprep.subr.mxu0 0.0
    %3487 = vmatpush2.msra.mxu0 0.0
    %3488 = vmatprep.subr.mxu0 0.0
    %3489 = vmatpush2.msra.mxu0 0.0
    %3490 = vmatprep.subr.mxu0 0.0
    %3491 = vmatpush2.msra.mxu0 0.0
    %3492 = vmatprep.subr.mxu0 0.0
    %3493 = vmatpush2.msra.mxu0 0.0
    %3494 = vmatprep.subr.mxu0 0.0
    %3495 = vmatpush2.msra.mxu0 0.0
    %3496 = vmatprep.subr.mxu0 0.0
    %3497 = vmatpush2.msra.mxu0 0.0
    %3498 = vmatprep.subr.mxu0 0.0
    %3499 = vmatpush2.msra.mxu0 0.0
    %3500 = vmatprep.subr.mxu0 0.0
    %3501 = vmatpush2.msra.mxu0 0.0
    %3502 = vmatprep.subr.mxu0 0.0
    %3503 = vmatpush2.msra.mxu0 0.0
    %3504 = vmatprep.subr.mxu0 0.0
    %3505 = vmatpush2.msra.mxu0 0.0
    %3506 = vmatprep.subr.mxu0 0.0
    %3507 = vmatpush2.msra.mxu0 0.0
    %3508 = vmatprep.subr.mxu0 0.0
    %3509 = vmatpush2.msra.mxu0 0.0
    %3510 = vmatprep.subr.mxu0 0.0
    %3511 = vmatpush2.msra.mxu0 0.0
    %3512 = vmatprep.subr.mxu0 0.0
    %3513 = vmatpush2.msra.mxu0 0.0
    %3514 = vmatprep.subr.mxu0 0.0
    %3515 = vmatpush2.msra.mxu0 0.0
    %3516 = vmatprep.mubr.f32.mxu0 0.0
    %3517 = vmatmul.mubr.f32.gmra.mxu0 %v3447
    %v3518 = vpop.f32.mrf.mxu0
    %v3519 = vadd.f32 0.0, %v3518
    %v3520 = vpop.f32.mrf.mxu0
    %v3521 = vadd.f32 0.0, %v3520
    %3522 = vdwg.mxu0
    %3523 = vmatprep.subr.mxu0 %v1435
    %3524 = vmatpush1.msra.mxu0 %v1434
    %3525 = vmatprep.subr.mxu0 %v1431
    %3526 = vmatpush1.msra.mxu0 %v1430
    %3527 = vmatprep.subr.mxu0 %v1427
    %3528 = vmatpush1.msra.mxu0 %v1426
    %3529 = vmatprep.subr.mxu0 %v1423
    %3530 = vmatpush1.msra.mxu0 %v1422
    %3531 = vmatprep.subr.mxu0 %v1419
    %3532 = vmatpush1.msra.mxu0 %v1418
    %3533 = vmatprep.subr.mxu0 %v1415
    %3534 = vmatpush1.msra.mxu0 %v1414
    %3535 = vmatprep.subr.mxu0 %v1411
    %3536 = vmatpush1.msra.mxu0 %v1410
    %3537 = vmatprep.subr.mxu0 %v1407
    %3538 = vmatpush1.msra.mxu0 %v1406
    %3539 = vmatprep.subr.mxu0 %v1403
    %3540 = vmatpush1.msra.mxu0 %v1402
    %3541 = vmatprep.subr.mxu0 %v1399
    %3542 = vmatpush1.msra.mxu0 %v1398
    %3543 = vmatprep.subr.mxu0 %v1395
    %3544 = vmatpush1.msra.mxu0 %v1394
    %3545 = vmatprep.subr.mxu0 %v1391
    %3546 = vmatpush1.msra.mxu0 %v1390
    %3547 = vmatprep.subr.mxu0 %v1387
    %3548 = vmatpush1.msra.mxu0 %v1386
    %3549 = vmatprep.subr.mxu0 %v1383
    %3550 = vmatpush1.msra.mxu0 %v1382
    %3551 = vmatprep.subr.mxu0 %v1379
    %3552 = vmatpush1.msra.mxu0 %v1378
    %3553 = vmatprep.subr.mxu0 %v1375
    %3554 = vmatpush1.msra.mxu0 %v1374
    %3555 = vmatprep.subr.mxu0 0.0
    %3556 = vmatpush2.msra.mxu0 0.0
    %3557 = vmatprep.subr.mxu0 0.0
    %3558 = vmatpush2.msra.mxu0 0.0
    %3559 = vmatprep.subr.mxu0 0.0
    %3560 = vmatpush2.msra.mxu0 0.0
    %3561 = vmatprep.subr.mxu0 0.0
    %3562 = vmatpush2.msra.mxu0 0.0
    %3563 = vmatprep.subr.mxu0 0.0
    %3564 = vmatpush2.msra.mxu0 0.0
    %3565 = vmatprep.subr.mxu0 0.0
    %3566 = vmatpush2.msra.mxu0 0.0
    %3567 = vmatprep.subr.mxu0 0.0
    %3568 = vmatpush2.msra.mxu0 0.0
    %3569 = vmatprep.subr.mxu0 0.0
    %3570 = vmatpush2.msra.mxu0 0.0
    %3571 = vmatprep.subr.mxu0 0.0
    %3572 = vmatpush2.msra.mxu0 0.0
    %3573 = vmatprep.subr.mxu0 0.0
    %3574 = vmatpush2.msra.mxu0 0.0
    %3575 = vmatprep.subr.mxu0 0.0
    %3576 = vmatpush2.msra.mxu0 0.0
    %3577 = vmatprep.subr.mxu0 0.0
    %3578 = vmatpush2.msra.mxu0 0.0
    %3579 = vmatprep.subr.mxu0 0.0
    %3580 = vmatpush2.msra.mxu0 0.0
    %3581 = vmatprep.subr.mxu0 0.0
    %3582 = vmatpush2.msra.mxu0 0.0
    %3583 = vmatprep.subr.mxu0 0.0
    %3584 = vmatpush2.msra.mxu0 0.0
    %3585 = vmatprep.subr.mxu0 0.0
    %3586 = vmatpush2.msra.mxu0 0.0
    %3587 = vmatprep.mubr.f32.mxu0 0.0
    %3588 = vmatmul.mubr.f32.gmra.mxu0 %v3447
    %v3589 = vpop.f32.mrf.mxu0
    %v3590 = vadd.f32 0.0, %v3589
    %v3591 = vpop.f32.mrf.mxu0
    %v3592 = vadd.f32 0.0, %v3591
    %3593 = vdwg.mxu0
    %v3594 = vadd.f32 %v3448, %v3519
    %v3595 = vadd.f32 %v3449, %v3521
    %v3596 = vadd.f32 %v3450, %v3590
    %v3597 = vadd.f32 %v3451, %v3592
    %v3598 = vmul.f32 %v3594, 0.5
    %v3599 = vtanh.pop %v3598
    %v3600 = vmul.f32 %v3599, 0.5
    %v3601 = vadd.f32 %v3600, 0.5
    %v3602 = vmul.f32 %v3595, 0.5
    %v3603 = vtanh.pop %v3602
    %v3604 = vmul.f32 %v3603, 0.5
    %v3605 = vadd.f32 %v3604, 0.5
    %v3606 = vtanh.pop %v3596
    %v3607 = vmul.f32 %v3597, 0.5
    %v3608 = vtanh.pop %v3607
    %v3609 = vmul.f32 %v3608, 0.5
    %v3610 = vadd.f32 %v3609, 0.5
    %v3611 = vmul.f32 %v3605, %v3445
    %v3612 = vmul.f32 %v3601, %v3606
    %v3613 = vadd.f32 %v3611, %v3612
    %v3614 = vtanh.pop %v3613
    %v3615 = vmul.f32 %v3610, %v3614
    %v3616 = vld [vmem:[#allocation2 + $0x1a0] sm:$0xff]
    %v3617 = vld [vmem:[#allocation2 + $0x1a8] sm:$0xff]
    %v3618 = vld [vmem:[#allocation2 + $0x1b0] sm:$0xff]
    %v3619 = vld [vmem:[#allocation2 + $0x1b8] sm:$0xff]
    %3620 = vmatprep.subr.mxu0 %v1433
    %3621 = vmatpush1.msra.mxu0 %v1432
    %3622 = vmatprep.subr.mxu0 %v1429
    %3623 = vmatpush1.msra.mxu0 %v1428
    %3624 = vmatprep.subr.mxu0 %v1425
    %3625 = vmatpush1.msra.mxu0 %v1424
    %3626 = vmatprep.subr.mxu0 %v1421
    %3627 = vmatpush1.msra.mxu0 %v1420
    %3628 = vmatprep.subr.mxu0 %v1417
    %3629 = vmatpush1.msra.mxu0 %v1416
    %3630 = vmatprep.subr.mxu0 %v1413
    %3631 = vmatpush1.msra.mxu0 %v1412
    %3632 = vmatprep.subr.mxu0 %v1409
    %3633 = vmatpush1.msra.mxu0 %v1408
    %3634 = vmatprep.subr.mxu0 %v1405
    %3635 = vmatpush1.msra.mxu0 %v1404
    %3636 = vmatprep.subr.mxu0 %v1401
    %3637 = vmatpush1.msra.mxu0 %v1400
    %3638 = vmatprep.subr.mxu0 %v1397
    %3639 = vmatpush1.msra.mxu0 %v1396
    %3640 = vmatprep.subr.mxu0 %v1393
    %3641 = vmatpush1.msra.mxu0 %v1392
    %3642 = vmatprep.subr.mxu0 %v1389
    %3643 = vmatpush1.msra.mxu0 %v1388
    %3644 = vmatprep.subr.mxu0 %v1385
    %3645 = vmatpush1.msra.mxu0 %v1384
    %3646 = vmatprep.subr.mxu0 %v1381
    %3647 = vmatpush1.msra.mxu0 %v1380
    %3648 = vmatprep.subr.mxu0 %v1377
    %3649 = vmatpush1.msra.mxu0 %v1376
    %3650 = vmatprep.subr.mxu0 %v1373
    %3651 = vmatpush1.msra.mxu0 %v1372
    %3652 = vmatprep.subr.mxu0 0.0
    %3653 = vmatpush2.msra.mxu0 0.0
    %3654 = vmatprep.subr.mxu0 0.0
    %3655 = vmatpush2.msra.mxu0 0.0
    %3656 = vmatprep.subr.mxu0 0.0
    %3657 = vmatpush2.msra.mxu0 0.0
    %3658 = vmatprep.subr.mxu0 0.0
    %3659 = vmatpush2.msra.mxu0 0.0
    %3660 = vmatprep.subr.mxu0 0.0
    %3661 = vmatpush2.msra.mxu0 0.0
    %3662 = vmatprep.subr.mxu0 0.0
    %3663 = vmatpush2.msra.mxu0 0.0
    %3664 = vmatprep.subr.mxu0 0.0
    %3665 = vmatpush2.msra.mxu0 0.0
    %3666 = vmatprep.subr.mxu0 0.0
    %3667 = vmatpush2.msra.mxu0 0.0
    %3668 = vmatprep.subr.mxu0 0.0
    %3669 = vmatpush2.msra.mxu0 0.0
    %3670 = vmatprep.subr.mxu0 0.0
    %3671 = vmatpush2.msra.mxu0 0.0
    %3672 = vmatprep.subr.mxu0 0.0
    %3673 = vmatpush2.msra.mxu0 0.0
    %3674 = vmatprep.subr.mxu0 0.0
    %3675 = vmatpush2.msra.mxu0 0.0
    %3676 = vmatprep.subr.mxu0 0.0
    %3677 = vmatpush2.msra.mxu0 0.0
    %3678 = vmatprep.subr.mxu0 0.0
    %3679 = vmatpush2.msra.mxu0 0.0
    %3680 = vmatprep.subr.mxu0 0.0
    %3681 = vmatpush2.msra.mxu0 0.0
    %3682 = vmatprep.subr.mxu0 0.0
    %3683 = vmatpush2.msra.mxu0 0.0
    %3684 = vmatprep.mubr.f32.mxu0 0.0
    %3685 = vmatmul.mubr.f32.gmra.mxu0 %v3615
    %v3686 = vpop.f32.mrf.mxu0
    %v3687 = vadd.f32 0.0, %v3686
    %v3688 = vpop.f32.mrf.mxu0
    %v3689 = vadd.f32 0.0, %v3688
    %3690 = vdwg.mxu0
    %3691 = vmatprep.subr.mxu0 %v1435
    %3692 = vmatpush1.msra.mxu0 %v1434
    %3693 = vmatprep.subr.mxu0 %v1431
    %3694 = vmatpush1.msra.mxu0 %v1430
    %3695 = vmatprep.subr.mxu0 %v1427
    %3696 = vmatpush1.msra.mxu0 %v1426
    %3697 = vmatprep.subr.mxu0 %v1423
    %3698 = vmatpush1.msra.mxu0 %v1422
    %3699 = vmatprep.subr.mxu0 %v1419
    %3700 = vmatpush1.msra.mxu0 %v1418
    %3701 = vmatprep.subr.mxu0 %v1415
    %3702 = vmatpush1.msra.mxu0 %v1414
    %3703 = vmatprep.subr.mxu0 %v1411
    %3704 = vmatpush1.msra.mxu0 %v1410
    %3705 = vmatprep.subr.mxu0 %v1407
    %3706 = vmatpush1.msra.mxu0 %v1406
    %3707 = vmatprep.subr.mxu0 %v1403
    %3708 = vmatpush1.msra.mxu0 %v1402
    %3709 = vmatprep.subr.mxu0 %v1399
    %3710 = vmatpush1.msra.mxu0 %v1398
    %3711 = vmatprep.subr.mxu0 %v1395
    %3712 = vmatpush1.msra.mxu0 %v1394
    %3713 = vmatprep.subr.mxu0 %v1391
    %3714 = vmatpush1.msra.mxu0 %v1390
    %3715 = vmatprep.subr.mxu0 %v1387
    %3716 = vmatpush1.msra.mxu0 %v1386
    %3717 = vmatprep.subr.mxu0 %v1383
    %3718 = vmatpush1.msra.mxu0 %v1382
    %3719 = vmatprep.subr.mxu0 %v1379
    %3720 = vmatpush1.msra.mxu0 %v1378
    %3721 = vmatprep.subr.mxu0 %v1375
    %3722 = vmatpush1.msra.mxu0 %v1374
    %3723 = vmatprep.subr.mxu0 0.0
    %3724 = vmatpush2.msra.mxu0 0.0
    %3725 = vmatprep.subr.mxu0 0.0
    %3726 = vmatpush2.msra.mxu0 0.0
    %3727 = vmatprep.subr.mxu0 0.0
    %3728 = vmatpush2.msra.mxu0 0.0
    %3729 = vmatprep.subr.mxu0 0.0
    %3730 = vmatpush2.msra.mxu0 0.0
    %3731 = vmatprep.subr.mxu0 0.0
    %3732 = vmatpush2.msra.mxu0 0.0
    %3733 = vmatprep.subr.mxu0 0.0
    %3734 = vmatpush2.msra.mxu0 0.0
    %3735 = vmatprep.subr.mxu0 0.0
    %3736 = vmatpush2.msra.mxu0 0.0
    %3737 = vmatprep.subr.mxu0 0.0
    %3738 = vmatpush2.msra.mxu0 0.0
    %3739 = vmatprep.subr.mxu0 0.0
    %3740 = vmatpush2.msra.mxu0 0.0
    %3741 = vmatprep.subr.mxu0 0.0
    %3742 = vmatpush2.msra.mxu0 0.0
    %3743 = vmatprep.subr.mxu0 0.0
    %3744 = vmatpush2.msra.mxu0 0.0
    %3745 = vmatprep.subr.mxu0 0.0
    %3746 = vmatpush2.msra.mxu0 0.0
    %3747 = vmatprep.subr.mxu0 0.0
    %3748 = vmatpush2.msra.mxu0 0.0
    %3749 = vmatprep.subr.mxu0 0.0
    %3750 = vmatpush2.msra.mxu0 0.0
    %3751 = vmatprep.subr.mxu0 0.0
    %3752 = vmatpush2.msra.mxu0 0.0
    %3753 = vmatprep.subr.mxu0 0.0
    %3754 = vmatpush2.msra.mxu0 0.0
    %3755 = vmatprep.mubr.f32.mxu0 0.0
    %3756 = vmatmul.mubr.f32.gmra.mxu0 %v3615
    %v3757 = vpop.f32.mrf.mxu0
    %v3758 = vadd.f32 0.0, %v3757
    %v3759 = vpop.f32.mrf.mxu0
    %v3760 = vadd.f32 0.0, %v3759
    %3761 = vdwg.mxu0
    %v3762 = vadd.f32 %v3616, %v3687
    %v3763 = vadd.f32 %v3617, %v3689
    %v3764 = vadd.f32 %v3618, %v3758
    %v3765 = vadd.f32 %v3619, %v3760
    %v3766 = vmul.f32 %v3762, 0.5
    %v3767 = vtanh.pop %v3766
    %v3768 = vmul.f32 %v3767, 0.5
    %v3769 = vadd.f32 %v3768, 0.5
    %v3770 = vmul.f32 %v3763, 0.5
    %v3771 = vtanh.pop %v3770
    %v3772 = vmul.f32 %v3771, 0.5
    %v3773 = vadd.f32 %v3772, 0.5
    %v3774 = vtanh.pop %v3764
    %v3775 = vmul.f32 %v3765, 0.5
    %v3776 = vtanh.pop %v3775
    %v3777 = vmul.f32 %v3776, 0.5
    %v3778 = vadd.f32 %v3777, 0.5
    %v3779 = vmul.f32 %v3773, %v3613
    %v3780 = vmul.f32 %v3769, %v3774
    %v3781 = vadd.f32 %v3779, %v3780
    %v3782 = vtanh.pop %v3781
    %v3783 = vmul.f32 %v3778, %v3782
    %v3784 = vld [vmem:[#allocation8] sm:$0xff]
    %v3785 = vld [vmem:[#allocation8 + $0x8] sm:$0xff]
    %v3786 = vld [vmem:[#allocation8 + $0x10] sm:$0xff]
    %v3787 = vld [vmem:[#allocation8 + $0x18] sm:$0xff]
    %v3788 = vld [vmem:[#allocation8 + $0x20] sm:$0xff]
    %v3789 = vld [vmem:[#allocation8 + $0x28] sm:$0xff]
    %v3790 = vld [vmem:[#allocation8 + $0x30] sm:$0xff]
    %v3791 = vld [vmem:[#allocation8 + $0x38] sm:$0xff]
    %v3792 = vld [vmem:[#allocation8 + $0x40] sm:$0xff]
    %v3793 = vld [vmem:[#allocation8 + $0x48] sm:$0xff]
    %v3794 = vld [vmem:[#allocation8 + $0x50] sm:$0xff]
    %v3795 = vld [vmem:[#allocation8 + $0x58] sm:$0xff]
    %v3796 = vld [vmem:[#allocation8 + $0x60] sm:$0xff]
    %v3797 = vld [vmem:[#allocation8 + $0x68] sm:$0xff]
    %v3798 = vld [vmem:[#allocation8 + $0x70] sm:$0xff]
    %v3799 = vld [vmem:[#allocation8 + $0x78] sm:$0xff]
    %v3800 = vld [vmem:[%s8] sm:$0x1]
    %v3802 = vlaneseq
    %v3803 = vshrl.u32 %v3802, 7
    %v3804 = vsub.s32 0, %v3803
    %v3805 = vrot.slane %v3800, %v3804
    %3807 = vmatprep.subr.mxu0 0.0
    %3808 = vmatpush1.msra.mxu0 %v3799
    %3809 = vmatprep.subr.mxu0 0.0
    %3810 = vmatpush1.msra.mxu0 %v3798
    %3811 = vmatprep.subr.mxu0 0.0
    %3812 = vmatpush1.msra.mxu0 %v3797
    %3813 = vmatprep.subr.mxu0 0.0
    %3814 = vmatpush1.msra.mxu0 %v3796
    %3815 = vmatprep.subr.mxu0 0.0
    %3816 = vmatpush1.msra.mxu0 %v3795
    %3817 = vmatprep.subr.mxu0 0.0
    %3818 = vmatpush1.msra.mxu0 %v3794
    %3819 = vmatprep.subr.mxu0 0.0
    %3820 = vmatpush1.msra.mxu0 %v3793
    %3821 = vmatprep.subr.mxu0 0.0
    %3822 = vmatpush1.msra.mxu0 %v3792
    %3823 = vmatprep.subr.mxu0 0.0
    %3824 = vmatpush1.msra.mxu0 %v3791
    %3825 = vmatprep.subr.mxu0 0.0
    %3826 = vmatpush1.msra.mxu0 %v3790
    %3827 = vmatprep.subr.mxu0 0.0
    %3828 = vmatpush1.msra.mxu0 %v3789
    %3829 = vmatprep.subr.mxu0 0.0
    %3830 = vmatpush1.msra.mxu0 %v3788
    %3831 = vmatprep.subr.mxu0 0.0
    %3832 = vmatpush1.msra.mxu0 %v3787
    %3833 = vmatprep.subr.mxu0 0.0
    %3834 = vmatpush1.msra.mxu0 %v3786
    %3835 = vmatprep.subr.mxu0 0.0
    %3836 = vmatpush1.msra.mxu0 %v3785
    %3837 = vmatprep.subr.mxu0 0.0
    %3838 = vmatpush1.msra.mxu0 %v3784
    %3839 = vmatprep.subr.mxu0 0.0
    %3840 = vmatpush2.msra.mxu0 0.0
    %3841 = vmatprep.subr.mxu0 0.0
    %3842 = vmatpush2.msra.mxu0 0.0
    %3843 = vmatprep.subr.mxu0 0.0
    %3844 = vmatpush2.msra.mxu0 0.0
    %3845 = vmatprep.subr.mxu0 0.0
    %3846 = vmatpush2.msra.mxu0 0.0
    %3847 = vmatprep.subr.mxu0 0.0
    %3848 = vmatpush2.msra.mxu0 0.0
    %3849 = vmatprep.subr.mxu0 0.0
    %3850 = vmatpush2.msra.mxu0 0.0
    %3851 = vmatprep.subr.mxu0 0.0
    %3852 = vmatpush2.msra.mxu0 0.0
    %3853 = vmatprep.subr.mxu0 0.0
    %3854 = vmatpush2.msra.mxu0 0.0
    %3855 = vmatprep.subr.mxu0 0.0
    %3856 = vmatpush2.msra.mxu0 0.0
    %3857 = vmatprep.subr.mxu0 0.0
    %3858 = vmatpush2.msra.mxu0 0.0
    %3859 = vmatprep.subr.mxu0 0.0
    %3860 = vmatpush2.msra.mxu0 0.0
    %3861 = vmatprep.subr.mxu0 0.0
    %3862 = vmatpush2.msra.mxu0 0.0
    %3863 = vmatprep.subr.mxu0 0.0
    %3864 = vmatpush2.msra.mxu0 0.0
    %3865 = vmatprep.subr.mxu0 0.0
    %3866 = vmatpush2.msra.mxu0 0.0
    %3867 = vmatprep.subr.mxu0 0.0
    %3868 = vmatpush2.msra.mxu0 0.0
    %3869 = vmatprep.subr.mxu0 0.0
    %3870 = vmatpush2.msra.mxu0 0.0
    %3871 = vmatprep.mubr.f32.mxu0 0.0
    %3872 = vmatmul.mubr.f32.gmra.mxu0 %v3783
    %v3873 = vpop.f32.mrf.mxu0
    %v3874 = vadd.f32 %v3805, %v3873
    %v3875 = vpop.f32.mrf.mxu0
    %3876 = vdwg.mxu0
    %3877 = vmax.xlane.f32.xlu0 %v3874
    %v3878 = vpop.xlane.xlu0 %3877
    %v3879 = vsub.f32 %v3874, %v3878
    %v3880 = vmul.f32 %v3879, 1.442695
    %v3881 = vpow.pop %v3880
    %3882 = vadd.xlane.f32.xlu0 %v3881
    %v3883 = vpop.xlane.xlu0 %3882
    %v3884 = vlog2.pop %v3883
    %v3885 = vmul.f32 %v3884, 0.6931472
    %v3886 = vsub.f32 %v3879, %v3885
    %3887 = vst [vmem:[%s9] sm:$0xff] %v3886
    // Predicated region
    $region54: #{conv_lstm_forward.1} parent=1 // pred_check
      _
    $region55: #{conv_lstm_forward.1} parent=1 // pred_check_branch
      %3889 = sbr.rel (0) target = $region57
    $region56: #{conv_lstm_forward.1} parent=1 // pred_region
      _
    $region57: #{conv_lstm_forward.1} parent=1 // pred_fallthru
      _
    // Predicated region
    $region58: #{conv_lstm_forward.1} parent=1 // pred_check
      _
    $region59: #{conv_lstm_forward.1} parent=1 // pred_check_branch
      %3891 = sbr.rel (0) target = $region61
    $region60: #{conv_lstm_forward.1} parent=1 // pred_region
      _
    $region61: #{conv_lstm_forward.1} parent=1 // pred_fallthru
      _
    %3892 = vsyncpa [#allocation4], 1
    %3893 = vsyncpa [#allocation6], 1
    %3894 = vsyncpa [#allocation9], 1

</llo_original>
